<compile_context>
chip_gen: v7x
topology: tpu7x:2x2x1
jax: 0.10.0
libtpu: 0.0.40
codegen_flags: <defaults>
</compile_context>

<pallas_src>
import functools

import jax
import jax.numpy as jnp
from jax import lax
from jax.experimental import pallas as pl
from jax.experimental.pallas import tpu as pltpu

LANE = 128
NEG = -10000.0


def _round_up(x, m):
    return ((x + m - 1) // m) * m


def _vmem_limit_bytes(frac=0.45):
    # Generation-aware scoped-VMEM budget (v5e/v6e: 128 MiB physical, v7x: 64 MiB).
    try:
        cap = pltpu.get_tpu_info().vmem_capacity_bytes
    except Exception:
        cap = 128 * 1024 * 1024
    return int(cap * frac)


def _pick_tb(B):
    # Batch tile must equal B or be a multiple of 8 dividing B (block-layout constraint);
    # >= 2 tiles lets megacore / v7x's two TensorCores shard the "parallel" batch axis.
    for tb in (128, 64, 32, 16, 8):
        if B % tb == 0 and B // tb >= 2:
            return tb
    return B


def _pick_tu(Tp, TB, Hp, Lp, vmem_limit):
    # Timesteps unrolled per grid step, bounded by a VMEM estimate of the BiLSTM+emit kernel.
    def est(tu):
        gx_blocks = 2 * 2 * tu * TB * 4 * Hp * 2       # fwd+bwd gx blocks, double-buffered, bf16
        whh = 2 * 2 * Hp * 4 * Hp * 2                  # 2 directions, double-buffered, bf16
        wtag = 2 * 2 * Hp * Lp * 2 + 2 * Lp * 4        # tag weights + bias
        em_out = 2 * 2 * tu * TB * Lp * 4              # 2 emission outputs, double-buffered, f32
        scratch = 4 * TB * Hp * 4 + 2 * tu * TB * Hp * 4
        return gx_blocks + whh + wtag + em_out + scratch

    budget = int(0.8 * vmem_limit)
    cands = [tu for tu in (8, 4, 2, 1) if Tp % tu == 0]
    for tu in cands:                       # prefer >= 2 time blocks to keep the pipeline live
        if Tp // tu >= 2 and est(tu) <= budget:
            return tu
    for tu in cands:
        if est(tu) <= budget:
            return tu
    return 1


# ----------------------------------------------------------------------------
# Kernel 1: tiled dense projection  y = x @ W + b   (fused fwd+bwd input gates)
# ----------------------------------------------------------------------------
def _linear_kernel(x_ref, w_ref, b_ref, o_ref):
    acc = jnp.dot(x_ref[...], w_ref[...], preferred_element_type=jnp.float32)
    o_ref[...] = (acc + b_ref[...]).astype(o_ref.dtype)


def fused_linear(x, w_t, b, *, out_dtype=jnp.bfloat16, tm=512, tn=1024, vmem_limit=None):
    # x: (M, K) bf16, w_t: (K, N) bf16, b: (1, N) f32  ->  (M, N) out_dtype
    # TODO(synk): the embedding gather (jnp.take in the wrapper) could be fused here via
    # PrefetchScalarGridSpec row-gather to save one HBM round trip of the activation.
    M, K = x.shape
    N = w_t.shape[1]
    tm = min(tm, _round_up(M, 8))
    tn = N if N <= tn else tn
    assert N % tn == 0
    Mp = _round_up(M, tm)
    if Mp != M:
        x = jnp.pad(x, ((0, Mp - M), (0, 0)))
    if vmem_limit is None:
        vmem_limit = _vmem_limit_bytes()
    out = pl.pallas_call(
        _linear_kernel,
        out_shape=jax.ShapeDtypeStruct((Mp, N), out_dtype),
        grid=(Mp // tm, N // tn),
        in_specs=[
            pl.BlockSpec((tm, K), lambda i, j: (i, 0)),
            pl.BlockSpec((K, tn), lambda i, j: (0, j)),
            pl.BlockSpec((1, tn), lambda i, j: (0, j)),
        ],
        out_specs=pl.BlockSpec((tm, tn), lambda i, j: (i, j)),
        compiler_params=pltpu.CompilerParams(
            dimension_semantics=("parallel", "parallel"),
            vmem_limit_bytes=vmem_limit,
        ),
    )(x, w_t, b)
    return out[:M] if Mp != M else out


# ----------------------------------------------------------------------------
# Kernel 2: fused forward+backward LSTM recurrence + hidden2tag emissions.
# gx already holds x_t @ W_ih^T + (b_ih + b_hh) for BOTH directions (last dim 8*Hp);
# the kernel adds h_{t-1} @ W_hh^T, applies gates (PyTorch order i, f, g, o), keeps
# (h, c) per direction in f32 VMEM scratch, then computes the per-block emissions
# em_f = H_f @ Wtag_f + b_tag and em_b = H_b @ Wtag_b with one big-M dot per direction.
# grid = (batch tiles [parallel], time blocks [arbitrary]); TU timesteps per grid step.
# ----------------------------------------------------------------------------
def _bilstm_emit_kernel(gxf_ref, gxb_ref, whhf_ref, whhb_ref, wtf_ref, wtb_ref, btag_ref,
                        emf_ref, emb_ref,
                        hf_sc, cf_sc, hb_sc, cb_sc, hf_buf, hb_buf):
    tb = pl.program_id(1)
    TU, TB, _ = gxf_ref.shape
    Hp = hf_sc.shape[1]

    @pl.when(tb == 0)
    def _():
        hf_sc[...] = jnp.zeros_like(hf_sc)
        cf_sc[...] = jnp.zeros_like(cf_sc)
        hb_sc[...] = jnp.zeros_like(hb_sc)
        cb_sc[...] = jnp.zeros_like(cb_sc)

    whh_f = whhf_ref[...]                 # (Hp, 4Hp) bf16, resident block
    whh_b = whhb_ref[...]

    def cell(gx, whh, h, c):
        # MXU accumulates in f32; gate math stays in f32 on the VPU/EUP.
        gates = gx.astype(jnp.float32) + jnp.dot(
            h.astype(jnp.bfloat16), whh, preferred_element_type=jnp.float32)
        i_g = jax.nn.sigmoid(gates[:, 0 * Hp:1 * Hp])     # lane-aligned per-gate slices
        f_g = jax.nn.sigmoid(gates[:, 1 * Hp:2 * Hp])
        g_g = jnp.tanh(gates[:, 2 * Hp:3 * Hp])
        o_g = jax.nn.sigmoid(gates[:, 3 * Hp:4 * Hp])
        c_new = f_g * c + i_g * g_g
        h_new = o_g * jnp.tanh(c_new)
        return h_new, c_new

    for u in range(TU):                   # fully unrolled (TU is small & static)
        hf, cf = cell(gxf_ref[u], whh_f, hf_sc[...], cf_sc[...])
        hf_sc[...] = hf
        cf_sc[...] = cf
        hf_buf[pl.ds(u * TB, TB), :] = hf

        ub = TU - 1 - u                   # backward block is stored in forward time order
        hb, cb = cell(gxb_ref[ub], whh_b, hb_sc[...], cb_sc[...])
        hb_sc[...] = hb
        cb_sc[...] = cb
        hb_buf[pl.ds(ub * TB, TB), :] = hb

    # Fused hidden2tag: one (TU*TB, Hp) @ (Hp, Lp) dot per direction (hoisted out of the
    # serial recurrence and off the Viterbi critical path).
    emf = jnp.dot(hf_buf[...].astype(jnp.bfloat16), wtf_ref[...],
                  preferred_element_type=jnp.float32) + btag_ref[...]
    emb = jnp.dot(hb_buf[...].astype(jnp.bfloat16), wtb_ref[...],
                  preferred_element_type=jnp.float32)
    for u in range(TU):
        emf_ref[u] = emf[u * TB:(u + 1) * TB, :]
        emb_ref[u] = emb[u * TB:(u + 1) * TB, :]


def bilstm_emit(gx_both, whh_f_t, whh_b_t, wtag_f_t, wtag_b_t, b_tag, *,
                Hp, Lp, TU, TB, vmem_limit):
    # gx_both: (Tp, B, 8*Hp) bf16 (cols [0,4Hp)=forward gates, [4Hp,8Hp)=backward gates)
    Tp, B, _ = gx_both.shape
    nbt = Tp // TU
    nbb = B // TB
    return pl.pallas_call(
        _bilstm_emit_kernel,
        out_shape=(jax.ShapeDtypeStruct((Tp, B, Lp), jnp.float32),
                   jax.ShapeDtypeStruct((Tp, B, Lp), jnp.float32)),
        grid=(nbb, nbt),
        in_specs=[
            pl.BlockSpec((TU, TB, 4 * Hp), lambda bi, tb: (tb, bi, 0)),
            pl.BlockSpec((TU, TB, 4 * Hp), lambda bi, tb: (nbt - 1 - tb, bi, 1)),
            pl.BlockSpec((Hp, 4 * Hp), lambda bi, tb: (0, 0)),
            pl.BlockSpec((Hp, 4 * Hp), lambda bi, tb: (0, 0)),
            pl.BlockSpec((Hp, Lp), lambda bi, tb: (0, 0)),
            pl.BlockSpec((Hp, Lp), lambda bi, tb: (0, 0)),
            pl.BlockSpec((1, Lp), lambda bi, tb: (0, 0)),
        ],
        out_specs=(
            pl.BlockSpec((TU, TB, Lp), lambda bi, tb: (tb, bi, 0)),
            pl.BlockSpec((TU, TB, Lp), lambda bi, tb: (nbt - 1 - tb, bi, 0)),
        ),
        scratch_shapes=[pltpu.VMEM((TB, Hp), jnp.float32) for _ in range(4)]
                      + [pltpu.VMEM((TU * TB, Hp), jnp.float32) for _ in range(2)],
        compiler_params=pltpu.CompilerParams(
            dimension_semantics=("parallel", "arbitrary"),
            vmem_limit_bytes=vmem_limit,
        ),
    )(gx_both, gx_both, whh_f_t, whh_b_t, wtag_f_t, wtag_b_t, b_tag)


# ----------------------------------------------------------------------------
# Kernel 3: CRF Viterbi forward recursion (max-plus) on precomputed emissions.
# transitions[prev, cur]; START = L-2, STOP = L-1 (NCRF++-style expanded tagset).
# The current-tag axis is padded to Lp=128 (-1e4 sentinels); the previous-tag axis is
# handled with an explicit loop over the L REAL tags keeping a running max + first-argmax
# on (TB, Lp) vregs (fused max/argmax, no (TB, Lp, Lp) temp).
# ----------------------------------------------------------------------------
def _viterbi_kernel(start_idx, n_tags, emf_ref, emb_ref, trans_ref, len_ref,
                    bp_ref, part_ref, part_sc):
    tb = pl.program_id(1)
    TU, TB, Lp = emf_ref.shape
    trans = trans_ref[...]                                  # (Lp8, Lp) f32, resident
    lengths = len_ref[...]                                  # (TB, 1) int32
    ident = lax.broadcasted_iota(jnp.int32, (TB, Lp), 1)

    def maxplus(prev):
        # Padded previous tags can never win (their partitions carry -1e4 penalties),
        # so looping over the n_tags real tags gives an identical decode.
        best = prev[:, 0:1] + trans[0:1, :]
        bp = jnp.zeros((TB, Lp), jnp.int32)
        for p in range(1, n_tags):
            cand = prev[:, p:p + 1] + trans[p:p + 1, :]
            upd = cand > best                               # strict > keeps the first argmax
            best = jnp.where(upd, cand, best)
            bp = jnp.where(upd, jnp.int32(p), bp)
        return best, bp

    def step(u, t):
        em_u = emf_ref[u] + emb_ref[u]                      # (TB, Lp) f32
        prev = part_sc[...]
        best, bp = maxplus(prev)
        keep = lengths > t                                  # prefix (length) mask
        part_sc[...] = jnp.where(keep, best + em_u, prev)
        bp_ref[u] = jnp.where(keep, bp, ident)

    for u in range(TU):                                     # fully unrolled
        t = tb * TU + u
        if u == 0:
            @pl.when(tb == 0)
            def _():
                # t == 0: partition = emission + transitions from START (no max-plus).
                part_sc[...] = (emf_ref[0] + emb_ref[0]
                                + trans[start_idx:start_idx + 1, :])
                bp_ref[0] = jnp.zeros((TB, Lp), jnp.int32)

            @pl.when(tb > 0)
            def _():
                step(0, t)
        else:
            step(u, t)

    part_ref[...] = part_sc[...]


def viterbi_forward(em_f, em_b, trans, lengths, *, start_idx, n_tags, TU, TB, vmem_limit):
    Tp, B, Lp = em_f.shape
    nbt = Tp // TU
    nbb = B // TB
    kernel = functools.partial(_viterbi_kernel, start_idx, n_tags)
    return pl.pallas_call(
        kernel,
        out_shape=(jax.ShapeDtypeStruct((Tp, B, Lp), jnp.int32),
                   jax.ShapeDtypeStruct((B, Lp), jnp.float32)),
        grid=(nbb, nbt),
        in_specs=[
            pl.BlockSpec((TU, TB, Lp), lambda bi, tb: (tb, bi, 0)),
            pl.BlockSpec((TU, TB, Lp), lambda bi, tb: (tb, bi, 0)),
            pl.BlockSpec(trans.shape, lambda bi, tb: (0, 0)),
            pl.BlockSpec((TB, 1), lambda bi, tb: (bi, 0)),
        ],
        out_specs=(
            pl.BlockSpec((TU, TB, Lp), lambda bi, tb: (tb, bi, 0)),
            pl.BlockSpec((TB, Lp), lambda bi, tb: (bi, 0)),
        ),
        scratch_shapes=[pltpu.VMEM((TB, Lp), jnp.float32)],
        compiler_params=pltpu.CompilerParams(
            dimension_semantics=("parallel", "arbitrary"),
            vmem_limit_bytes=vmem_limit,
        ),
    )(em_f, em_b, trans, lengths)


# ----------------------------------------------------------------------------
# Kernel 4: backtrace over the backpointers (reverse time blocks, one-hot lane select),
# replacing the serial lax.scan of T tiny XLA gathers.
# ----------------------------------------------------------------------------
def _backtrace_kernel(bp_ref, last_ref, path_ref, tag_sc):
    rb = pl.program_id(0)                      # rb = 0 processes the LAST time block
    TU, B, Lp = bp_ref.shape

    @pl.when(rb == 0)
    def _():
        tag_sc[...] = last_ref[...]            # (B, 1) int32 best final tag

    lanes = lax.broadcasted_iota(jnp.int32, (B, Lp), 1)
    for u in reversed(range(TU)):              # within-block times, latest -> earliest
        cur = tag_sc[...]                      # (B, 1) tag at time t
        path_ref[u] = cur
        onehot = lanes == cur                  # (B, Lp)
        sel = jnp.where(onehot, bp_ref[u].astype(jnp.float32), 0.0)
        tag_sc[...] = jnp.sum(sel, axis=1, keepdims=True).astype(jnp.int32)


def backtrace(bps, last_tag, *, TU, vmem_limit):
    # bps: (Tp, B, Lp) int32 backpointers, last_tag: (B, 1) int32 -> (Tp, B) tag path
    Tp, B, Lp = bps.shape
    nbt = Tp // TU
    path = pl.pallas_call(
        _backtrace_kernel,
        out_shape=jax.ShapeDtypeStruct((Tp, B, 1), jnp.int32),
        grid=(nbt,),
        in_specs=[
            pl.BlockSpec((TU, B, Lp), lambda rb: (nbt - 1 - rb, 0, 0)),
            pl.BlockSpec((B, 1), lambda rb: (0, 0)),
        ],
        out_specs=pl.BlockSpec((TU, B, 1), lambda rb: (nbt - 1 - rb, 0, 0)),
        scratch_shapes=[pltpu.VMEM((B, 1), jnp.int32)],
        compiler_params=pltpu.CompilerParams(
            dimension_semantics=("arbitrary",),
            vmem_limit_bytes=vmem_limit,
        ),
    )(bps, last_tag)
    return path[..., 0]


# ----------------------------------------------------------------------------
# Parameters: raw PyTorch-convention params + padding/fusion into kernel layout
# ----------------------------------------------------------------------------
def init_params(key, vocab, emb_dim, hidden_half, label_size):
    L = label_size + 2          # + START/STOP as in the CRF (label_alphabet_size += 2)
    H = hidden_half
    ks = jax.random.split(key, 13)
    s = 0.1
    n = jax.random.normal
    p = {
        "embedding": s * n(ks[0], (vocab, emb_dim), jnp.float32),
        "w_ih_f": s * n(ks[1], (4 * H, emb_dim), jnp.float32),
        "w_hh_f": s * n(ks[2], (4 * H, H), jnp.float32),
        "b_ih_f": s * n(ks[3], (4 * H,), jnp.float32),
        "b_hh_f": s * n(ks[4], (4 * H,), jnp.float32),
        "w_ih_b": s * n(ks[5], (4 * H, emb_dim), jnp.float32),
        "w_hh_b": s * n(ks[6], (4 * H, H), jnp.float32),
        "b_ih_b": s * n(ks[7], (4 * H,), jnp.float32),
        "b_hh_b": s * n(ks[8], (4 * H,), jnp.float32),
        "w_tag": s * n(ks[9], (L, 2 * H), jnp.float32),
        "b_tag": s * n(ks[10], (L,), jnp.float32),
    }
    trans = s * n(ks[11], (L, L), jnp.float32)
    trans = trans.at[:, L - 2].set(NEG)   # nothing transitions into START
    trans = trans.at[L - 1, :].set(NEG)   # nothing transitions out of STOP
    p["transitions"] = trans
    return p


def prepare_params(raw):
    """Pad gates/tags to lane multiples, fold biases, fuse both directions' W_ih."""
    H = raw["w_hh_f"].shape[1]
    L = raw["transitions"].shape[0]
    # NOTE: per-gate lane padding wastes work when H << 128 (demo); fine for production H.
    Hp = _round_up(H, LANE)
    Lp = _round_up(L, LANE)
    Lp8 = _round_up(L, 8)       # previous-tag axis only needs sublane alignment

    def ih_t(w):                # (4H, E) -> (E, 4Hp) bf16, per-gate zero pad
        E = w.shape[1]
        w4 = w.reshape(4, H, E)
        wp = jnp.zeros((4, Hp, E), jnp.float32).at[:, :H, :].set(w4)
        return wp.reshape(4 * Hp, E).T.astype(jnp.bfloat16)

    def hh_t(w):                # (4H, H) -> (Hp, 4Hp) bf16
        w4 = w.reshape(4, H, H)
        wp = jnp.zeros((4, Hp, Hp), jnp.float32).at[:, :H, :H].set(w4)
        return wp.reshape(4 * Hp, Hp).T.astype(jnp.bfloat16)

    def bias(b_ih, b_hh):       # -> (1, 4Hp) f32 (zero pad keeps padded h == 0)
        b = (b_ih + b_hh).reshape(4, H)
        bp = jnp.zeros((4, Hp), jnp.float32).at[:, :H].set(b)
        return bp.reshape(1, 4 * Hp)

    w_ih_both_t = jnp.concatenate([ih_t(raw["w_ih_f"]), ih_t(raw["w_ih_b"])], axis=1)
    b_ih_both = jnp.concatenate([bias(raw["b_ih_f"], raw["b_hh_f"]),
                                 bias(raw["b_ih_b"], raw["b_hh_b"])], axis=1)

    def tag_half(wcols):        # (L, H) -> (Hp, Lp) bf16
        wp = jnp.zeros((Hp, Lp), jnp.float32).at[:H, :L].set(wcols.T)
        return wp.astype(jnp.bfloat16)

    w_tag = raw["w_tag"]
    b_tag = jnp.full((1, Lp), NEG, jnp.float32).at[0, :L].set(raw["b_tag"])
    trans_p = jnp.full((Lp8, Lp), NEG, jnp.float32).at[:L, :L].set(raw["transitions"])
    trans_to_stop = jnp.full((1, Lp), NEG, jnp.float32).at[0, :L].set(
        raw["transitions"][:, L - 1])

    return {
        "embedding": raw["embedding"].astype(jnp.bfloat16),
        "w_ih_both_t": w_ih_both_t,
        "b_ih_both": b_ih_both,
        "w_hh_f_t": hh_t(raw["w_hh_f"]),
        "w_hh_b_t": hh_t(raw["w_hh_b"]),
        "w_tag_f_t": tag_half(w_tag[:, :H]),
        "w_tag_b_t": tag_half(w_tag[:, H:]),
        "b_tag": b_tag,
        "transitions": trans_p,          # (Lp8, Lp): prev padded to 8, cur padded to 128
        "trans_to_stop": trans_to_stop,  # (1, Lp)
    }


# ----------------------------------------------------------------------------
# Full forward (mirrors BiLSTM_CRF.forward: returns tag_seq)
# ----------------------------------------------------------------------------
def bilstm_crf_forward(params, word_inputs, batch_wordtype, mask,
                       bert_seq_tensor, bert_mask, sourceVector, targetVector,
                       *, num_labels):
    # TODO(synk): BERT features, source/target domain vectors, wordtype gating and the
    # alignment flag live in data-specific submodules not shown in the reference; the
    # emission path here is embedding -> BiLSTM -> hidden2tag.
    del batch_wordtype, bert_seq_tensor, bert_mask, sourceVector, targetVector
    B, T = word_inputs.shape
    Hp = params["w_hh_f_t"].shape[0]
    Lp = params["transitions"].shape[1]
    L = num_labels                                   # real tagset incl. START/STOP

    vmem_limit = _vmem_limit_bytes()

    # embeddings gathered already time-major (cheap transpose of the int32 indices)
    emb_tm = jnp.take(params["embedding"], word_inputs.T, axis=0)    # (T, B, E) bf16
    E = emb_tm.shape[-1]

    # fused fwd+bwd input projection: (T*B, E) @ (E, 8Hp) + b, tiled over (M, N)
    gx = fused_linear(emb_tm.reshape(T * B, E), params["w_ih_both_t"],
                      params["b_ih_both"], vmem_limit=vmem_limit)
    gx = gx.reshape(T, B, 8 * Hp)

    # pad T to a multiple of 8 with "neutral" gate blocks (i/f/o saturated off, g = 0):
    # padded steps keep h = c = 0, so the backward recurrence is unaffected by the padding.
    Tp = _round_up(T, 8)
    if Tp != T:
        neg = jnp.full((Hp,), NEG, jnp.float32)
        zero = jnp.zeros((Hp,), jnp.float32)
        neutral = jnp.tile(jnp.concatenate([neg, neg, zero, neg]), 2).astype(gx.dtype)
        pad = jnp.broadcast_to(neutral, (Tp - T, B, 8 * Hp))
        gx = jnp.concatenate([gx, pad], axis=0)

    TB = _pick_tb(B)
    TU = _pick_tu(Tp, TB, Hp, Lp, vmem_limit)

    # TODO(synk): backward LSTM runs over the full (padded) length rather than
    # pack_padded_sequence semantics; identical when mask is all ones.
    em_f, em_b = bilstm_emit(gx, params["w_hh_f_t"], params["w_hh_b_t"],
                             params["w_tag_f_t"], params["w_tag_b_t"], params["b_tag"],
                             Hp=Hp, Lp=Lp, TU=TU, TB=TB, vmem_limit=vmem_limit)

    # TODO(synk): mask is treated as a prefix (length) mask as in NCRF++; padded steps
    # carry the partition through with identity backpointers, so callers must mask the
    # emitted tags at padded positions.
    lengths = jnp.sum(mask.astype(jnp.int32), axis=1).reshape(B, 1)
    bps, final_part = viterbi_forward(em_f, em_b, params["transitions"], lengths,
                                      start_idx=L - 2, n_tags=L, TU=TU, TB=TB,
                                      vmem_limit=vmem_limit)

    terminal = final_part + params["trans_to_stop"]                   # -> STOP
    last_tag = jnp.argmax(terminal, axis=1).astype(jnp.int32).reshape(B, 1)
    path = backtrace(bps, last_tag, TU=TU, vmem_limit=vmem_limit)     # (Tp, B)
    tag_seq = path.T[:, :T]                                           # (B, T)
    return tag_seq


if __name__ == "__main__":
    B, T = 2, 8
    VOCAB, EMB, HID_HALF, LABELS = 50, 32, 16, 6

    key = jax.random.PRNGKey(0)
    k_par, k_words, k_wt = jax.random.split(key, 3)

    raw_params = init_params(k_par, VOCAB, EMB, HID_HALF, LABELS)
    params = prepare_params(raw_params)

    word_inputs = jax.random.randint(k_words, (B, T), 0, VOCAB)
    batch_wordtype = jax.random.randint(k_wt, (B, T), 0, 3)
    mask = jnp.ones((B, T), jnp.float32)
    # Placeholder extras mirroring the PyTorch signature (unused in this path).
    bert_seq_tensor = jnp.zeros((B, T), jnp.int32)
    bert_mask = jnp.ones((B, T), jnp.float32)
    sourceVector = jnp.zeros((2 * HID_HALF,), jnp.float32)
    targetVector = jnp.zeros((2 * HID_HALF,), jnp.float32)

    fwd = jax.jit(functools.partial(bilstm_crf_forward, num_labels=LABELS + 2))
    tag_seq = fwd(params, word_inputs, batch_wordtype, mask,
                  bert_seq_tensor, bert_mask, sourceVector, targetVector)
    jax.block_until_ready(tag_seq)
    assert tag_seq.shape == (B, T)
    print("KERNEL_OK")
</pallas_src>

<mosaic_0001>
module attributes {stable_mosaic.version = 11 : i64} {
  func.func @_backtrace_kernel(%arg0: i32, %arg1: memref<4x2x128xi32, #tpu.memory_space<vmem>>, %arg2: memref<2x1xi32, #tpu.memory_space<vmem>>, %arg3: memref<4x2x1xi32, #tpu.memory_space<vmem>>, %arg4: memref<2x1xi32, #tpu.memory_space<vmem>>) attributes {dimension_semantics = [#tpu.dimension_semantics<arbitrary>], iteration_bounds = array<i64: 2>, scalar_prefetch = 0 : i64, scratch_operands = 1 : i64, tpu.core_type = #tpu.core_type<tc>, window_params = [{transform_indices = @transform_0, window_bounds = array<i64: 4, 2, 128>}, {pipeline_mode = #tpu.pipeline_mode<synchronous>, transform_indices = @transform_1, window_bounds = array<i64: 2, 1>}, {transform_indices = @transform_2, window_bounds = array<i64: 4, 2, 1>}]} {
    %c0_i32 = arith.constant 0 : i32
    %0 = arith.cmpi eq, %arg0, %c0_i32 : i32
    %1 = arith.extui %0 : i1 to i32
    %c0_i32_0 = arith.constant 0 : i32
    %2 = arith.cmpi ne, %1, %c0_i32_0 : i32
    scf.if %2 {
      %c0_44 = arith.constant 0 : index
      %c0_45 = arith.constant 0 : index
      %64 = vector.load %arg2[%c0_44, %c0_45] : memref<2x1xi32, #tpu.memory_space<vmem>>, vector<2x1xi32>
      %c0_46 = arith.constant 0 : index
      %c0_47 = arith.constant 0 : index
      %65 = vector.load %arg4[%c0_46, %c0_47] : memref<2x1xi32, #tpu.memory_space<vmem>>, vector<2x1xi32>
      tpu.vector_store %arg4[%c0_46, %c0_47], %64 {strides = array<i32>} : memref<2x1xi32, #tpu.memory_space<vmem>>, vector<2x1xi32>,
    } else {
    }
    %3 = tpu.iota {dimensions = array<i32: 1>} : vector<2x128xi32>
    %c0 = arith.constant 0 : index
    %c0_1 = arith.constant 0 : index
    %4 = vector.load %arg4[%c0, %c0_1] : memref<2x1xi32, #tpu.memory_space<vmem>>, vector<2x1xi32>
    %c3 = arith.constant 3 : index
    %c0_2 = arith.constant 0 : index
    %c0_3 = arith.constant 0 : index
    %5 = vector.load %arg3[%c3, %c0_2, %c0_3] : memref<4x2x1xi32, #tpu.memory_space<vmem>>, vector<1x2x1xi32>
    %6 = vector.shape_cast %5 : vector<1x2x1xi32> to vector<2x1xi32>
    %7 = vector.shape_cast %4 : vector<2x1xi32> to vector<1x2x1xi32>
    tpu.vector_store %arg3[%c3, %c0_2, %c0_3], %7 {strides = array<i32>} : memref<4x2x1xi32, #tpu.memory_space<vmem>>, vector<1x2x1xi32>,
    %8 = vector.broadcast %4 : vector<2x1xi32> to vector<2x128xi32>
    %9 = arith.cmpi eq, %3, %8 : vector<2x128xi32>
    %c3_4 = arith.constant 3 : index
    %c0_5 = arith.constant 0 : index
    %c0_6 = arith.constant 0 : index
    %10 = vector.load %arg1[%c3_4, %c0_5, %c0_6] : memref<4x2x128xi32, #tpu.memory_space<vmem>>, vector<1x2x128xi32>
    %11 = vector.shape_cast %10 : vector<1x2x128xi32> to vector<2x128xi32>
    %12 = arith.sitofp %11 : vector<2x128xi32> to vector<2x128xf32>
    %cst = arith.constant 0.000000e+00 : f32
    %13 = vector.broadcast %cst : f32 to vector<2x128xf32>
    %14 = arith.select %9, %12, %13 : vector<2x128xi1>, vector<2x128xf32>
    %cst_7 = arith.constant dense<0.000000e+00> : vector<2xf32>
    %15 = vector.multi_reduction <add>, %14, %cst_7 [1] : vector<2x128xf32> to vector<2xf32>
    %16 = vector.shape_cast %15 : vector<2xf32> to vector<2x1xf32>
    %17 = arith.fptosi %16 : vector<2x1xf32> to vector<2x1xi32>
    %c0_8 = arith.constant 0 : index
    %c0_9 = arith.constant 0 : index
    %18 = vector.load %arg4[%c0_8, %c0_9] : memref<2x1xi32, #tpu.memory_space<vmem>>, vector<2x1xi32>
    tpu.vector_store %arg4[%c0_8, %c0_9], %17 {strides = array<i32>} : memref<2x1xi32, #tpu.memory_space<vmem>>, vector<2x1xi32>,
    %c0_10 = arith.constant 0 : index
    %c0_11 = arith.constant 0 : index
    %19 = vector.load %arg4[%c0_10, %c0_11] : memref<2x1xi32, #tpu.memory_space<vmem>>, vector<2x1xi32>
    %c2 = arith.constant 2 : index
    %c0_12 = arith.constant 0 : index
    %c0_13 = arith.constant 0 : index
    %20 = vector.load %arg3[%c2, %c0_12, %c0_13] : memref<4x2x1xi32, #tpu.memory_space<vmem>>, vector<1x2x1xi32>
    %21 = vector.shape_cast %20 : vector<1x2x1xi32> to vector<2x1xi32>
    %22 = vector.shape_cast %19 : vector<2x1xi32> to vector<1x2x1xi32>
    tpu.vector_store %arg3[%c2, %c0_12, %c0_13], %22 {strides = array<i32>} : memref<4x2x1xi32, #tpu.memory_space<vmem>>, vector<1x2x1xi32>,
    %23 = vector.broadcast %19 : vector<2x1xi32> to vector<2x128xi32>
    %24 = arith.cmpi eq, %3, %23 : vector<2x128xi32>
    %c2_14 = arith.constant 2 : index
    %c0_15 = arith.constant 0 : index
    %c0_16 = arith.constant 0 : index
    %25 = vector.load %arg1[%c2_14, %c0_15, %c0_16] : memref<4x2x128xi32, #tpu.memory_space<vmem>>, vector<1x2x128xi32>
    %26 = vector.shape_cast %25 : vector<1x2x128xi32> to vector<2x128xi32>
    %27 = arith.sitofp %26 : vector<2x128xi32> to vector<2x128xf32>
    %cst_17 = arith.constant 0.000000e+00 : f32
    %28 = vector.broadcast %cst_17 : f32 to vector<2x128xf32>
    %29 = arith.select %24, %27, %28 : vector<2x128xi1>, vector<2x128xf32>
    %cst_18 = arith.constant dense<0.000000e+00> : vector<2xf32>
    %30 = vector.multi_reduction <add>, %29, %cst_18 [1] : vector<2x128xf32> to vector<2xf32>
    %31 = vector.shape_cast %30 : vector<2xf32> to vector<2x1xf32>
    %32 = arith.fptosi %31 : vector<2x1xf32> to vector<2x1xi32>
    %c0_19 = arith.constant 0 : index
    %c0_20 = arith.constant 0 : index
    %33 = vector.load %arg4[%c0_19, %c0_20] : memref<2x1xi32, #tpu.memory_space<vmem>>, vector<2x1xi32>
    tpu.vector_store %arg4[%c0_19, %c0_20], %32 {strides = array<i32>} : memref<2x1xi32, #tpu.memory_space<vmem>>, vector<2x1xi32>,
    %c0_21 = arith.constant 0 : index
    %c0_22 = arith.constant 0 : index
    %34 = vector.load %arg4[%c0_21, %c0_22] : memref<2x1xi32, #tpu.memory_space<vmem>>, vector<2x1xi32>
    %c1 = arith.constant 1 : index
    %c0_23 = arith.constant 0 : index
    %c0_24 = arith.constant 0 : index
    %35 = vector.load %arg3[%c1, %c0_23, %c0_24] : memref<4x2x1xi32, #tpu.memory_space<vmem>>, vector<1x2x1xi32>
    %36 = vector.shape_cast %35 : vector<1x2x1xi32> to vector<2x1xi32>
    %37 = vector.shape_cast %34 : vector<2x1xi32> to vector<1x2x1xi32>
    tpu.vector_store %arg3[%c1, %c0_23, %c0_24], %37 {strides = array<i32>} : memref<4x2x1xi32, #tpu.memory_space<vmem>>, vector<1x2x1xi32>,
    %38 = vector.broadcast %34 : vector<2x1xi32> to vector<2x128xi32>
    %39 = arith.cmpi eq, %3, %38 : vector<2x128xi32>
    %c1_25 = arith.constant 1 : index
    %c0_26 = arith.constant 0 : index
    %c0_27 = arith.constant 0 : index
    %40 = vector.load %arg1[%c1_25, %c0_26, %c0_27] : memref<4x2x128xi32, #tpu.memory_space<vmem>>, vector<1x2x128xi32>
    %41 = vector.shape_cast %40 : vector<1x2x128xi32> to vector<2x128xi32>
    %42 = arith.sitofp %41 : vector<2x128xi32> to vector<2x128xf32>
    %cst_28 = arith.constant 0.000000e+00 : f32
    %43 = vector.broadcast %cst_28 : f32 to vector<2x128xf32>
    %44 = arith.select %39, %42, %43 : vector<2x128xi1>, vector<2x128xf32>
    %cst_29 = arith.constant dense<0.000000e+00> : vector<2xf32>
    %45 = vector.multi_reduction <add>, %44, %cst_29 [1] : vector<2x128xf32> to vector<2xf32>
    %46 = vector.shape_cast %45 : vector<2xf32> to vector<2x1xf32>
    %47 = arith.fptosi %46 : vector<2x1xf32> to vector<2x1xi32>
    %c0_30 = arith.constant 0 : index
    %c0_31 = arith.constant 0 : index
    %48 = vector.load %arg4[%c0_30, %c0_31] : memref<2x1xi32, #tpu.memory_space<vmem>>, vector<2x1xi32>
    tpu.vector_store %arg4[%c0_30, %c0_31], %47 {strides = array<i32>} : memref<2x1xi32, #tpu.memory_space<vmem>>, vector<2x1xi32>,
    %c0_32 = arith.constant 0 : index
    %c0_33 = arith.constant 0 : index
    %49 = vector.load %arg4[%c0_32, %c0_33] : memref<2x1xi32, #tpu.memory_space<vmem>>, vector<2x1xi32>
    %c0_34 = arith.constant 0 : index
    %c0_35 = arith.constant 0 : index
    %c0_36 = arith.constant 0 : index
    %50 = vector.load %arg3[%c0_34, %c0_35, %c0_36] : memref<4x2x1xi32, #tpu.memory_space<vmem>>, vector<1x2x1xi32>
    %51 = vector.shape_cast %50 : vector<1x2x1xi32> to vector<2x1xi32>
    %52 = vector.shape_cast %49 : vector<2x1xi32> to vector<1x2x1xi32>
    tpu.vector_store %arg3[%c0_34, %c0_35, %c0_36], %52 {strides = array<i32>} : memref<4x2x1xi32, #tpu.memory_space<vmem>>, vector<1x2x1xi32>,
    %53 = vector.broadcast %49 : vector<2x1xi32> to vector<2x128xi32>
    %54 = arith.cmpi eq, %3, %53 : vector<2x128xi32>
    %c0_37 = arith.constant 0 : index
    %c0_38 = arith.constant 0 : index
    %c0_39 = arith.constant 0 : index
    %55 = vector.load %arg1[%c0_37, %c0_38, %c0_39] : memref<4x2x128xi32, #tpu.memory_space<vmem>>, vector<1x2x128xi32>
    %56 = vector.shape_cast %55 : vector<1x2x128xi32> to vector<2x128xi32>
    %57 = arith.sitofp %56 : vector<2x128xi32> to vector<2x128xf32>
    %cst_40 = arith.constant 0.000000e+00 : f32
    %58 = vector.broadcast %cst_40 : f32 to vector<2x128xf32>
    %59 = arith.select %54, %57, %58 : vector<2x128xi1>, vector<2x128xf32>
    %cst_41 = arith.constant dense<0.000000e+00> : vector<2xf32>
    %60 = vector.multi_reduction <add>, %59, %cst_41 [1] : vector<2x128xf32> to vector<2xf32>
    %61 = vector.shape_cast %60 : vector<2xf32> to vector<2x1xf32>
    %62 = arith.fptosi %61 : vector<2x1xf32> to vector<2x1xi32>
    %c0_42 = arith.constant 0 : index
    %c0_43 = arith.constant 0 : index
    %63 = vector.load %arg4[%c0_42, %c0_43] : memref<2x1xi32, #tpu.memory_space<vmem>>, vector<2x1xi32>
    tpu.vector_store %arg4[%c0_42, %c0_43], %62 {strides = array<i32>} : memref<2x1xi32, #tpu.memory_space<vmem>>, vector<2x1xi32>,
    return
  }
  func.func @transform_0(%arg0: i32) -> (i32, i32, i32) {
    %c1_i32 = arith.constant 1 : i32
    %0 = arith.subi %c1_i32, %arg0 : i32
    %c0_i32 = arith.constant 0 : i32
    %c0_i32_0 = arith.constant 0 : i32
    %c0_i32_1 = arith.constant 0 : i32
    return %0, %c0_i32, %c0_i32_0 : i32, i32, i32
  }
  func.func @transform_1(%arg0: i32) -> (i32, i32) {
    %c0_i32 = arith.constant 0 : i32
    %c0_i32_0 = arith.constant 0 : i32
    %c0_i32_1 = arith.constant 0 : i32
    return %c0_i32, %c0_i32_0 : i32, i32
  }
  func.func @transform_2(%arg0: i32) -> (i32, i32, i32) {
    %c1_i32 = arith.constant 1 : i32
    %0 = arith.subi %c1_i32, %arg0 : i32
    %c0_i32 = arith.constant 0 : i32
    %c0_i32_0 = arith.constant 0 : i32
    %c0_i32_1 = arith.constant 0 : i32
    return %0, %c0_i32, %c0_i32_0 : i32, i32, i32
  }
}

module attributes {stable_mosaic.version = 11 : i64} {
  func.func @_linear_kernel(%arg0: i32, %arg1: i32, %arg2: memref<16x32xbf16, #tpu.memory_space<vmem>>, %arg3: memref<32x1024xbf16, #tpu.memory_space<vmem>>, %arg4: memref<1x1024xf32, #tpu.memory_space<vmem>>, %arg5: memref<16x1024xbf16, #tpu.memory_space<vmem>>) attributes {dimension_semantics = [#tpu.dimension_semantics<parallel>, #tpu.dimension_semantics<parallel>], iteration_bounds = array<i64: 1, 1>, scalar_prefetch = 0 : i64, scratch_operands = 0 : i64, tpu.core_type = #tpu.core_type<tc>, window_params = [{transform_indices = @transform_0, window_bounds = array<i64: 16, 32>}, {transform_indices = @transform_1, window_bounds = array<i64: 32, 1024>}, {transform_indices = @transform_2, window_bounds = array<i64: 1, 1024>}, {transform_indices = @transform_3, window_bounds = array<i64: 16, 1024>}]} {
    %c0 = arith.constant 0 : index
    %c0_0 = arith.constant 0 : index
    %0 = vector.load %arg2[%c0, %c0_0] : memref<16x32xbf16, #tpu.memory_space<vmem>>, vector<16x32xbf16>
    %c0_1 = arith.constant 0 : index
    %c0_2 = arith.constant 0 : index
    %1 = vector.load %arg3[%c0_1, %c0_2] : memref<32x1024xbf16, #tpu.memory_space<vmem>>, vector<32x1024xbf16>
    %cst = arith.constant dense<0.000000e+00> : vector<16x1024xf32>
    %2 = tpu.matmul %0, %1, %cst {dimension_numbers = #tpu.dot_dimension_numbers<[1], [0], [0], [1], [0, 0, 1, 1], [], []>} : vector<16x32xbf16>, vector<32x1024xbf16>, vector<16x1024xf32> -> vector<16x1024xf32>
    %c0_3 = arith.constant 0 : index
    %c0_4 = arith.constant 0 : index
    %3 = vector.load %arg4[%c0_3, %c0_4] : memref<1x1024xf32, #tpu.memory_space<vmem>>, vector<1x1024xf32>
    %4 = vector.broadcast %3 : vector<1x1024xf32> to vector<16x1024xf32>
    %5 = arith.addf %2, %4 : vector<16x1024xf32>
    %6 = arith.truncf %5 : vector<16x1024xf32> to vector<16x1024xbf16>
    %c0_5 = arith.constant 0 : index
    %c0_6 = arith.constant 0 : index
    %7 = vector.load %arg5[%c0_5, %c0_6] : memref<16x1024xbf16, #tpu.memory_space<vmem>>, vector<16x1024xbf16>
    tpu.vector_store %arg5[%c0_5, %c0_6], %6 {strides = array<i32>} : memref<16x1024xbf16, #tpu.memory_space<vmem>>, vector<16x1024xbf16>,
    return
  }
  func.func @transform_0(%arg0: i32, %arg1: i32) -> (i32, i32) {
    %c0_i32 = arith.constant 0 : i32
    %c0_i32_0 = arith.constant 0 : i32
    return %arg0, %c0_i32 : i32, i32
  }
  func.func @transform_1(%arg0: i32, %arg1: i32) -> (i32, i32) {
    %c0_i32 = arith.constant 0 : i32
    %c0_i32_0 = arith.constant 0 : i32
    return %c0_i32, %arg1 : i32, i32
  }
  func.func @transform_2(%arg0: i32, %arg1: i32) -> (i32, i32) {
    %c0_i32 = arith.constant 0 : i32
    %c0_i32_0 = arith.constant 0 : i32
    return %c0_i32, %arg1 : i32, i32
  }
  func.func @transform_3(%arg0: i32, %arg1: i32) -> (i32, i32) {
    %c0_i32 = arith.constant 0 : i32
    return %arg0, %arg1 : i32, i32
  }
}

module attributes {stable_mosaic.version = 11 : i64} {
  func.func @_bilstm_emit_kernel(%arg0: i32, %arg1: i32, %arg2: memref<4x2x512xbf16, #tpu.memory_space<vmem>>, %arg3: memref<4x2x512xbf16, #tpu.memory_space<vmem>>, %arg4: memref<128x512xbf16, #tpu.memory_space<vmem>>, %arg5: memref<128x512xbf16, #tpu.memory_space<vmem>>, %arg6: memref<128x128xbf16, #tpu.memory_space<vmem>>, %arg7: memref<128x128xbf16, #tpu.memory_space<vmem>>, %arg8: memref<1x128xf32, #tpu.memory_space<vmem>>, %arg9: memref<4x2x128xf32, #tpu.memory_space<vmem>>, %arg10: memref<4x2x128xf32, #tpu.memory_space<vmem>>, %arg11: memref<2x128xf32, #tpu.memory_space<vmem>>, %arg12: memref<2x128xf32, #tpu.memory_space<vmem>>, %arg13: memref<2x128xf32, #tpu.memory_space<vmem>>, %arg14: memref<2x128xf32, #tpu.memory_space<vmem>>, %arg15: memref<8x128xf32, #tpu.memory_space<vmem>>, %arg16: memref<8x128xf32, #tpu.memory_space<vmem>>) attributes {dimension_semantics = [#tpu.dimension_semantics<parallel>, #tpu.dimension_semantics<arbitrary>], iteration_bounds = array<i64: 1, 2>, scalar_prefetch = 0 : i64, scratch_operands = 6 : i64, tpu.core_type = #tpu.core_type<tc>, window_params = [{transform_indices = @transform_0, window_bounds = array<i64: 4, 2, 512>}, {transform_indices = @transform_1, window_bounds = array<i64: 4, 2, 512>}, {pipeline_mode = #tpu.pipeline_mode<synchronous>, transform_indices = @transform_2, window_bounds = array<i64: 128, 512>}, {pipeline_mode = #tpu.pipeline_mode<synchronous>, transform_indices = @transform_3, window_bounds = array<i64: 128, 512>}, {pipeline_mode = #tpu.pipeline_mode<synchronous>, transform_indices = @transform_4, window_bounds = array<i64: 128, 128>}, {pipeline_mode = #tpu.pipeline_mode<synchronous>, transform_indices = @transform_5, window_bounds = array<i64: 128, 128>}, {pipeline_mode = #tpu.pipeline_mode<synchronous>, transform_indices = @transform_6, window_bounds = array<i64: 1, 128>}, {transform_indices = @transform_7, window_bounds = array<i64: 4, 2, 128>}, {transform_indices = @transform_8, window_bounds = array<i64: 4, 2, 128>}]} {
    %c0_i32 = arith.constant 0 : i32
    %0 = arith.cmpi eq, %arg1, %c0_i32 : i32
    %1 = arith.extui %0 : i1 to i32
    %c0_i32_0 = arith.constant 0 : i32
    %2 = arith.cmpi ne, %1, %c0_i32_0 : i32
    scf.if %2 {
      %cst_170 = arith.constant 0.000000e+00 : f32
      %336 = vector.broadcast %cst_170 : f32 to vector<2x128xf32>
      %c0_171 = arith.constant 0 : index
      %c0_172 = arith.constant 0 : index
      %337 = vector.load %arg11[%c0_171, %c0_172] : memref<2x128xf32, #tpu.memory_space<vmem>>, vector<2x128xf32>
      tpu.vector_store %arg11[%c0_171, %c0_172], %336 {strides = array<i32>} : memref<2x128xf32, #tpu.memory_space<vmem>>, vector<2x128xf32>,
      %cst_173 = arith.constant 0.000000e+00 : f32
      %338 = vector.broadcast %cst_173 : f32 to vector<2x128xf32>
      %c0_174 = arith.constant 0 : index
      %c0_175 = arith.constant 0 : index
      %339 = vector.load %arg12[%c0_174, %c0_175] : memref<2x128xf32, #tpu.memory_space<vmem>>, vector<2x128xf32>
      tpu.vector_store %arg12[%c0_174, %c0_175], %338 {strides = array<i32>} : memref<2x128xf32, #tpu.memory_space<vmem>>, vector<2x128xf32>,
      %cst_176 = arith.constant 0.000000e+00 : f32
      %340 = vector.broadcast %cst_176 : f32 to vector<2x128xf32>
      %c0_177 = arith.constant 0 : index
      %c0_178 = arith.constant 0 : index
      %341 = vector.load %arg13[%c0_177, %c0_178] : memref<2x128xf32, #tpu.memory_space<vmem>>, vector<2x128xf32>
      tpu.vector_store %arg13[%c0_177, %c0_178], %340 {strides = array<i32>} : memref<2x128xf32, #tpu.memory_space<vmem>>, vector<2x128xf32>,
      %cst_179 = arith.constant 0.000000e+00 : f32
      %342 = vector.broadcast %cst_179 : f32 to vector<2x128xf32>
      %c0_180 = arith.constant 0 : index
      %c0_181 = arith.constant 0 : index
      %343 = vector.load %arg14[%c0_180, %c0_181] : memref<2x128xf32, #tpu.memory_space<vmem>>, vector<2x128xf32>
      tpu.vector_store %arg14[%c0_180, %c0_181], %342 {strides = array<i32>} : memref<2x128xf32, #tpu.memory_space<vmem>>, vector<2x128xf32>,
    } else {
    }
    %c0 = arith.constant 0 : index
    %c0_1 = arith.constant 0 : index
    %3 = vector.load %arg4[%c0, %c0_1] : memref<128x512xbf16, #tpu.memory_space<vmem>>, vector<128x512xbf16>
    %c0_2 = arith.constant 0 : index
    %c0_3 = arith.constant 0 : index
    %4 = vector.load %arg5[%c0_2, %c0_3] : memref<128x512xbf16, #tpu.memory_space<vmem>>, vector<128x512xbf16>
    %c0_4 = arith.constant 0 : index
    %c0_5 = arith.constant 0 : index
    %c0_6 = arith.constant 0 : index
    %5 = vector.load %arg2[%c0_4, %c0_5, %c0_6] : memref<4x2x512xbf16, #tpu.memory_space<vmem>>, vector<1x2x512xbf16>
    %6 = vector.shape_cast %5 : vector<1x2x512xbf16> to vector<2x512xbf16>
    %c0_7 = arith.constant 0 : index
    %c0_8 = arith.constant 0 : index
    %7 = vector.load %arg11[%c0_7, %c0_8] : memref<2x128xf32, #tpu.memory_space<vmem>>, vector<2x128xf32>
    %c0_9 = arith.constant 0 : index
    %c0_10 = arith.constant 0 : index
    %8 = vector.load %arg12[%c0_9, %c0_10] : memref<2x128xf32, #tpu.memory_space<vmem>>, vector<2x128xf32>
    %9 = arith.extf %6 : vector<2x512xbf16> to vector<2x512xf32>
    %10 = arith.truncf %7 : vector<2x128xf32> to vector<2x128xbf16>
    %cst = arith.constant dense<0.000000e+00> : vector<2x512xf32>
    %11 = tpu.matmul %10, %3, %cst {dimension_numbers = #tpu.dot_dimension_numbers<[1], [0], [0], [1], [0, 0, 1, 1], [], []>} : vector<2x128xbf16>, vector<128x512xbf16>, vector<2x512xf32> -> vector<2x512xf32>
    %12 = arith.addf %9, %11 : vector<2x512xf32>
    %13 = vector.extract_strided_slice %12 {offsets = [0, 0], sizes = [2, 128], strides = [1, 1]} : vector<2x512xf32> to vector<2x128xf32>
    %14 = arith.negf %13 : vector<2x128xf32>
    %15 = math.exp %14 : vector<2x128xf32>
    %cst_11 = arith.constant 1.000000e+00 : f32
    %16 = vector.broadcast %cst_11 : f32 to vector<2x128xf32>
    %17 = arith.addf %16, %15 : vector<2x128xf32>
    %18 = arith.divf %16, %17 : vector<2x128xf32>
    %19 = vector.extract_strided_slice %12 {offsets = [0, 128], sizes = [2, 128], strides = [1, 1]} : vector<2x512xf32> to vector<2x128xf32>
    %20 = arith.negf %19 : vector<2x128xf32>
    %21 = math.exp %20 : vector<2x128xf32>
    %cst_12 = arith.constant 1.000000e+00 : f32
    %22 = vector.broadcast %cst_12 : f32 to vector<2x128xf32>
    %23 = arith.addf %22, %21 : vector<2x128xf32>
    %24 = arith.divf %22, %23 : vector<2x128xf32>
    %25 = vector.extract_strided_slice %12 {offsets = [0, 256], sizes = [2, 128], strides = [1, 1]} : vector<2x512xf32> to vector<2x128xf32>
    %26 = math.tanh %25 : vector<2x128xf32>
    %27 = vector.extract_strided_slice %12 {offsets = [0, 384], sizes = [2, 128], strides = [1, 1]} : vector<2x512xf32> to vector<2x128xf32>
    %28 = arith.negf %27 : vector<2x128xf32>
    %29 = math.exp %28 : vector<2x128xf32>
    %cst_13 = arith.constant 1.000000e+00 : f32
    %30 = vector.broadcast %cst_13 : f32 to vector<2x128xf32>
    %31 = arith.addf %30, %29 : vector<2x128xf32>
    %32 = arith.divf %30, %31 : vector<2x128xf32>
    %33 = arith.mulf %24, %8 : vector<2x128xf32>
    %34 = arith.mulf %18, %26 : vector<2x128xf32>
    %35 = arith.addf %33, %34 : vector<2x128xf32>
    %36 = math.tanh %35 : vector<2x128xf32>
    %37 = arith.mulf %32, %36 : vector<2x128xf32>
    %c0_14 = arith.constant 0 : index
    %c0_15 = arith.constant 0 : index
    %38 = vector.load %arg11[%c0_14, %c0_15] : memref<2x128xf32, #tpu.memory_space<vmem>>, vector<2x128xf32>
    tpu.vector_store %arg11[%c0_14, %c0_15], %37 {strides = array<i32>} : memref<2x128xf32, #tpu.memory_space<vmem>>, vector<2x128xf32>,
    %c0_16 = arith.constant 0 : index
    %c0_17 = arith.constant 0 : index
    %39 = vector.load %arg12[%c0_16, %c0_17] : memref<2x128xf32, #tpu.memory_space<vmem>>, vector<2x128xf32>
    tpu.vector_store %arg12[%c0_16, %c0_17], %35 {strides = array<i32>} : memref<2x128xf32, #tpu.memory_space<vmem>>, vector<2x128xf32>,
    %c0_18 = arith.constant 0 : index
    %c0_19 = arith.constant 0 : index
    %40 = vector.load %arg15[%c0_18, %c0_19] : memref<8x128xf32, #tpu.memory_space<vmem>>, vector<2x128xf32>
    tpu.vector_store %arg15[%c0_18, %c0_19], %37 {strides = array<i32>} : memref<8x128xf32, #tpu.memory_space<vmem>>, vector<2x128xf32>,
    %c3 = arith.constant 3 : index
    %c0_20 = arith.constant 0 : index
    %c0_21 = arith.constant 0 : index
    %41 = vector.load %arg3[%c3, %c0_20, %c0_21] : memref<4x2x512xbf16, #tpu.memory_space<vmem>>, vector<1x2x512xbf16>
    %42 = vector.shape_cast %41 : vector<1x2x512xbf16> to vector<2x512xbf16>
    %c0_22 = arith.constant 0 : index
    %c0_23 = arith.constant 0 : index
    %43 = vector.load %arg13[%c0_22, %c0_23] : memref<2x128xf32, #tpu.memory_space<vmem>>, vector<2x128xf32>
    %c0_24 = arith.constant 0 : index
    %c0_25 = arith.constant 0 : index
    %44 = vector.load %arg14[%c0_24, %c0_25] : memref<2x128xf32, #tpu.memory_space<vmem>>, vector<2x128xf32>
    %45 = arith.extf %42 : vector<2x512xbf16> to vector<2x512xf32>
    %46 = arith.truncf %43 : vector<2x128xf32> to vector<2x128xbf16>
    %cst_26 = arith.constant dense<0.000000e+00> : vector<2x512xf32>
    %47 = tpu.matmul %46, %4, %cst_26 {dimension_numbers = #tpu.dot_dimension_numbers<[1], [0], [0], [1], [0, 0, 1, 1], [], []>} : vector<2x128xbf16>, vector<128x512xbf16>, vector<2x512xf32> -> vector<2x512xf32>
    %48 = arith.addf %45, %47 : vector<2x512xf32>
    %49 = vector.extract_strided_slice %48 {offsets = [0, 0], sizes = [2, 128], strides = [1, 1]} : vector<2x512xf32> to vector<2x128xf32>
    %50 = arith.negf %49 : vector<2x128xf32>
    %51 = math.exp %50 : vector<2x128xf32>
    %cst_27 = arith.constant 1.000000e+00 : f32
    %52 = vector.broadcast %cst_27 : f32 to vector<2x128xf32>
    %53 = arith.addf %52, %51 : vector<2x128xf32>
    %54 = arith.divf %52, %53 : vector<2x128xf32>
    %55 = vector.extract_strided_slice %48 {offsets = [0, 128], sizes = [2, 128], strides = [1, 1]} : vector<2x512xf32> to vector<2x128xf32>
    %56 = arith.negf %55 : vector<2x128xf32>
    %57 = math.exp %56 : vector<2x128xf32>
    %cst_28 = arith.constant 1.000000e+00 : f32
    %58 = vector.broadcast %cst_28 : f32 to vector<2x128xf32>
    %59 = arith.addf %58, %57 : vector<2x128xf32>
    %60 = arith.divf %58, %59 : vector<2x128xf32>
    %61 = vector.extract_strided_slice %48 {offsets = [0, 256], sizes = [2, 128], strides = [1, 1]} : vector<2x512xf32> to vector<2x128xf32>
    %62 = math.tanh %61 : vector<2x128xf32>
    %63 = vector.extract_strided_slice %48 {offsets = [0, 384], sizes = [2, 128], strides = [1, 1]} : vector<2x512xf32> to vector<2x128xf32>
    %64 = arith.negf %63 : vector<2x128xf32>
    %65 = math.exp %64 : vector<2x128xf32>
    %cst_29 = arith.constant 1.000000e+00 : f32
    %66 = vector.broadcast %cst_29 : f32 to vector<2x128xf32>
    %67 = arith.addf %66, %65 : vector<2x128xf32>
    %68 = arith.divf %66, %67 : vector<2x128xf32>
    %69 = arith.mulf %60, %44 : vector<2x128xf32>
    %70 = arith.mulf %54, %62 : vector<2x128xf32>
    %71 = arith.addf %69, %70 : vector<2x128xf32>
    %72 = math.tanh %71 : vector<2x128xf32>
    %73 = arith.mulf %68, %72 : vector<2x128xf32>
    %c0_30 = arith.constant 0 : index
    %c0_31 = arith.constant 0 : index
    %74 = vector.load %arg13[%c0_30, %c0_31] : memref<2x128xf32, #tpu.memory_space<vmem>>, vector<2x128xf32>
    tpu.vector_store %arg13[%c0_30, %c0_31], %73 {strides = array<i32>} : memref<2x128xf32, #tpu.memory_space<vmem>>, vector<2x128xf32>,
    %c0_32 = arith.constant 0 : index
    %c0_33 = arith.constant 0 : index
    %75 = vector.load %arg14[%c0_32, %c0_33] : memref<2x128xf32, #tpu.memory_space<vmem>>, vector<2x128xf32>
    tpu.vector_store %arg14[%c0_32, %c0_33], %71 {strides = array<i32>} : memref<2x128xf32, #tpu.memory_space<vmem>>, vector<2x128xf32>,
    %c6 = arith.constant 6 : index
    %c0_34 = arith.constant 0 : index
    %76 = vector.load %arg16[%c6, %c0_34] : memref<8x128xf32, #tpu.memory_space<vmem>>, vector<2x128xf32>
    tpu.vector_store %arg16[%c6, %c0_34], %73 {strides = array<i32>} : memref<8x128xf32, #tpu.memory_space<vmem>>, vector<2x128xf32>,
    %c1 = arith.constant 1 : index
    %c0_35 = arith.constant 0 : index
    %c0_36 = arith.constant 0 : index
    %77 = vector.load %arg2[%c1, %c0_35, %c0_36] : memref<4x2x512xbf16, #tpu.memory_space<vmem>>, vector<1x2x512xbf16>
    %78 = vector.shape_cast %77 : vector<1x2x512xbf16> to vector<2x512xbf16>
    %c0_37 = arith.constant 0 : index
    %c0_38 = arith.constant 0 : index
    %79 = vector.load %arg11[%c0_37, %c0_38] : memref<2x128xf32, #tpu.memory_space<vmem>>, vector<2x128xf32>
    %c0_39 = arith.constant 0 : index
    %c0_40 = arith.constant 0 : index
    %80 = vector.load %arg12[%c0_39, %c0_40] : memref<2x128xf32, #tpu.memory_space<vmem>>, vector<2x128xf32>
    %81 = arith.extf %78 : vector<2x512xbf16> to vector<2x512xf32>
    %82 = arith.truncf %79 : vector<2x128xf32> to vector<2x128xbf16>
    %cst_41 = arith.constant dense<0.000000e+00> : vector<2x512xf32>
    %83 = tpu.matmul %82, %3, %cst_41 {dimension_numbers = #tpu.dot_dimension_numbers<[1], [0], [0], [1], [0, 0, 1, 1], [], []>} : vector<2x128xbf16>, vector<128x512xbf16>, vector<2x512xf32> -> vector<2x512xf32>
    %84 = arith.addf %81, %83 : vector<2x512xf32>
    %85 = vector.extract_strided_slice %84 {offsets = [0, 0], sizes = [2, 128], strides = [1, 1]} : vector<2x512xf32> to vector<2x128xf32>
    %86 = arith.negf %85 : vector<2x128xf32>
    %87 = math.exp %86 : vector<2x128xf32>
    %cst_42 = arith.constant 1.000000e+00 : f32
    %88 = vector.broadcast %cst_42 : f32 to vector<2x128xf32>
    %89 = arith.addf %88, %87 : vector<2x128xf32>
    %90 = arith.divf %88, %89 : vector<2x128xf32>
    %91 = vector.extract_strided_slice %84 {offsets = [0, 128], sizes = [2, 128], strides = [1, 1]} : vector<2x512xf32> to vector<2x128xf32>
    %92 = arith.negf %91 : vector<2x128xf32>
    %93 = math.exp %92 : vector<2x128xf32>
    %cst_43 = arith.constant 1.000000e+00 : f32
    %94 = vector.broadcast %cst_43 : f32 to vector<2x128xf32>
    %95 = arith.addf %94, %93 : vector<2x128xf32>
    %96 = arith.divf %94, %95 : vector<2x128xf32>
    %97 = vector.extract_strided_slice %84 {offsets = [0, 256], sizes = [2, 128], strides = [1, 1]} : vector<2x512xf32> to vector<2x128xf32>
    %98 = math.tanh %97 : vector<2x128xf32>
    %99 = vector.extract_strided_slice %84 {offsets = [0, 384], sizes = [2, 128], strides = [1, 1]} : vector<2x512xf32> to vector<2x128xf32>
    %100 = arith.negf %99 : vector<2x128xf32>
    %101 = math.exp %100 : vector<2x128xf32>
    %cst_44 = arith.constant 1.000000e+00 : f32
    %102 = vector.broadcast %cst_44 : f32 to vector<2x128xf32>
    %103 = arith.addf %102, %101 : vector<2x128xf32>
    %104 = arith.divf %102, %103 : vector<2x128xf32>
    %105 = arith.mulf %96, %80 : vector<2x128xf32>
    %106 = arith.mulf %90, %98 : vector<2x128xf32>
    %107 = arith.addf %105, %106 : vector<2x128xf32>
    %108 = math.tanh %107 : vector<2x128xf32>
    %109 = arith.mulf %104, %108 : vector<2x128xf32>
    %c0_45 = arith.constant 0 : index
    %c0_46 = arith.constant 0 : index
    %110 = vector.load %arg11[%c0_45, %c0_46] : memref<2x128xf32, #tpu.memory_space<vmem>>, vector<2x128xf32>
    tpu.vector_store %arg11[%c0_45, %c0_46], %109 {strides = array<i32>} : memref<2x128xf32, #tpu.memory_space<vmem>>, vector<2x128xf32>,
    %c0_47 = arith.constant 0 : index
    %c0_48 = arith.constant 0 : index
    %111 = vector.load %arg12[%c0_47, %c0_48] : memref<2x128xf32, #tpu.memory_space<vmem>>, vector<2x128xf32>
    tpu.vector_store %arg12[%c0_47, %c0_48], %107 {strides = array<i32>} : memref<2x128xf32, #tpu.memory_space<vmem>>, vector<2x128xf32>,
    %c2 = arith.constant 2 : index
    %c0_49 = arith.constant 0 : index
    %112 = vector.load %arg15[%c2, %c0_49] : memref<8x128xf32, #tpu.memory_space<vmem>>, vector<2x128xf32>
    tpu.vector_store %arg15[%c2, %c0_49], %109 {strides = array<i32>} : memref<8x128xf32, #tpu.memory_space<vmem>>, vector<2x128xf32>,
    %c2_50 = arith.constant 2 : index
    %c0_51 = arith.constant 0 : index
    %c0_52 = arith.constant 0 : index
    %113 = vector.load %arg3[%c2_50, %c0_51, %c0_52] : memref<4x2x512xbf16, #tpu.memory_space<vmem>>, vector<1x2x512xbf16>
    %114 = vector.shape_cast %113 : vector<1x2x512xbf16> to vector<2x512xbf16>
    %c0_53 = arith.constant 0 : index
    %c0_54 = arith.constant 0 : index
    %115 = vector.load %arg13[%c0_53, %c0_54] : memref<2x128xf32, #tpu.memory_space<vmem>>, vector<2x128xf32>
    %c0_55 = arith.constant 0 : index
    %c0_56 = arith.constant 0 : index
    %116 = vector.load %arg14[%c0_55, %c0_56] : memref<2x128xf32, #tpu.memory_space<vmem>>, vector<2x128xf32>
    %117 = arith.extf %114 : vector<2x512xbf16> to vector<2x512xf32>
    %118 = arith.truncf %115 : vector<2x128xf32> to vector<2x128xbf16>
    %cst_57 = arith.constant dense<0.000000e+00> : vector<2x512xf32>
    %119 = tpu.matmul %118, %4, %cst_57 {dimension_numbers = #tpu.dot_dimension_numbers<[1], [0], [0], [1], [0, 0, 1, 1], [], []>} : vector<2x128xbf16>, vector<128x512xbf16>, vector<2x512xf32> -> vector<2x512xf32>
    %120 = arith.addf %117, %119 : vector<2x512xf32>
    %121 = vector.extract_strided_slice %120 {offsets = [0, 0], sizes = [2, 128], strides = [1, 1]} : vector<2x512xf32> to vector<2x128xf32>
    %122 = arith.negf %121 : vector<2x128xf32>
    %123 = math.exp %122 : vector<2x128xf32>
    %cst_58 = arith.constant 1.000000e+00 : f32
    %124 = vector.broadcast %cst_58 : f32 to vector<2x128xf32>
    %125 = arith.addf %124, %123 : vector<2x128xf32>
    %126 = arith.divf %124, %125 : vector<2x128xf32>
    %127 = vector.extract_strided_slice %120 {offsets = [0, 128], sizes = [2, 128], strides = [1, 1]} : vector<2x512xf32> to vector<2x128xf32>
    %128 = arith.negf %127 : vector<2x128xf32>
    %129 = math.exp %128 : vector<2x128xf32>
    %cst_59 = arith.constant 1.000000e+00 : f32
    %130 = vector.broadcast %cst_59 : f32 to vector<2x128xf32>
    %131 = arith.addf %130, %129 : vector<2x128xf32>
    %132 = arith.divf %130, %131 : vector<2x128xf32>
    %133 = vector.extract_strided_slice %120 {offsets = [0, 256], sizes = [2, 128], strides = [1, 1]} : vector<2x512xf32> to vector<2x128xf32>
    %134 = math.tanh %133 : vector<2x128xf32>
    %135 = vector.extract_strided_slice %120 {offsets = [0, 384], sizes = [2, 128], strides = [1, 1]} : vector<2x512xf32> to vector<2x128xf32>
    %136 = arith.negf %135 : vector<2x128xf32>
    %137 = math.exp %136 : vector<2x128xf32>
    %cst_60 = arith.constant 1.000000e+00 : f32
    %138 = vector.broadcast %cst_60 : f32 to vector<2x128xf32>
    %139 = arith.addf %138, %137 : vector<2x128xf32>
    %140 = arith.divf %138, %139 : vector<2x128xf32>
    %141 = arith.mulf %132, %116 : vector<2x128xf32>
    %142 = arith.mulf %126, %134 : vector<2x128xf32>
    %143 = arith.addf %141, %142 : vector<2x128xf32>
    %144 = math.tanh %143 : vector<2x128xf32>
    %145 = arith.mulf %140, %144 : vector<2x128xf32>
    %c0_61 = arith.constant 0 : index
    %c0_62 = arith.constant 0 : index
    %146 = vector.load %arg13[%c0_61, %c0_62] : memref<2x128xf32, #tpu.memory_space<vmem>>, vector<2x128xf32>
    tpu.vector_store %arg13[%c0_61, %c0_62], %145 {strides = array<i32>} : memref<2x128xf32, #tpu.memory_space<vmem>>, vector<2x128xf32>,
    %c0_63 = arith.constant 0 : index
    %c0_64 = arith.constant 0 : index
    %147 = vector.load %arg14[%c0_63, %c0_64] : memref<2x128xf32, #tpu.memory_space<vmem>>, vector<2x128xf32>
    tpu.vector_store %arg14[%c0_63, %c0_64], %143 {strides = array<i32>} : memref<2x128xf32, #tpu.memory_space<vmem>>, vector<2x128xf32>,
    %c4 = arith.constant 4 : index
    %c0_65 = arith.constant 0 : index
    %148 = vector.load %arg16[%c4, %c0_65] : memref<8x128xf32, #tpu.memory_space<vmem>>, vector<2x128xf32>
    tpu.vector_store %arg16[%c4, %c0_65], %145 {strides = array<i32>} : memref<8x128xf32, #tpu.memory_space<vmem>>, vector<2x128xf32>,
    %c2_66 = arith.constant 2 : index
    %c0_67 = arith.constant 0 : index
    %c0_68 = arith.constant 0 : index
    %149 = vector.load %arg2[%c2_66, %c0_67, %c0_68] : memref<4x2x512xbf16, #tpu.memory_space<vmem>>, vector<1x2x512xbf16>
    %150 = vector.shape_cast %149 : vector<1x2x512xbf16> to vector<2x512xbf16>
    %c0_69 = arith.constant 0 : index
    %c0_70 = arith.constant 0 : index
    %151 = vector.load %arg11[%c0_69, %c0_70] : memref<2x128xf32, #tpu.memory_space<vmem>>, vector<2x128xf32>
    %c0_71 = arith.constant 0 : index
    %c0_72 = arith.constant 0 : index
    %152 = vector.load %arg12[%c0_71, %c0_72] : memref<2x128xf32, #tpu.memory_space<vmem>>, vector<2x128xf32>
    %153 = arith.extf %150 : vector<2x512xbf16> to vector<2x512xf32>
    %154 = arith.truncf %151 : vector<2x128xf32> to vector<2x128xbf16>
    %cst_73 = arith.constant dense<0.000000e+00> : vector<2x512xf32>
    %155 = tpu.matmul %154, %3, %cst_73 {dimension_numbers = #tpu.dot_dimension_numbers<[1], [0], [0], [1], [0, 0, 1, 1], [], []>} : vector<2x128xbf16>, vector<128x512xbf16>, vector<2x512xf32> -> vector<2x512xf32>
    %156 = arith.addf %153, %155 : vector<2x512xf32>
    %157 = vector.extract_strided_slice %156 {offsets = [0, 0], sizes = [2, 128], strides = [1, 1]} : vector<2x512xf32> to vector<2x128xf32>
    %158 = arith.negf %157 : vector<2x128xf32>
    %159 = math.exp %158 : vector<2x128xf32>
    %cst_74 = arith.constant 1.000000e+00 : f32
    %160 = vector.broadcast %cst_74 : f32 to vector<2x128xf32>
    %161 = arith.addf %160, %159 : vector<2x128xf32>
    %162 = arith.divf %160, %161 : vector<2x128xf32>
    %163 = vector.extract_strided_slice %156 {offsets = [0, 128], sizes = [2, 128], strides = [1, 1]} : vector<2x512xf32> to vector<2x128xf32>
    %164 = arith.negf %163 : vector<2x128xf32>
    %165 = math.exp %164 : vector<2x128xf32>
    %cst_75 = arith.constant 1.000000e+00 : f32
    %166 = vector.broadcast %cst_75 : f32 to vector<2x128xf32>
    %167 = arith.addf %166, %165 : vector<2x128xf32>
    %168 = arith.divf %166, %167 : vector<2x128xf32>
    %169 = vector.extract_strided_slice %156 {offsets = [0, 256], sizes = [2, 128], strides = [1, 1]} : vector<2x512xf32> to vector<2x128xf32>
    %170 = math.tanh %169 : vector<2x128xf32>
    %171 = vector.extract_strided_slice %156 {offsets = [0, 384], sizes = [2, 128], strides = [1, 1]} : vector<2x512xf32> to vector<2x128xf32>
    %172 = arith.negf %171 : vector<2x128xf32>
    %173 = math.exp %172 : vector<2x128xf32>
    %cst_76 = arith.constant 1.000000e+00 : f32
    %174 = vector.broadcast %cst_76 : f32 to vector<2x128xf32>
    %175 = arith.addf %174, %173 : vector<2x128xf32>
    %176 = arith.divf %174, %175 : vector<2x128xf32>
    %177 = arith.mulf %168, %152 : vector<2x128xf32>
    %178 = arith.mulf %162, %170 : vector<2x128xf32>
    %179 = arith.addf %177, %178 : vector<2x128xf32>
    %180 = math.tanh %179 : vector<2x128xf32>
    %181 = arith.mulf %176, %180 : vector<2x128xf32>
    %c0_77 = arith.constant 0 : index
    %c0_78 = arith.constant 0 : index
    %182 = vector.load %arg11[%c0_77, %c0_78] : memref<2x128xf32, #tpu.memory_space<vmem>>, vector<2x128xf32>
    tpu.vector_store %arg11[%c0_77, %c0_78], %181 {strides = array<i32>} : memref<2x128xf32, #tpu.memory_space<vmem>>, vector<2x128xf32>,
    %c0_79 = arith.constant 0 : index
    %c0_80 = arith.constant 0 : index
    %183 = vector.load %arg12[%c0_79, %c0_80] : memref<2x128xf32, #tpu.memory_space<vmem>>, vector<2x128xf32>
    tpu.vector_store %arg12[%c0_79, %c0_80], %179 {strides = array<i32>} : memref<2x128xf32, #tpu.memory_space<vmem>>, vector<2x128xf32>,
    %c4_81 = arith.constant 4 : index
    %c0_82 = arith.constant 0 : index
    %184 = vector.load %arg15[%c4_81, %c0_82] : memref<8x128xf32, #tpu.memory_space<vmem>>, vector<2x128xf32>
    tpu.vector_store %arg15[%c4_81, %c0_82], %181 {strides = array<i32>} : memref<8x128xf32, #tpu.memory_space<vmem>>, vector<2x128xf32>,
    %c1_83 = arith.constant 1 : index
    %c0_84 = arith.constant 0 : index
    %c0_85 = arith.constant 0 : index
    %185 = vector.load %arg3[%c1_83, %c0_84, %c0_85] : memref<4x2x512xbf16, #tpu.memory_space<vmem>>, vector<1x2x512xbf16>
    %186 = vector.shape_cast %185 : vector<1x2x512xbf16> to vector<2x512xbf16>
    %c0_86 = arith.constant 0 : index
    %c0_87 = arith.constant 0 : index
    %187 = vector.load %arg13[%c0_86, %c0_87] : memref<2x128xf32, #tpu.memory_space<vmem>>, vector<2x128xf32>
    %c0_88 = arith.constant 0 : index
    %c0_89 = arith.constant 0 : index
    %188 = vector.load %arg14[%c0_88, %c0_89] : memref<2x128xf32, #tpu.memory_space<vmem>>, vector<2x128xf32>
    %189 = arith.extf %186 : vector<2x512xbf16> to vector<2x512xf32>
    %190 = arith.truncf %187 : vector<2x128xf32> to vector<2x128xbf16>
    %cst_90 = arith.constant dense<0.000000e+00> : vector<2x512xf32>
    %191 = tpu.matmul %190, %4, %cst_90 {dimension_numbers = #tpu.dot_dimension_numbers<[1], [0], [0], [1], [0, 0, 1, 1], [], []>} : vector<2x128xbf16>, vector<128x512xbf16>, vector<2x512xf32> -> vector<2x512xf32>
    %192 = arith.addf %189, %191 : vector<2x512xf32>
    %193 = vector.extract_strided_slice %192 {offsets = [0, 0], sizes = [2, 128], strides = [1, 1]} : vector<2x512xf32> to vector<2x128xf32>
    %194 = arith.negf %193 : vector<2x128xf32>
    %195 = math.exp %194 : vector<2x128xf32>
    %cst_91 = arith.constant 1.000000e+00 : f32
    %196 = vector.broadcast %cst_91 : f32 to vector<2x128xf32>
    %197 = arith.addf %196, %195 : vector<2x128xf32>
    %198 = arith.divf %196, %197 : vector<2x128xf32>
    %199 = vector.extract_strided_slice %192 {offsets = [0, 128], sizes = [2, 128], strides = [1, 1]} : vector<2x512xf32> to vector<2x128xf32>
    %200 = arith.negf %199 : vector<2x128xf32>
    %201 = math.exp %200 : vector<2x128xf32>
    %cst_92 = arith.constant 1.000000e+00 : f32
    %202 = vector.broadcast %cst_92 : f32 to vector<2x128xf32>
    %203 = arith.addf %202, %201 : vector<2x128xf32>
    %204 = arith.divf %202, %203 : vector<2x128xf32>
    %205 = vector.extract_strided_slice %192 {offsets = [0, 256], sizes = [2, 128], strides = [1, 1]} : vector<2x512xf32> to vector<2x128xf32>
    %206 = math.tanh %205 : vector<2x128xf32>
    %207 = vector.extract_strided_slice %192 {offsets = [0, 384], sizes = [2, 128], strides = [1, 1]} : vector<2x512xf32> to vector<2x128xf32>
    %208 = arith.negf %207 : vector<2x128xf32>
    %209 = math.exp %208 : vector<2x128xf32>
    %cst_93 = arith.constant 1.000000e+00 : f32
    %210 = vector.broadcast %cst_93 : f32 to vector<2x128xf32>
    %211 = arith.addf %210, %209 : vector<2x128xf32>
    %212 = arith.divf %210, %211 : vector<2x128xf32>
    %213 = arith.mulf %204, %188 : vector<2x128xf32>
    %214 = arith.mulf %198, %206 : vector<2x128xf32>
    %215 = arith.addf %213, %214 : vector<2x128xf32>
    %216 = math.tanh %215 : vector<2x128xf32>
    %217 = arith.mulf %212, %216 : vector<2x128xf32>
    %c0_94 = arith.constant 0 : index
    %c0_95 = arith.constant 0 : index
    %218 = vector.load %arg13[%c0_94, %c0_95] : memref<2x128xf32, #tpu.memory_space<vmem>>, vector<2x128xf32>
    tpu.vector_store %arg13[%c0_94, %c0_95], %217 {strides = array<i32>} : memref<2x128xf32, #tpu.memory_space<vmem>>, vector<2x128xf32>,
    %c0_96 = arith.constant 0 : index
    %c0_97 = arith.constant 0 : index
    %219 = vector.load %arg14[%c0_96, %c0_97] : memref<2x128xf32, #tpu.memory_space<vmem>>, vector<2x128xf32>
    tpu.vector_store %arg14[%c0_96, %c0_97], %215 {strides = array<i32>} : memref<2x128xf32, #tpu.memory_space<vmem>>, vector<2x128xf32>,
    %c2_98 = arith.constant 2 : index
    %c0_99 = arith.constant 0 : index
    %220 = vector.load %arg16[%c2_98, %c0_99] : memref<8x128xf32, #tpu.memory_space<vmem>>, vector<2x128xf32>
    tpu.vector_store %arg16[%c2_98, %c0_99], %217 {strides = array<i32>} : memref<8x128xf32, #tpu.memory_space<vmem>>, vector<2x128xf32>,
    %c3_100 = arith.constant 3 : index
    %c0_101 = arith.constant 0 : index
    %c0_102 = arith.constant 0 : index
    %221 = vector.load %arg2[%c3_100, %c0_101, %c0_102] : memref<4x2x512xbf16, #tpu.memory_space<vmem>>, vector<1x2x512xbf16>
    %222 = vector.shape_cast %221 : vector<1x2x512xbf16> to vector<2x512xbf16>
    %c0_103 = arith.constant 0 : index
    %c0_104 = arith.constant 0 : index
    %223 = vector.load %arg11[%c0_103, %c0_104] : memref<2x128xf32, #tpu.memory_space<vmem>>, vector<2x128xf32>
    %c0_105 = arith.constant 0 : index
    %c0_106 = arith.constant 0 : index
    %224 = vector.load %arg12[%c0_105, %c0_106] : memref<2x128xf32, #tpu.memory_space<vmem>>, vector<2x128xf32>
    %225 = arith.extf %222 : vector<2x512xbf16> to vector<2x512xf32>
    %226 = arith.truncf %223 : vector<2x128xf32> to vector<2x128xbf16>
    %cst_107 = arith.constant dense<0.000000e+00> : vector<2x512xf32>
    %227 = tpu.matmul %226, %3, %cst_107 {dimension_numbers = #tpu.dot_dimension_numbers<[1], [0], [0], [1], [0, 0, 1, 1], [], []>} : vector<2x128xbf16>, vector<128x512xbf16>, vector<2x512xf32> -> vector<2x512xf32>
    %228 = arith.addf %225, %227 : vector<2x512xf32>
    %229 = vector.extract_strided_slice %228 {offsets = [0, 0], sizes = [2, 128], strides = [1, 1]} : vector<2x512xf32> to vector<2x128xf32>
    %230 = arith.negf %229 : vector<2x128xf32>
    %231 = math.exp %230 : vector<2x128xf32>
    %cst_108 = arith.constant 1.000000e+00 : f32
    %232 = vector.broadcast %cst_108 : f32 to vector<2x128xf32>
    %233 = arith.addf %232, %231 : vector<2x128xf32>
    %234 = arith.divf %232, %233 : vector<2x128xf32>
    %235 = vector.extract_strided_slice %228 {offsets = [0, 128], sizes = [2, 128], strides = [1, 1]} : vector<2x512xf32> to vector<2x128xf32>
    %236 = arith.negf %235 : vector<2x128xf32>
    %237 = math.exp %236 : vector<2x128xf32>
    %cst_109 = arith.constant 1.000000e+00 : f32
    %238 = vector.broadcast %cst_109 : f32 to vector<2x128xf32>
    %239 = arith.addf %238, %237 : vector<2x128xf32>
    %240 = arith.divf %238, %239 : vector<2x128xf32>
    %241 = vector.extract_strided_slice %228 {offsets = [0, 256], sizes = [2, 128], strides = [1, 1]} : vector<2x512xf32> to vector<2x128xf32>
    %242 = math.tanh %241 : vector<2x128xf32>
    %243 = vector.extract_strided_slice %228 {offsets = [0, 384], sizes = [2, 128], strides = [1, 1]} : vector<2x512xf32> to vector<2x128xf32>
    %244 = arith.negf %243 : vector<2x128xf32>
    %245 = math.exp %244 : vector<2x128xf32>
    %cst_110 = arith.constant 1.000000e+00 : f32
    %246 = vector.broadcast %cst_110 : f32 to vector<2x128xf32>
    %247 = arith.addf %246, %245 : vector<2x128xf32>
    %248 = arith.divf %246, %247 : vector<2x128xf32>
    %249 = arith.mulf %240, %224 : vector<2x128xf32>
    %250 = arith.mulf %234, %242 : vector<2x128xf32>
    %251 = arith.addf %249, %250 : vector<2x128xf32>
    %252 = math.tanh %251 : vector<2x128xf32>
    %253 = arith.mulf %248, %252 : vector<2x128xf32>
    %c0_111 = arith.constant 0 : index
    %c0_112 = arith.constant 0 : index
    %254 = vector.load %arg11[%c0_111, %c0_112] : memref<2x128xf32, #tpu.memory_space<vmem>>, vector<2x128xf32>
    tpu.vector_store %arg11[%c0_111, %c0_112], %253 {strides = array<i32>} : memref<2x128xf32, #tpu.memory_space<vmem>>, vector<2x128xf32>,
    %c0_113 = arith.constant 0 : index
    %c0_114 = arith.constant 0 : index
    %255 = vector.load %arg12[%c0_113, %c0_114] : memref<2x128xf32, #tpu.memory_space<vmem>>, vector<2x128xf32>
    tpu.vector_store %arg12[%c0_113, %c0_114], %251 {strides = array<i32>} : memref<2x128xf32, #tpu.memory_space<vmem>>, vector<2x128xf32>,
    %c6_115 = arith.constant 6 : index
    %c0_116 = arith.constant 0 : index
    %256 = vector.load %arg15[%c6_115, %c0_116] : memref<8x128xf32, #tpu.memory_space<vmem>>, vector<2x128xf32>
    tpu.vector_store %arg15[%c6_115, %c0_116], %253 {strides = array<i32>} : memref<8x128xf32, #tpu.memory_space<vmem>>, vector<2x128xf32>,
    %c0_117 = arith.constant 0 : index
    %c0_118 = arith.constant 0 : index
    %c0_119 = arith.constant 0 : index
    %257 = vector.load %arg3[%c0_117, %c0_118, %c0_119] : memref<4x2x512xbf16, #tpu.memory_space<vmem>>, vector<1x2x512xbf16>
    %258 = vector.shape_cast %257 : vector<1x2x512xbf16> to vector<2x512xbf16>
    %c0_120 = arith.constant 0 : index
    %c0_121 = arith.constant 0 : index
    %259 = vector.load %arg13[%c0_120, %c0_121] : memref<2x128xf32, #tpu.memory_space<vmem>>, vector<2x128xf32>
    %c0_122 = arith.constant 0 : index
    %c0_123 = arith.constant 0 : index
    %260 = vector.load %arg14[%c0_122, %c0_123] : memref<2x128xf32, #tpu.memory_space<vmem>>, vector<2x128xf32>
    %261 = arith.extf %258 : vector<2x512xbf16> to vector<2x512xf32>
    %262 = arith.truncf %259 : vector<2x128xf32> to vector<2x128xbf16>
    %cst_124 = arith.constant dense<0.000000e+00> : vector<2x512xf32>
    %263 = tpu.matmul %262, %4, %cst_124 {dimension_numbers = #tpu.dot_dimension_numbers<[1], [0], [0], [1], [0, 0, 1, 1], [], []>} : vector<2x128xbf16>, vector<128x512xbf16>, vector<2x512xf32> -> vector<2x512xf32>
    %264 = arith.addf %261, %263 : vector<2x512xf32>
    %265 = vector.extract_strided_slice %264 {offsets = [0, 0], sizes = [2, 128], strides = [1, 1]} : vector<2x512xf32> to vector<2x128xf32>
    %266 = arith.negf %265 : vector<2x128xf32>
    %267 = math.exp %266 : vector<2x128xf32>
    %cst_125 = arith.constant 1.000000e+00 : f32
    %268 = vector.broadcast %cst_125 : f32 to vector<2x128xf32>
    %269 = arith.addf %268, %267 : vector<2x128xf32>
    %270 = arith.divf %268, %269 : vector<2x128xf32>
    %271 = vector.extract_strided_slice %264 {offsets = [0, 128], sizes = [2, 128], strides = [1, 1]} : vector<2x512xf32> to vector<2x128xf32>
    %272 = arith.negf %271 : vector<2x128xf32>
    %273 = math.exp %272 : vector<2x128xf32>
    %cst_126 = arith.constant 1.000000e+00 : f32
    %274 = vector.broadcast %cst_126 : f32 to vector<2x128xf32>
    %275 = arith.addf %274, %273 : vector<2x128xf32>
    %276 = arith.divf %274, %275 : vector<2x128xf32>
    %277 = vector.extract_strided_slice %264 {offsets = [0, 256], sizes = [2, 128], strides = [1, 1]} : vector<2x512xf32> to vector<2x128xf32>
    %278 = math.tanh %277 : vector<2x128xf32>
    %279 = vector.extract_strided_slice %264 {offsets = [0, 384], sizes = [2, 128], strides = [1, 1]} : vector<2x512xf32> to vector<2x128xf32>
    %280 = arith.negf %279 : vector<2x128xf32>
    %281 = math.exp %280 : vector<2x128xf32>
    %cst_127 = arith.constant 1.000000e+00 : f32
    %282 = vector.broadcast %cst_127 : f32 to vector<2x128xf32>
    %283 = arith.addf %282, %281 : vector<2x128xf32>
    %284 = arith.divf %282, %283 : vector<2x128xf32>
    %285 = arith.mulf %276, %260 : vector<2x128xf32>
    %286 = arith.mulf %270, %278 : vector<2x128xf32>
    %287 = arith.addf %285, %286 : vector<2x128xf32>
    %288 = math.tanh %287 : vector<2x128xf32>
    %289 = arith.mulf %284, %288 : vector<2x128xf32>
    %c0_128 = arith.constant 0 : index
    %c0_129 = arith.constant 0 : index
    %290 = vector.load %arg13[%c0_128, %c0_129] : memref<2x128xf32, #tpu.memory_space<vmem>>, vector<2x128xf32>
    tpu.vector_store %arg13[%c0_128, %c0_129], %289 {strides = array<i32>} : memref<2x128xf32, #tpu.memory_space<vmem>>, vector<2x128xf32>,
    %c0_130 = arith.constant 0 : index
    %c0_131 = arith.constant 0 : index
    %291 = vector.load %arg14[%c0_130, %c0_131] : memref<2x128xf32, #tpu.memory_space<vmem>>, vector<2x128xf32>
    tpu.vector_store %arg14[%c0_130, %c0_131], %287 {strides = array<i32>} : memref<2x128xf32, #tpu.memory_space<vmem>>, vector<2x128xf32>,
    %c0_132 = arith.constant 0 : index
    %c0_133 = arith.constant 0 : index
    %292 = vector.load %arg16[%c0_132, %c0_133] : memref<8x128xf32, #tpu.memory_space<vmem>>, vector<2x128xf32>
    tpu.vector_store %arg16[%c0_132, %c0_133], %289 {strides = array<i32>} : memref<8x128xf32, #tpu.memory_space<vmem>>, vector<2x128xf32>,
    %c0_134 = arith.constant 0 : index
    %c0_135 = arith.constant 0 : index
    %293 = vector.load %arg15[%c0_134, %c0_135] : memref<8x128xf32, #tpu.memory_space<vmem>>, vector<8x128xf32>
    %294 = arith.truncf %293 : vector<8x128xf32> to vector<8x128xbf16>
    %c0_136 = arith.constant 0 : index
    %c0_137 = arith.constant 0 : index
    %295 = vector.load %arg6[%c0_136, %c0_137] : memref<128x128xbf16, #tpu.memory_space<vmem>>, vector<128x128xbf16>
    %cst_138 = arith.constant dense<0.000000e+00> : vector<8x128xf32>
    %296 = tpu.matmul %294, %295, %cst_138 {dimension_numbers = #tpu.dot_dimension_numbers<[1], [0], [0], [1], [0, 0, 1, 1], [], []>} : vector<8x128xbf16>, vector<128x128xbf16>, vector<8x128xf32> -> vector<8x128xf32>
    %c0_139 = arith.constant 0 : index
    %c0_140 = arith.constant 0 : index
    %297 = vector.load %arg8[%c0_139, %c0_140] : memref<1x128xf32, #tpu.memory_space<vmem>>, vector<1x128xf32>
    %298 = vector.broadcast %297 : vector<1x128xf32> to vector<8x128xf32>
    %299 = arith.addf %296, %298 : vector<8x128xf32>
    %c0_141 = arith.constant 0 : index
    %c0_142 = arith.constant 0 : index
    %300 = vector.load %arg16[%c0_141, %c0_142] : memref<8x128xf32, #tpu.memory_space<vmem>>, vector<8x128xf32>
    %301 = arith.truncf %300 : vector<8x128xf32> to vector<8x128xbf16>
    %c0_143 = arith.constant 0 : index
    %c0_144 = arith.constant 0 : index
    %302 = vector.load %arg7[%c0_143, %c0_144] : memref<128x128xbf16, #tpu.memory_space<vmem>>, vector<128x128xbf16>
    %cst_145 = arith.constant dense<0.000000e+00> : vector<8x128xf32>
    %303 = tpu.matmul %301, %302, %cst_145 {dimension_numbers = #tpu.dot_dimension_numbers<[1], [0], [0], [1], [0, 0, 1, 1], [], []>} : vector<8x128xbf16>, vector<128x128xbf16>, vector<8x128xf32> -> vector<8x128xf32>
    %304 = vector.extract_strided_slice %299 {offsets = [0, 0], sizes = [2, 128], strides = [1, 1]} : vector<8x128xf32> to vector<2x128xf32>
    %c0_146 = arith.constant 0 : index
    %c0_147 = arith.constant 0 : index
    %c0_148 = arith.constant 0 : index
    %305 = vector.load %arg9[%c0_146, %c0_147, %c0_148] : memref<4x2x128xf32, #tpu.memory_space<vmem>>, vector<1x2x128xf32>
    %306 = vector.shape_cast %305 : vector<1x2x128xf32> to vector<2x128xf32>
    %307 = vector.shape_cast %304 : vector<2x128xf32> to vector<1x2x128xf32>
    tpu.vector_store %arg9[%c0_146, %c0_147, %c0_148], %307 {strides = array<i32>} : memref<4x2x128xf32, #tpu.memory_space<vmem>>, vector<1x2x128xf32>,
    %308 = vector.extract_strided_slice %303 {offsets = [0, 0], sizes = [2, 128], strides = [1, 1]} : vector<8x128xf32> to vector<2x128xf32>
    %c0_149 = arith.constant 0 : index
    %c0_150 = arith.constant 0 : index
    %c0_151 = arith.constant 0 : index
    %309 = vector.load %arg10[%c0_149, %c0_150, %c0_151] : memref<4x2x128xf32, #tpu.memory_space<vmem>>, vector<1x2x128xf32>
    %310 = vector.shape_cast %309 : vector<1x2x128xf32> to vector<2x128xf32>
    %311 = vector.shape_cast %308 : vector<2x128xf32> to vector<1x2x128xf32>
    tpu.vector_store %arg10[%c0_149, %c0_150, %c0_151], %311 {strides = array<i32>} : memref<4x2x128xf32, #tpu.memory_space<vmem>>, vector<1x2x128xf32>,
    %312 = vector.extract_strided_slice %299 {offsets = [2, 0], sizes = [2, 128], strides = [1, 1]} : vector<8x128xf32> to vector<2x128xf32>
    %c1_152 = arith.constant 1 : index
    %c0_153 = arith.constant 0 : index
    %c0_154 = arith.constant 0 : index
    %313 = vector.load %arg9[%c1_152, %c0_153, %c0_154] : memref<4x2x128xf32, #tpu.memory_space<vmem>>, vector<1x2x128xf32>
    %314 = vector.shape_cast %313 : vector<1x2x128xf32> to vector<2x128xf32>
    %315 = vector.shape_cast %312 : vector<2x128xf32> to vector<1x2x128xf32>
    tpu.vector_store %arg9[%c1_152, %c0_153, %c0_154], %315 {strides = array<i32>} : memref<4x2x128xf32, #tpu.memory_space<vmem>>, vector<1x2x128xf32>,
    %316 = vector.extract_strided_slice %303 {offsets = [2, 0], sizes = [2, 128], strides = [1, 1]} : vector<8x128xf32> to vector<2x128xf32>
    %c1_155 = arith.constant 1 : index
    %c0_156 = arith.constant 0 : index
    %c0_157 = arith.constant 0 : index
    %317 = vector.load %arg10[%c1_155, %c0_156, %c0_157] : memref<4x2x128xf32, #tpu.memory_space<vmem>>, vector<1x2x128xf32>
    %318 = vector.shape_cast %317 : vector<1x2x128xf32> to vector<2x128xf32>
    %319 = vector.shape_cast %316 : vector<2x128xf32> to vector<1x2x128xf32>
    tpu.vector_store %arg10[%c1_155, %c0_156, %c0_157], %319 {strides = array<i32>} : memref<4x2x128xf32, #tpu.memory_space<vmem>>, vector<1x2x128xf32>,
    %320 = vector.extract_strided_slice %299 {offsets = [4, 0], sizes = [2, 128], strides = [1, 1]} : vector<8x128xf32> to vector<2x128xf32>
    %c2_158 = arith.constant 2 : index
    %c0_159 = arith.constant 0 : index
    %c0_160 = arith.constant 0 : index
    %321 = vector.load %arg9[%c2_158, %c0_159, %c0_160] : memref<4x2x128xf32, #tpu.memory_space<vmem>>, vector<1x2x128xf32>
    %322 = vector.shape_cast %321 : vector<1x2x128xf32> to vector<2x128xf32>
    %323 = vector.shape_cast %320 : vector<2x128xf32> to vector<1x2x128xf32>
    tpu.vector_store %arg9[%c2_158, %c0_159, %c0_160], %323 {strides = array<i32>} : memref<4x2x128xf32, #tpu.memory_space<vmem>>, vector<1x2x128xf32>,
    %324 = vector.extract_strided_slice %303 {offsets = [4, 0], sizes = [2, 128], strides = [1, 1]} : vector<8x128xf32> to vector<2x128xf32>
    %c2_161 = arith.constant 2 : index
    %c0_162 = arith.constant 0 : index
    %c0_163 = arith.constant 0 : index
    %325 = vector.load %arg10[%c2_161, %c0_162, %c0_163] : memref<4x2x128xf32, #tpu.memory_space<vmem>>, vector<1x2x128xf32>
    %326 = vector.shape_cast %325 : vector<1x2x128xf32> to vector<2x128xf32>
    %327 = vector.shape_cast %324 : vector<2x128xf32> to vector<1x2x128xf32>
    tpu.vector_store %arg10[%c2_161, %c0_162, %c0_163], %327 {strides = array<i32>} : memref<4x2x128xf32, #tpu.memory_space<vmem>>, vector<1x2x128xf32>,
    %328 = vector.extract_strided_slice %299 {offsets = [6, 0], sizes = [2, 128], strides = [1, 1]} : vector<8x128xf32> to vector<2x128xf32>
    %c3_164 = arith.constant 3 : index
    %c0_165 = arith.constant 0 : index
    %c0_166 = arith.constant 0 : index
    %329 = vector.load %arg9[%c3_164, %c0_165, %c0_166] : memref<4x2x128xf32, #tpu.memory_space<vmem>>, vector<1x2x128xf32>
    %330 = vector.shape_cast %329 : vector<1x2x128xf32> to vector<2x128xf32>
    %331 = vector.shape_cast %328 : vector<2x128xf32> to vector<1x2x128xf32>
    tpu.vector_store %arg9[%c3_164, %c0_165, %c0_166], %331 {strides = array<i32>} : memref<4x2x128xf32, #tpu.memory_space<vmem>>, vector<1x2x128xf32>,
    %332 = vector.extract_strided_slice %303 {offsets = [6, 0], sizes = [2, 128], strides = [1, 1]} : vector<8x128xf32> to vector<2x128xf32>
    %c3_167 = arith.constant 3 : index
    %c0_168 = arith.constant 0 : index
    %c0_169 = arith.constant 0 : index
    %333 = vector.load %arg10[%c3_167, %c0_168, %c0_169] : memref<4x2x128xf32, #tpu.memory_space<vmem>>, vector<1x2x128xf32>
    %334 = vector.shape_cast %333 : vector<1x2x128xf32> to vector<2x128xf32>
    %335 = vector.shape_cast %332 : vector<2x128xf32> to vector<1x2x128xf32>
    tpu.vector_store %arg10[%c3_167, %c0_168, %c0_169], %335 {strides = array<i32>} : memref<4x2x128xf32, #tpu.memory_space<vmem>>, vector<1x2x128xf32>,
    return
  }
  func.func @transform_0(%arg0: i32, %arg1: i32) -> (i32, i32, i32) {
    %c0_i32 = arith.constant 0 : i32
    %c0_i32_0 = arith.constant 0 : i32
    return %arg1, %arg0, %c0_i32 : i32, i32, i32
  }
  func.func @transform_1(%arg0: i32, %arg1: i32) -> (i32, i32, i32) {
    %c1_i32 = arith.constant 1 : i32
    %0 = arith.subi %c1_i32, %arg1 : i32
    %c1_i32_0 = arith.constant 1 : i32
    %c0_i32 = arith.constant 0 : i32
    return %0, %arg0, %c1_i32_0 : i32, i32, i32
  }
  func.func @transform_2(%arg0: i32, %arg1: i32) -> (i32, i32) {
    %c0_i32 = arith.constant 0 : i32
    %c0_i32_0 = arith.constant 0 : i32
    %c0_i32_1 = arith.constant 0 : i32
    return %c0_i32, %c0_i32_0 : i32, i32
  }
  func.func @transform_3(%arg0: i32, %arg1: i32) -> (i32, i32) {
    %c0_i32 = arith.constant 0 : i32
    %c0_i32_0 = arith.constant 0 : i32
    %c0_i32_1 = arith.constant 0 : i32
    return %c0_i32, %c0_i32_0 : i32, i32
  }
  func.func @transform_4(%arg0: i32, %arg1: i32) -> (i32, i32) {
    %c0_i32 = arith.constant 0 : i32
    %c0_i32_0 = arith.constant 0 : i32
    %c0_i32_1 = arith.constant 0 : i32
    return %c0_i32, %c0_i32_0 : i32, i32
  }
  func.func @transform_5(%arg0: i32, %arg1: i32) -> (i32, i32) {
    %c0_i32 = arith.constant 0 : i32
    %c0_i32_0 = arith.constant 0 : i32
    %c0_i32_1 = arith.constant 0 : i32
    return %c0_i32, %c0_i32_0 : i32, i32
  }
  func.func @transform_6(%arg0: i32, %arg1: i32) -> (i32, i32) {
    %c0_i32 = arith.constant 0 : i32
    %c0_i32_0 = arith.constant 0 : i32
    %c0_i32_1 = arith.constant 0 : i32
    return %c0_i32, %c0_i32_0 : i32, i32
  }
  func.func @transform_7(%arg0: i32, %arg1: i32) -> (i32, i32, i32) {
    %c0_i32 = arith.constant 0 : i32
    %c0_i32_0 = arith.constant 0 : i32
    return %arg1, %arg0, %c0_i32 : i32, i32, i32
  }
  func.func @transform_8(%arg0: i32, %arg1: i32) -> (i32, i32, i32) {
    %c1_i32 = arith.constant 1 : i32
    %0 = arith.subi %c1_i32, %arg1 : i32
    %c0_i32 = arith.constant 0 : i32
    %c0_i32_0 = arith.constant 0 : i32
    return %0, %arg0, %c0_i32 : i32, i32, i32
  }
}

module attributes {stable_mosaic.version = 11 : i64} {
  func.func @_viterbi_kernel(%arg0: i32, %arg1: i32, %arg2: memref<4x2x128xf32, #tpu.memory_space<vmem>>, %arg3: memref<4x2x128xf32, #tpu.memory_space<vmem>>, %arg4: memref<8x128xf32, #tpu.memory_space<vmem>>, %arg5: memref<2x1xi32, #tpu.memory_space<vmem>>, %arg6: memref<4x2x128xi32, #tpu.memory_space<vmem>>, %arg7: memref<2x128xf32, #tpu.memory_space<vmem>>, %arg8: memref<2x128xf32, #tpu.memory_space<vmem>>) attributes {dimension_semantics = [#tpu.dimension_semantics<parallel>, #tpu.dimension_semantics<arbitrary>], iteration_bounds = array<i64: 1, 2>, scalar_prefetch = 0 : i64, scratch_operands = 1 : i64, tpu.core_type = #tpu.core_type<tc>, window_params = [{transform_indices = @transform_0, window_bounds = array<i64: 4, 2, 128>}, {transform_indices = @transform_1, window_bounds = array<i64: 4, 2, 128>}, {pipeline_mode = #tpu.pipeline_mode<synchronous>, transform_indices = @transform_2, window_bounds = array<i64: 8, 128>}, {transform_indices = @transform_3, window_bounds = array<i64: 2, 1>}, {transform_indices = @transform_4, window_bounds = array<i64: 4, 2, 128>}, {transform_indices = @transform_5, window_bounds = array<i64: 2, 128>}]} {
    %c0 = arith.constant 0 : index
    %c0_0 = arith.constant 0 : index
    %0 = vector.load %arg4[%c0, %c0_0] : memref<8x128xf32, #tpu.memory_space<vmem>>, vector<8x128xf32>
    %c0_1 = arith.constant 0 : index
    %c0_2 = arith.constant 0 : index
    %1 = vector.load %arg5[%c0_1, %c0_2] : memref<2x1xi32, #tpu.memory_space<vmem>>, vector<2x1xi32>
    %2 = tpu.iota {dimensions = array<i32: 1>} : vector<2x128xi32>
    %c4_i32 = arith.constant 4 : i32
    %3 = arith.muli %arg1, %c4_i32 : i32
    %c0_i32 = arith.constant 0 : i32
    %4 = arith.addi %3, %c0_i32 : i32
    %c0_i32_3 = arith.constant 0 : i32
    %5 = arith.cmpi eq, %arg1, %c0_i32_3 : i32
    %6 = arith.extui %5 : i1 to i32
    %c0_i32_4 = arith.constant 0 : i32
    %7 = arith.cmpi ne, %6, %c0_i32_4 : i32
    scf.if %7 {
      %c0_71 = arith.constant 0 : index
      %c0_72 = arith.constant 0 : index
      %c0_73 = arith.constant 0 : index
      %283 = vector.load %arg2[%c0_71, %c0_72, %c0_73] : memref<4x2x128xf32, #tpu.memory_space<vmem>>, vector<1x2x128xf32>
      %284 = vector.shape_cast %283 : vector<1x2x128xf32> to vector<2x128xf32>
      %c0_74 = arith.constant 0 : index
      %c0_75 = arith.constant 0 : index
      %c0_76 = arith.constant 0 : index
      %285 = vector.load %arg3[%c0_74, %c0_75, %c0_76] : memref<4x2x128xf32, #tpu.memory_space<vmem>>, vector<1x2x128xf32>
      %286 = vector.shape_cast %285 : vector<1x2x128xf32> to vector<2x128xf32>
      %287 = arith.addf %284, %286 : vector<2x128xf32>
      %288 = vector.extract_strided_slice %0 {offsets = [6, 0], sizes = [1, 128], strides = [1, 1]} : vector<8x128xf32> to vector<1x128xf32>
      %289 = vector.broadcast %288 : vector<1x128xf32> to vector<2x128xf32>
      %290 = arith.addf %287, %289 : vector<2x128xf32>
      %c0_77 = arith.constant 0 : index
      %c0_78 = arith.constant 0 : index
      %291 = vector.load %arg8[%c0_77, %c0_78] : memref<2x128xf32, #tpu.memory_space<vmem>>, vector<2x128xf32>
      tpu.vector_store %arg8[%c0_77, %c0_78], %290 {strides = array<i32>} : memref<2x128xf32, #tpu.memory_space<vmem>>, vector<2x128xf32>,
      %c0_i32_79 = arith.constant 0 : i32
      %292 = vector.broadcast %c0_i32_79 : i32 to vector<2x128xi32>
      %c0_80 = arith.constant 0 : index
      %c0_81 = arith.constant 0 : index
      %c0_82 = arith.constant 0 : index
      %293 = vector.load %arg6[%c0_80, %c0_81, %c0_82] : memref<4x2x128xi32, #tpu.memory_space<vmem>>, vector<1x2x128xi32>
      %294 = vector.shape_cast %293 : vector<1x2x128xi32> to vector<2x128xi32>
      %295 = vector.shape_cast %292 : vector<2x128xi32> to vector<1x2x128xi32>
      tpu.vector_store %arg6[%c0_80, %c0_81, %c0_82], %295 {strides = array<i32>} : memref<4x2x128xi32, #tpu.memory_space<vmem>>, vector<1x2x128xi32>,
    } else {
    }
    %c0_i32_5 = arith.constant 0 : i32
    %8 = arith.cmpi sgt, %arg1, %c0_i32_5 : i32
    %9 = arith.extui %8 : i1 to i32
    %c0_i32_6 = arith.constant 0 : i32
    %10 = arith.cmpi ne, %9, %c0_i32_6 : i32
    scf.if %10 {
      %c0_71 = arith.constant 0 : index
      %c0_72 = arith.constant 0 : index
      %c0_73 = arith.constant 0 : index
      %283 = vector.load %arg2[%c0_71, %c0_72, %c0_73] : memref<4x2x128xf32, #tpu.memory_space<vmem>>, vector<1x2x128xf32>
      %284 = vector.shape_cast %283 : vector<1x2x128xf32> to vector<2x128xf32>
      %c0_74 = arith.constant 0 : index
      %c0_75 = arith.constant 0 : index
      %c0_76 = arith.constant 0 : index
      %285 = vector.load %arg3[%c0_74, %c0_75, %c0_76] : memref<4x2x128xf32, #tpu.memory_space<vmem>>, vector<1x2x128xf32>
      %286 = vector.shape_cast %285 : vector<1x2x128xf32> to vector<2x128xf32>
      %287 = arith.addf %284, %286 : vector<2x128xf32>
      %c0_77 = arith.constant 0 : index
      %c0_78 = arith.constant 0 : index
      %288 = vector.load %arg8[%c0_77, %c0_78] : memref<2x128xf32, #tpu.memory_space<vmem>>, vector<2x128xf32>
      %289 = vector.extract_strided_slice %288 {offsets = [0, 0], sizes = [2, 1], strides = [1, 1]} : vector<2x128xf32> to vector<2x1xf32>
      %290 = vector.extract_strided_slice %0 {offsets = [0, 0], sizes = [1, 128], strides = [1, 1]} : vector<8x128xf32> to vector<1x128xf32>
      %291 = vector.broadcast %289 : vector<2x1xf32> to vector<2x128xf32>
      %292 = vector.broadcast %290 : vector<1x128xf32> to vector<2x128xf32>
      %293 = arith.addf %291, %292 : vector<2x128xf32>
      %c0_i32_79 = arith.constant 0 : i32
      %294 = vector.broadcast %c0_i32_79 : i32 to vector<2x128xi32>
      %295 = vector.extract_strided_slice %288 {offsets = [0, 1], sizes = [2, 1], strides = [1, 1]} : vector<2x128xf32> to vector<2x1xf32>
      %296 = vector.extract_strided_slice %0 {offsets = [1, 0], sizes = [1, 128], strides = [1, 1]} : vector<8x128xf32> to vector<1x128xf32>
      %297 = vector.broadcast %295 : vector<2x1xf32> to vector<2x128xf32>
      %298 = vector.broadcast %296 : vector<1x128xf32> to vector<2x128xf32>
      %299 = arith.addf %297, %298 : vector<2x128xf32>
      %300 = arith.cmpf ogt, %299, %293 : vector<2x128xf32>
      %301 = arith.select %300, %299, %293 : vector<2x128xi1>, vector<2x128xf32>
      %c1_i32_80 = arith.constant 1 : i32
      %302 = vector.broadcast %c1_i32_80 : i32 to vector<2x128xi32>
      %303 = arith.select %300, %302, %294 : vector<2x128xi1>, vector<2x128xi32>
      %304 = vector.extract_strided_slice %288 {offsets = [0, 2], sizes = [2, 1], strides = [1, 1]} : vector<2x128xf32> to vector<2x1xf32>
      %305 = vector.extract_strided_slice %0 {offsets = [2, 0], sizes = [1, 128], strides = [1, 1]} : vector<8x128xf32> to vector<1x128xf32>
      %306 = vector.broadcast %304 : vector<2x1xf32> to vector<2x128xf32>
      %307 = vector.broadcast %305 : vector<1x128xf32> to vector<2x128xf32>
      %308 = arith.addf %306, %307 : vector<2x128xf32>
      %309 = arith.cmpf ogt, %308, %301 : vector<2x128xf32>
      %310 = arith.select %309, %308, %301 : vector<2x128xi1>, vector<2x128xf32>
      %c2_i32_81 = arith.constant 2 : i32
      %311 = vector.broadcast %c2_i32_81 : i32 to vector<2x128xi32>
      %312 = arith.select %309, %311, %303 : vector<2x128xi1>, vector<2x128xi32>
      %313 = vector.extract_strided_slice %288 {offsets = [0, 3], sizes = [2, 1], strides = [1, 1]} : vector<2x128xf32> to vector<2x1xf32>
      %314 = vector.extract_strided_slice %0 {offsets = [3, 0], sizes = [1, 128], strides = [1, 1]} : vector<8x128xf32> to vector<1x128xf32>
      %315 = vector.broadcast %313 : vector<2x1xf32> to vector<2x128xf32>
      %316 = vector.broadcast %314 : vector<1x128xf32> to vector<2x128xf32>
      %317 = arith.addf %315, %316 : vector<2x128xf32>
      %318 = arith.cmpf ogt, %317, %310 : vector<2x128xf32>
      %319 = arith.select %318, %317, %310 : vector<2x128xi1>, vector<2x128xf32>
      %c3_i32_82 = arith.constant 3 : i32
      %320 = vector.broadcast %c3_i32_82 : i32 to vector<2x128xi32>
      %321 = arith.select %318, %320, %312 : vector<2x128xi1>, vector<2x128xi32>
      %322 = vector.extract_strided_slice %288 {offsets = [0, 4], sizes = [2, 1], strides = [1, 1]} : vector<2x128xf32> to vector<2x1xf32>
      %323 = vector.extract_strided_slice %0 {offsets = [4, 0], sizes = [1, 128], strides = [1, 1]} : vector<8x128xf32> to vector<1x128xf32>
      %324 = vector.broadcast %322 : vector<2x1xf32> to vector<2x128xf32>
      %325 = vector.broadcast %323 : vector<1x128xf32> to vector<2x128xf32>
      %326 = arith.addf %324, %325 : vector<2x128xf32>
      %327 = arith.cmpf ogt, %326, %319 : vector<2x128xf32>
      %328 = arith.select %327, %326, %319 : vector<2x128xi1>, vector<2x128xf32>
      %c4_i32_83 = arith.constant 4 : i32
      %329 = vector.broadcast %c4_i32_83 : i32 to vector<2x128xi32>
      %330 = arith.select %327, %329, %321 : vector<2x128xi1>, vector<2x128xi32>
      %331 = vector.extract_strided_slice %288 {offsets = [0, 5], sizes = [2, 1], strides = [1, 1]} : vector<2x128xf32> to vector<2x1xf32>
      %332 = vector.extract_strided_slice %0 {offsets = [5, 0], sizes = [1, 128], strides = [1, 1]} : vector<8x128xf32> to vector<1x128xf32>
      %333 = vector.broadcast %331 : vector<2x1xf32> to vector<2x128xf32>
      %334 = vector.broadcast %332 : vector<1x128xf32> to vector<2x128xf32>
      %335 = arith.addf %333, %334 : vector<2x128xf32>
      %336 = arith.cmpf ogt, %335, %328 : vector<2x128xf32>
      %337 = arith.select %336, %335, %328 : vector<2x128xi1>, vector<2x128xf32>
      %c5_i32_84 = arith.constant 5 : i32
      %338 = vector.broadcast %c5_i32_84 : i32 to vector<2x128xi32>
      %339 = arith.select %336, %338, %330 : vector<2x128xi1>, vector<2x128xi32>
      %340 = vector.extract_strided_slice %288 {offsets = [0, 6], sizes = [2, 1], strides = [1, 1]} : vector<2x128xf32> to vector<2x1xf32>
      %341 = vector.extract_strided_slice %0 {offsets = [6, 0], sizes = [1, 128], strides = [1, 1]} : vector<8x128xf32> to vector<1x128xf32>
      %342 = vector.broadcast %340 : vector<2x1xf32> to vector<2x128xf32>
      %343 = vector.broadcast %341 : vector<1x128xf32> to vector<2x128xf32>
      %344 = arith.addf %342, %343 : vector<2x128xf32>
      %345 = arith.cmpf ogt, %344, %337 : vector<2x128xf32>
      %346 = arith.select %345, %344, %337 : vector<2x128xi1>, vector<2x128xf32>
      %c6_i32_85 = arith.constant 6 : i32
      %347 = vector.broadcast %c6_i32_85 : i32 to vector<2x128xi32>
      %348 = arith.select %345, %347, %339 : vector<2x128xi1>, vector<2x128xi32>
      %349 = vector.extract_strided_slice %288 {offsets = [0, 7], sizes = [2, 1], strides = [1, 1]} : vector<2x128xf32> to vector<2x1xf32>
      %350 = vector.extract_strided_slice %0 {offsets = [7, 0], sizes = [1, 128], strides = [1, 1]} : vector<8x128xf32> to vector<1x128xf32>
      %351 = vector.broadcast %349 : vector<2x1xf32> to vector<2x128xf32>
      %352 = vector.broadcast %350 : vector<1x128xf32> to vector<2x128xf32>
      %353 = arith.addf %351, %352 : vector<2x128xf32>
      %354 = arith.cmpf ogt, %353, %346 : vector<2x128xf32>
      %355 = arith.select %354, %353, %346 : vector<2x128xi1>, vector<2x128xf32>
      %c7_i32_86 = arith.constant 7 : i32
      %356 = vector.broadcast %c7_i32_86 : i32 to vector<2x128xi32>
      %357 = arith.select %354, %356, %348 : vector<2x128xi1>, vector<2x128xi32>
      %358 = vector.broadcast %4 : i32 to vector<2x1xi32>
      %359 = arith.cmpi sgt, %1, %358 : vector<2x1xi32>
      %360 = arith.addf %355, %287 : vector<2x128xf32>
      %361 = vector.shape_cast %359 : vector<2x1xi1> to vector<2x1xi1>
      %362 = vector.broadcast %361 : vector<2x1xi1> to vector<2x128xi1>
      %363 = arith.select %362, %360, %288 : vector<2x128xi1>, vector<2x128xf32>
      %c0_87 = arith.constant 0 : index
      %c0_88 = arith.constant 0 : index
      %364 = vector.load %arg8[%c0_87, %c0_88] : memref<2x128xf32, #tpu.memory_space<vmem>>, vector<2x128xf32>
      tpu.vector_store %arg8[%c0_87, %c0_88], %363 {strides = array<i32>} : memref<2x128xf32, #tpu.memory_space<vmem>>, vector<2x128xf32>,
      %365 = vector.shape_cast %359 : vector<2x1xi1> to vector<2x1xi1>
      %366 = vector.broadcast %365 : vector<2x1xi1> to vector<2x128xi1>
      %367 = arith.select %366, %357, %2 : vector<2x128xi1>, vector<2x128xi32>
      %c0_89 = arith.constant 0 : index
      %c0_90 = arith.constant 0 : index
      %c0_91 = arith.constant 0 : index
      %368 = vector.load %arg6[%c0_89, %c0_90, %c0_91] : memref<4x2x128xi32, #tpu.memory_space<vmem>>, vector<1x2x128xi32>
      %369 = vector.shape_cast %368 : vector<1x2x128xi32> to vector<2x128xi32>
      %370 = vector.shape_cast %367 : vector<2x128xi32> to vector<1x2x128xi32>
      tpu.vector_store %arg6[%c0_89, %c0_90, %c0_91], %370 {strides = array<i32>} : memref<4x2x128xi32, #tpu.memory_space<vmem>>, vector<1x2x128xi32>,
    } else {
    }
    %c4_i32_7 = arith.constant 4 : i32
    %11 = arith.muli %arg1, %c4_i32_7 : i32
    %c1_i32 = arith.constant 1 : i32
    %12 = arith.addi %11, %c1_i32 : i32
    %c1 = arith.constant 1 : index
    %c0_8 = arith.constant 0 : index
    %c0_9 = arith.constant 0 : index
    %13 = vector.load %arg2[%c1, %c0_8, %c0_9] : memref<4x2x128xf32, #tpu.memory_space<vmem>>, vector<1x2x128xf32>
    %14 = vector.shape_cast %13 : vector<1x2x128xf32> to vector<2x128xf32>
    %c1_10 = arith.constant 1 : index
    %c0_11 = arith.constant 0 : index
    %c0_12 = arith.constant 0 : index
    %15 = vector.load %arg3[%c1_10, %c0_11, %c0_12] : memref<4x2x128xf32, #tpu.memory_space<vmem>>, vector<1x2x128xf32>
    %16 = vector.shape_cast %15 : vector<1x2x128xf32> to vector<2x128xf32>
    %17 = arith.addf %14, %16 : vector<2x128xf32>
    %c0_13 = arith.constant 0 : index
    %c0_14 = arith.constant 0 : index
    %18 = vector.load %arg8[%c0_13, %c0_14] : memref<2x128xf32, #tpu.memory_space<vmem>>, vector<2x128xf32>
    %19 = vector.extract_strided_slice %18 {offsets = [0, 0], sizes = [2, 1], strides = [1, 1]} : vector<2x128xf32> to vector<2x1xf32>
    %20 = vector.extract_strided_slice %0 {offsets = [0, 0], sizes = [1, 128], strides = [1, 1]} : vector<8x128xf32> to vector<1x128xf32>
    %21 = vector.broadcast %19 : vector<2x1xf32> to vector<2x128xf32>
    %22 = vector.broadcast %20 : vector<1x128xf32> to vector<2x128xf32>
    %23 = arith.addf %21, %22 : vector<2x128xf32>
    %c0_i32_15 = arith.constant 0 : i32
    %24 = vector.broadcast %c0_i32_15 : i32 to vector<2x128xi32>
    %25 = vector.extract_strided_slice %18 {offsets = [0, 1], sizes = [2, 1], strides = [1, 1]} : vector<2x128xf32> to vector<2x1xf32>
    %26 = vector.extract_strided_slice %0 {offsets = [1, 0], sizes = [1, 128], strides = [1, 1]} : vector<8x128xf32> to vector<1x128xf32>
    %27 = vector.broadcast %25 : vector<2x1xf32> to vector<2x128xf32>
    %28 = vector.broadcast %26 : vector<1x128xf32> to vector<2x128xf32>
    %29 = arith.addf %27, %28 : vector<2x128xf32>
    %30 = arith.cmpf ogt, %29, %23 : vector<2x128xf32>
    %31 = arith.select %30, %29, %23 : vector<2x128xi1>, vector<2x128xf32>
    %c1_i32_16 = arith.constant 1 : i32
    %32 = vector.broadcast %c1_i32_16 : i32 to vector<2x128xi32>
    %33 = arith.select %30, %32, %24 : vector<2x128xi1>, vector<2x128xi32>
    %34 = vector.extract_strided_slice %18 {offsets = [0, 2], sizes = [2, 1], strides = [1, 1]} : vector<2x128xf32> to vector<2x1xf32>
    %35 = vector.extract_strided_slice %0 {offsets = [2, 0], sizes = [1, 128], strides = [1, 1]} : vector<8x128xf32> to vector<1x128xf32>
    %36 = vector.broadcast %34 : vector<2x1xf32> to vector<2x128xf32>
    %37 = vector.broadcast %35 : vector<1x128xf32> to vector<2x128xf32>
    %38 = arith.addf %36, %37 : vector<2x128xf32>
    %39 = arith.cmpf ogt, %38, %31 : vector<2x128xf32>
    %40 = arith.select %39, %38, %31 : vector<2x128xi1>, vector<2x128xf32>
    %c2_i32 = arith.constant 2 : i32
    %41 = vector.broadcast %c2_i32 : i32 to vector<2x128xi32>
    %42 = arith.select %39, %41, %33 : vector<2x128xi1>, vector<2x128xi32>
    %43 = vector.extract_strided_slice %18 {offsets = [0, 3], sizes = [2, 1], strides = [1, 1]} : vector<2x128xf32> to vector<2x1xf32>
    %44 = vector.extract_strided_slice %0 {offsets = [3, 0], sizes = [1, 128], strides = [1, 1]} : vector<8x128xf32> to vector<1x128xf32>
    %45 = vector.broadcast %43 : vector<2x1xf32> to vector<2x128xf32>
    %46 = vector.broadcast %44 : vector<1x128xf32> to vector<2x128xf32>
    %47 = arith.addf %45, %46 : vector<2x128xf32>
    %48 = arith.cmpf ogt, %47, %40 : vector<2x128xf32>
    %49 = arith.select %48, %47, %40 : vector<2x128xi1>, vector<2x128xf32>
    %c3_i32 = arith.constant 3 : i32
    %50 = vector.broadcast %c3_i32 : i32 to vector<2x128xi32>
    %51 = arith.select %48, %50, %42 : vector<2x128xi1>, vector<2x128xi32>
    %52 = vector.extract_strided_slice %18 {offsets = [0, 4], sizes = [2, 1], strides = [1, 1]} : vector<2x128xf32> to vector<2x1xf32>
    %53 = vector.extract_strided_slice %0 {offsets = [4, 0], sizes = [1, 128], strides = [1, 1]} : vector<8x128xf32> to vector<1x128xf32>
    %54 = vector.broadcast %52 : vector<2x1xf32> to vector<2x128xf32>
    %55 = vector.broadcast %53 : vector<1x128xf32> to vector<2x128xf32>
    %56 = arith.addf %54, %55 : vector<2x128xf32>
    %57 = arith.cmpf ogt, %56, %49 : vector<2x128xf32>
    %58 = arith.select %57, %56, %49 : vector<2x128xi1>, vector<2x128xf32>
    %c4_i32_17 = arith.constant 4 : i32
    %59 = vector.broadcast %c4_i32_17 : i32 to vector<2x128xi32>
    %60 = arith.select %57, %59, %51 : vector<2x128xi1>, vector<2x128xi32>
    %61 = vector.extract_strided_slice %18 {offsets = [0, 5], sizes = [2, 1], strides = [1, 1]} : vector<2x128xf32> to vector<2x1xf32>
    %62 = vector.extract_strided_slice %0 {offsets = [5, 0], sizes = [1, 128], strides = [1, 1]} : vector<8x128xf32> to vector<1x128xf32>
    %63 = vector.broadcast %61 : vector<2x1xf32> to vector<2x128xf32>
    %64 = vector.broadcast %62 : vector<1x128xf32> to vector<2x128xf32>
    %65 = arith.addf %63, %64 : vector<2x128xf32>
    %66 = arith.cmpf ogt, %65, %58 : vector<2x128xf32>
    %67 = arith.select %66, %65, %58 : vector<2x128xi1>, vector<2x128xf32>
    %c5_i32 = arith.constant 5 : i32
    %68 = vector.broadcast %c5_i32 : i32 to vector<2x128xi32>
    %69 = arith.select %66, %68, %60 : vector<2x128xi1>, vector<2x128xi32>
    %70 = vector.extract_strided_slice %18 {offsets = [0, 6], sizes = [2, 1], strides = [1, 1]} : vector<2x128xf32> to vector<2x1xf32>
    %71 = vector.extract_strided_slice %0 {offsets = [6, 0], sizes = [1, 128], strides = [1, 1]} : vector<8x128xf32> to vector<1x128xf32>
    %72 = vector.broadcast %70 : vector<2x1xf32> to vector<2x128xf32>
    %73 = vector.broadcast %71 : vector<1x128xf32> to vector<2x128xf32>
    %74 = arith.addf %72, %73 : vector<2x128xf32>
    %75 = arith.cmpf ogt, %74, %67 : vector<2x128xf32>
    %76 = arith.select %75, %74, %67 : vector<2x128xi1>, vector<2x128xf32>
    %c6_i32 = arith.constant 6 : i32
    %77 = vector.broadcast %c6_i32 : i32 to vector<2x128xi32>
    %78 = arith.select %75, %77, %69 : vector<2x128xi1>, vector<2x128xi32>
    %79 = vector.extract_strided_slice %18 {offsets = [0, 7], sizes = [2, 1], strides = [1, 1]} : vector<2x128xf32> to vector<2x1xf32>
    %80 = vector.extract_strided_slice %0 {offsets = [7, 0], sizes = [1, 128], strides = [1, 1]} : vector<8x128xf32> to vector<1x128xf32>
    %81 = vector.broadcast %79 : vector<2x1xf32> to vector<2x128xf32>
    %82 = vector.broadcast %80 : vector<1x128xf32> to vector<2x128xf32>
    %83 = arith.addf %81, %82 : vector<2x128xf32>
    %84 = arith.cmpf ogt, %83, %76 : vector<2x128xf32>
    %85 = arith.select %84, %83, %76 : vector<2x128xi1>, vector<2x128xf32>
    %c7_i32 = arith.constant 7 : i32
    %86 = vector.broadcast %c7_i32 : i32 to vector<2x128xi32>
    %87 = arith.select %84, %86, %78 : vector<2x128xi1>, vector<2x128xi32>
    %88 = vector.broadcast %12 : i32 to vector<2x1xi32>
    %89 = arith.cmpi sgt, %1, %88 : vector<2x1xi32>
    %90 = arith.addf %85, %17 : vector<2x128xf32>
    %91 = vector.shape_cast %89 : vector<2x1xi1> to vector<2x1xi1>
    %92 = vector.broadcast %91 : vector<2x1xi1> to vector<2x128xi1>
    %93 = arith.select %92, %90, %18 : vector<2x128xi1>, vector<2x128xf32>
    %c0_18 = arith.constant 0 : index
    %c0_19 = arith.constant 0 : index
    %94 = vector.load %arg8[%c0_18, %c0_19] : memref<2x128xf32, #tpu.memory_space<vmem>>, vector<2x128xf32>
    tpu.vector_store %arg8[%c0_18, %c0_19], %93 {strides = array<i32>} : memref<2x128xf32, #tpu.memory_space<vmem>>, vector<2x128xf32>,
    %95 = vector.shape_cast %89 : vector<2x1xi1> to vector<2x1xi1>
    %96 = vector.broadcast %95 : vector<2x1xi1> to vector<2x128xi1>
    %97 = arith.select %96, %87, %2 : vector<2x128xi1>, vector<2x128xi32>
    %c1_20 = arith.constant 1 : index
    %c0_21 = arith.constant 0 : index
    %c0_22 = arith.constant 0 : index
    %98 = vector.load %arg6[%c1_20, %c0_21, %c0_22] : memref<4x2x128xi32, #tpu.memory_space<vmem>>, vector<1x2x128xi32>
    %99 = vector.shape_cast %98 : vector<1x2x128xi32> to vector<2x128xi32>
    %100 = vector.shape_cast %97 : vector<2x128xi32> to vector<1x2x128xi32>
    tpu.vector_store %arg6[%c1_20, %c0_21, %c0_22], %100 {strides = array<i32>} : memref<4x2x128xi32, #tpu.memory_space<vmem>>, vector<1x2x128xi32>,
    %c4_i32_23 = arith.constant 4 : i32
    %101 = arith.muli %arg1, %c4_i32_23 : i32
    %c2_i32_24 = arith.constant 2 : i32
    %102 = arith.addi %101, %c2_i32_24 : i32
    %c2 = arith.constant 2 : index
    %c0_25 = arith.constant 0 : index
    %c0_26 = arith.constant 0 : index
    %103 = vector.load %arg2[%c2, %c0_25, %c0_26] : memref<4x2x128xf32, #tpu.memory_space<vmem>>, vector<1x2x128xf32>
    %104 = vector.shape_cast %103 : vector<1x2x128xf32> to vector<2x128xf32>
    %c2_27 = arith.constant 2 : index
    %c0_28 = arith.constant 0 : index
    %c0_29 = arith.constant 0 : index
    %105 = vector.load %arg3[%c2_27, %c0_28, %c0_29] : memref<4x2x128xf32, #tpu.memory_space<vmem>>, vector<1x2x128xf32>
    %106 = vector.shape_cast %105 : vector<1x2x128xf32> to vector<2x128xf32>
    %107 = arith.addf %104, %106 : vector<2x128xf32>
    %c0_30 = arith.constant 0 : index
    %c0_31 = arith.constant 0 : index
    %108 = vector.load %arg8[%c0_30, %c0_31] : memref<2x128xf32, #tpu.memory_space<vmem>>, vector<2x128xf32>
    %109 = vector.extract_strided_slice %108 {offsets = [0, 0], sizes = [2, 1], strides = [1, 1]} : vector<2x128xf32> to vector<2x1xf32>
    %110 = vector.extract_strided_slice %0 {offsets = [0, 0], sizes = [1, 128], strides = [1, 1]} : vector<8x128xf32> to vector<1x128xf32>
    %111 = vector.broadcast %109 : vector<2x1xf32> to vector<2x128xf32>
    %112 = vector.broadcast %110 : vector<1x128xf32> to vector<2x128xf32>
    %113 = arith.addf %111, %112 : vector<2x128xf32>
    %c0_i32_32 = arith.constant 0 : i32
    %114 = vector.broadcast %c0_i32_32 : i32 to vector<2x128xi32>
    %115 = vector.extract_strided_slice %108 {offsets = [0, 1], sizes = [2, 1], strides = [1, 1]} : vector<2x128xf32> to vector<2x1xf32>
    %116 = vector.extract_strided_slice %0 {offsets = [1, 0], sizes = [1, 128], strides = [1, 1]} : vector<8x128xf32> to vector<1x128xf32>
    %117 = vector.broadcast %115 : vector<2x1xf32> to vector<2x128xf32>
    %118 = vector.broadcast %116 : vector<1x128xf32> to vector<2x128xf32>
    %119 = arith.addf %117, %118 : vector<2x128xf32>
    %120 = arith.cmpf ogt, %119, %113 : vector<2x128xf32>
    %121 = arith.select %120, %119, %113 : vector<2x128xi1>, vector<2x128xf32>
    %c1_i32_33 = arith.constant 1 : i32
    %122 = vector.broadcast %c1_i32_33 : i32 to vector<2x128xi32>
    %123 = arith.select %120, %122, %114 : vector<2x128xi1>, vector<2x128xi32>
    %124 = vector.extract_strided_slice %108 {offsets = [0, 2], sizes = [2, 1], strides = [1, 1]} : vector<2x128xf32> to vector<2x1xf32>
    %125 = vector.extract_strided_slice %0 {offsets = [2, 0], sizes = [1, 128], strides = [1, 1]} : vector<8x128xf32> to vector<1x128xf32>
    %126 = vector.broadcast %124 : vector<2x1xf32> to vector<2x128xf32>
    %127 = vector.broadcast %125 : vector<1x128xf32> to vector<2x128xf32>
    %128 = arith.addf %126, %127 : vector<2x128xf32>
    %129 = arith.cmpf ogt, %128, %121 : vector<2x128xf32>
    %130 = arith.select %129, %128, %121 : vector<2x128xi1>, vector<2x128xf32>
    %c2_i32_34 = arith.constant 2 : i32
    %131 = vector.broadcast %c2_i32_34 : i32 to vector<2x128xi32>
    %132 = arith.select %129, %131, %123 : vector<2x128xi1>, vector<2x128xi32>
    %133 = vector.extract_strided_slice %108 {offsets = [0, 3], sizes = [2, 1], strides = [1, 1]} : vector<2x128xf32> to vector<2x1xf32>
    %134 = vector.extract_strided_slice %0 {offsets = [3, 0], sizes = [1, 128], strides = [1, 1]} : vector<8x128xf32> to vector<1x128xf32>
    %135 = vector.broadcast %133 : vector<2x1xf32> to vector<2x128xf32>
    %136 = vector.broadcast %134 : vector<1x128xf32> to vector<2x128xf32>
    %137 = arith.addf %135, %136 : vector<2x128xf32>
    %138 = arith.cmpf ogt, %137, %130 : vector<2x128xf32>
    %139 = arith.select %138, %137, %130 : vector<2x128xi1>, vector<2x128xf32>
    %c3_i32_35 = arith.constant 3 : i32
    %140 = vector.broadcast %c3_i32_35 : i32 to vector<2x128xi32>
    %141 = arith.select %138, %140, %132 : vector<2x128xi1>, vector<2x128xi32>
    %142 = vector.extract_strided_slice %108 {offsets = [0, 4], sizes = [2, 1], strides = [1, 1]} : vector<2x128xf32> to vector<2x1xf32>
    %143 = vector.extract_strided_slice %0 {offsets = [4, 0], sizes = [1, 128], strides = [1, 1]} : vector<8x128xf32> to vector<1x128xf32>
    %144 = vector.broadcast %142 : vector<2x1xf32> to vector<2x128xf32>
    %145 = vector.broadcast %143 : vector<1x128xf32> to vector<2x128xf32>
    %146 = arith.addf %144, %145 : vector<2x128xf32>
    %147 = arith.cmpf ogt, %146, %139 : vector<2x128xf32>
    %148 = arith.select %147, %146, %139 : vector<2x128xi1>, vector<2x128xf32>
    %c4_i32_36 = arith.constant 4 : i32
    %149 = vector.broadcast %c4_i32_36 : i32 to vector<2x128xi32>
    %150 = arith.select %147, %149, %141 : vector<2x128xi1>, vector<2x128xi32>
    %151 = vector.extract_strided_slice %108 {offsets = [0, 5], sizes = [2, 1], strides = [1, 1]} : vector<2x128xf32> to vector<2x1xf32>
    %152 = vector.extract_strided_slice %0 {offsets = [5, 0], sizes = [1, 128], strides = [1, 1]} : vector<8x128xf32> to vector<1x128xf32>
    %153 = vector.broadcast %151 : vector<2x1xf32> to vector<2x128xf32>
    %154 = vector.broadcast %152 : vector<1x128xf32> to vector<2x128xf32>
    %155 = arith.addf %153, %154 : vector<2x128xf32>
    %156 = arith.cmpf ogt, %155, %148 : vector<2x128xf32>
    %157 = arith.select %156, %155, %148 : vector<2x128xi1>, vector<2x128xf32>
    %c5_i32_37 = arith.constant 5 : i32
    %158 = vector.broadcast %c5_i32_37 : i32 to vector<2x128xi32>
    %159 = arith.select %156, %158, %150 : vector<2x128xi1>, vector<2x128xi32>
    %160 = vector.extract_strided_slice %108 {offsets = [0, 6], sizes = [2, 1], strides = [1, 1]} : vector<2x128xf32> to vector<2x1xf32>
    %161 = vector.extract_strided_slice %0 {offsets = [6, 0], sizes = [1, 128], strides = [1, 1]} : vector<8x128xf32> to vector<1x128xf32>
    %162 = vector.broadcast %160 : vector<2x1xf32> to vector<2x128xf32>
    %163 = vector.broadcast %161 : vector<1x128xf32> to vector<2x128xf32>
    %164 = arith.addf %162, %163 : vector<2x128xf32>
    %165 = arith.cmpf ogt, %164, %157 : vector<2x128xf32>
    %166 = arith.select %165, %164, %157 : vector<2x128xi1>, vector<2x128xf32>
    %c6_i32_38 = arith.constant 6 : i32
    %167 = vector.broadcast %c6_i32_38 : i32 to vector<2x128xi32>
    %168 = arith.select %165, %167, %159 : vector<2x128xi1>, vector<2x128xi32>
    %169 = vector.extract_strided_slice %108 {offsets = [0, 7], sizes = [2, 1], strides = [1, 1]} : vector<2x128xf32> to vector<2x1xf32>
    %170 = vector.extract_strided_slice %0 {offsets = [7, 0], sizes = [1, 128], strides = [1, 1]} : vector<8x128xf32> to vector<1x128xf32>
    %171 = vector.broadcast %169 : vector<2x1xf32> to vector<2x128xf32>
    %172 = vector.broadcast %170 : vector<1x128xf32> to vector<2x128xf32>
    %173 = arith.addf %171, %172 : vector<2x128xf32>
    %174 = arith.cmpf ogt, %173, %166 : vector<2x128xf32>
    %175 = arith.select %174, %173, %166 : vector<2x128xi1>, vector<2x128xf32>
    %c7_i32_39 = arith.constant 7 : i32
    %176 = vector.broadcast %c7_i32_39 : i32 to vector<2x128xi32>
    %177 = arith.select %174, %176, %168 : vector<2x128xi1>, vector<2x128xi32>
    %178 = vector.broadcast %102 : i32 to vector<2x1xi32>
    %179 = arith.cmpi sgt, %1, %178 : vector<2x1xi32>
    %180 = arith.addf %175, %107 : vector<2x128xf32>
    %181 = vector.shape_cast %179 : vector<2x1xi1> to vector<2x1xi1>
    %182 = vector.broadcast %181 : vector<2x1xi1> to vector<2x128xi1>
    %183 = arith.select %182, %180, %108 : vector<2x128xi1>, vector<2x128xf32>
    %c0_40 = arith.constant 0 : index
    %c0_41 = arith.constant 0 : index
    %184 = vector.load %arg8[%c0_40, %c0_41] : memref<2x128xf32, #tpu.memory_space<vmem>>, vector<2x128xf32>
    tpu.vector_store %arg8[%c0_40, %c0_41], %183 {strides = array<i32>} : memref<2x128xf32, #tpu.memory_space<vmem>>, vector<2x128xf32>,
    %185 = vector.shape_cast %179 : vector<2x1xi1> to vector<2x1xi1>
    %186 = vector.broadcast %185 : vector<2x1xi1> to vector<2x128xi1>
    %187 = arith.select %186, %177, %2 : vector<2x128xi1>, vector<2x128xi32>
    %c2_42 = arith.constant 2 : index
    %c0_43 = arith.constant 0 : index
    %c0_44 = arith.constant 0 : index
    %188 = vector.load %arg6[%c2_42, %c0_43, %c0_44] : memref<4x2x128xi32, #tpu.memory_space<vmem>>, vector<1x2x128xi32>
    %189 = vector.shape_cast %188 : vector<1x2x128xi32> to vector<2x128xi32>
    %190 = vector.shape_cast %187 : vector<2x128xi32> to vector<1x2x128xi32>
    tpu.vector_store %arg6[%c2_42, %c0_43, %c0_44], %190 {strides = array<i32>} : memref<4x2x128xi32, #tpu.memory_space<vmem>>, vector<1x2x128xi32>,
    %c4_i32_45 = arith.constant 4 : i32
    %191 = arith.muli %arg1, %c4_i32_45 : i32
    %c3_i32_46 = arith.constant 3 : i32
    %192 = arith.addi %191, %c3_i32_46 : i32
    %c3 = arith.constant 3 : index
    %c0_47 = arith.constant 0 : index
    %c0_48 = arith.constant 0 : index
    %193 = vector.load %arg2[%c3, %c0_47, %c0_48] : memref<4x2x128xf32, #tpu.memory_space<vmem>>, vector<1x2x128xf32>
    %194 = vector.shape_cast %193 : vector<1x2x128xf32> to vector<2x128xf32>
    %c3_49 = arith.constant 3 : index
    %c0_50 = arith.constant 0 : index
    %c0_51 = arith.constant 0 : index
    %195 = vector.load %arg3[%c3_49, %c0_50, %c0_51] : memref<4x2x128xf32, #tpu.memory_space<vmem>>, vector<1x2x128xf32>
    %196 = vector.shape_cast %195 : vector<1x2x128xf32> to vector<2x128xf32>
    %197 = arith.addf %194, %196 : vector<2x128xf32>
    %c0_52 = arith.constant 0 : index
    %c0_53 = arith.constant 0 : index
    %198 = vector.load %arg8[%c0_52, %c0_53] : memref<2x128xf32, #tpu.memory_space<vmem>>, vector<2x128xf32>
    %199 = vector.extract_strided_slice %198 {offsets = [0, 0], sizes = [2, 1], strides = [1, 1]} : vector<2x128xf32> to vector<2x1xf32>
    %200 = vector.extract_strided_slice %0 {offsets = [0, 0], sizes = [1, 128], strides = [1, 1]} : vector<8x128xf32> to vector<1x128xf32>
    %201 = vector.broadcast %199 : vector<2x1xf32> to vector<2x128xf32>
    %202 = vector.broadcast %200 : vector<1x128xf32> to vector<2x128xf32>
    %203 = arith.addf %201, %202 : vector<2x128xf32>
    %c0_i32_54 = arith.constant 0 : i32
    %204 = vector.broadcast %c0_i32_54 : i32 to vector<2x128xi32>
    %205 = vector.extract_strided_slice %198 {offsets = [0, 1], sizes = [2, 1], strides = [1, 1]} : vector<2x128xf32> to vector<2x1xf32>
    %206 = vector.extract_strided_slice %0 {offsets = [1, 0], sizes = [1, 128], strides = [1, 1]} : vector<8x128xf32> to vector<1x128xf32>
    %207 = vector.broadcast %205 : vector<2x1xf32> to vector<2x128xf32>
    %208 = vector.broadcast %206 : vector<1x128xf32> to vector<2x128xf32>
    %209 = arith.addf %207, %208 : vector<2x128xf32>
    %210 = arith.cmpf ogt, %209, %203 : vector<2x128xf32>
    %211 = arith.select %210, %209, %203 : vector<2x128xi1>, vector<2x128xf32>
    %c1_i32_55 = arith.constant 1 : i32
    %212 = vector.broadcast %c1_i32_55 : i32 to vector<2x128xi32>
    %213 = arith.select %210, %212, %204 : vector<2x128xi1>, vector<2x128xi32>
    %214 = vector.extract_strided_slice %198 {offsets = [0, 2], sizes = [2, 1], strides = [1, 1]} : vector<2x128xf32> to vector<2x1xf32>
    %215 = vector.extract_strided_slice %0 {offsets = [2, 0], sizes = [1, 128], strides = [1, 1]} : vector<8x128xf32> to vector<1x128xf32>
    %216 = vector.broadcast %214 : vector<2x1xf32> to vector<2x128xf32>
    %217 = vector.broadcast %215 : vector<1x128xf32> to vector<2x128xf32>
    %218 = arith.addf %216, %217 : vector<2x128xf32>
    %219 = arith.cmpf ogt, %218, %211 : vector<2x128xf32>
    %220 = arith.select %219, %218, %211 : vector<2x128xi1>, vector<2x128xf32>
    %c2_i32_56 = arith.constant 2 : i32
    %221 = vector.broadcast %c2_i32_56 : i32 to vector<2x128xi32>
    %222 = arith.select %219, %221, %213 : vector<2x128xi1>, vector<2x128xi32>
    %223 = vector.extract_strided_slice %198 {offsets = [0, 3], sizes = [2, 1], strides = [1, 1]} : vector<2x128xf32> to vector<2x1xf32>
    %224 = vector.extract_strided_slice %0 {offsets = [3, 0], sizes = [1, 128], strides = [1, 1]} : vector<8x128xf32> to vector<1x128xf32>
    %225 = vector.broadcast %223 : vector<2x1xf32> to vector<2x128xf32>
    %226 = vector.broadcast %224 : vector<1x128xf32> to vector<2x128xf32>
    %227 = arith.addf %225, %226 : vector<2x128xf32>
    %228 = arith.cmpf ogt, %227, %220 : vector<2x128xf32>
    %229 = arith.select %228, %227, %220 : vector<2x128xi1>, vector<2x128xf32>
    %c3_i32_57 = arith.constant 3 : i32
    %230 = vector.broadcast %c3_i32_57 : i32 to vector<2x128xi32>
    %231 = arith.select %228, %230, %222 : vector<2x128xi1>, vector<2x128xi32>
    %232 = vector.extract_strided_slice %198 {offsets = [0, 4], sizes = [2, 1], strides = [1, 1]} : vector<2x128xf32> to vector<2x1xf32>
    %233 = vector.extract_strided_slice %0 {offsets = [4, 0], sizes = [1, 128], strides = [1, 1]} : vector<8x128xf32> to vector<1x128xf32>
    %234 = vector.broadcast %232 : vector<2x1xf32> to vector<2x128xf32>
    %235 = vector.broadcast %233 : vector<1x128xf32> to vector<2x128xf32>
    %236 = arith.addf %234, %235 : vector<2x128xf32>
    %237 = arith.cmpf ogt, %236, %229 : vector<2x128xf32>
    %238 = arith.select %237, %236, %229 : vector<2x128xi1>, vector<2x128xf32>
    %c4_i32_58 = arith.constant 4 : i32
    %239 = vector.broadcast %c4_i32_58 : i32 to vector<2x128xi32>
    %240 = arith.select %237, %239, %231 : vector<2x128xi1>, vector<2x128xi32>
    %241 = vector.extract_strided_slice %198 {offsets = [0, 5], sizes = [2, 1], strides = [1, 1]} : vector<2x128xf32> to vector<2x1xf32>
    %242 = vector.extract_strided_slice %0 {offsets = [5, 0], sizes = [1, 128], strides = [1, 1]} : vector<8x128xf32> to vector<1x128xf32>
    %243 = vector.broadcast %241 : vector<2x1xf32> to vector<2x128xf32>
    %244 = vector.broadcast %242 : vector<1x128xf32> to vector<2x128xf32>
    %245 = arith.addf %243, %244 : vector<2x128xf32>
    %246 = arith.cmpf ogt, %245, %238 : vector<2x128xf32>
    %247 = arith.select %246, %245, %238 : vector<2x128xi1>, vector<2x128xf32>
    %c5_i32_59 = arith.constant 5 : i32
    %248 = vector.broadcast %c5_i32_59 : i32 to vector<2x128xi32>
    %249 = arith.select %246, %248, %240 : vector<2x128xi1>, vector<2x128xi32>
    %250 = vector.extract_strided_slice %198 {offsets = [0, 6], sizes = [2, 1], strides = [1, 1]} : vector<2x128xf32> to vector<2x1xf32>
    %251 = vector.extract_strided_slice %0 {offsets = [6, 0], sizes = [1, 128], strides = [1, 1]} : vector<8x128xf32> to vector<1x128xf32>
    %252 = vector.broadcast %250 : vector<2x1xf32> to vector<2x128xf32>
    %253 = vector.broadcast %251 : vector<1x128xf32> to vector<2x128xf32>
    %254 = arith.addf %252, %253 : vector<2x128xf32>
    %255 = arith.cmpf ogt, %254, %247 : vector<2x128xf32>
    %256 = arith.select %255, %254, %247 : vector<2x128xi1>, vector<2x128xf32>
    %c6_i32_60 = arith.constant 6 : i32
    %257 = vector.broadcast %c6_i32_60 : i32 to vector<2x128xi32>
    %258 = arith.select %255, %257, %249 : vector<2x128xi1>, vector<2x128xi32>
    %259 = vector.extract_strided_slice %198 {offsets = [0, 7], sizes = [2, 1], strides = [1, 1]} : vector<2x128xf32> to vector<2x1xf32>
    %260 = vector.extract_strided_slice %0 {offsets = [7, 0], sizes = [1, 128], strides = [1, 1]} : vector<8x128xf32> to vector<1x128xf32>
    %261 = vector.broadcast %259 : vector<2x1xf32> to vector<2x128xf32>
    %262 = vector.broadcast %260 : vector<1x128xf32> to vector<2x128xf32>
    %263 = arith.addf %261, %262 : vector<2x128xf32>
    %264 = arith.cmpf ogt, %263, %256 : vector<2x128xf32>
    %265 = arith.select %264, %263, %256 : vector<2x128xi1>, vector<2x128xf32>
    %c7_i32_61 = arith.constant 7 : i32
    %266 = vector.broadcast %c7_i32_61 : i32 to vector<2x128xi32>
    %267 = arith.select %264, %266, %258 : vector<2x128xi1>, vector<2x128xi32>
    %268 = vector.broadcast %192 : i32 to vector<2x1xi32>
    %269 = arith.cmpi sgt, %1, %268 : vector<2x1xi32>
    %270 = arith.addf %265, %197 : vector<2x128xf32>
    %271 = vector.shape_cast %269 : vector<2x1xi1> to vector<2x1xi1>
    %272 = vector.broadcast %271 : vector<2x1xi1> to vector<2x128xi1>
    %273 = arith.select %272, %270, %198 : vector<2x128xi1>, vector<2x128xf32>
    %c0_62 = arith.constant 0 : index
    %c0_63 = arith.constant 0 : index
    %274 = vector.load %arg8[%c0_62, %c0_63] : memref<2x128xf32, #tpu.memory_space<vmem>>, vector<2x128xf32>
    tpu.vector_store %arg8[%c0_62, %c0_63], %273 {strides = array<i32>} : memref<2x128xf32, #tpu.memory_space<vmem>>, vector<2x128xf32>,
    %275 = vector.shape_cast %269 : vector<2x1xi1> to vector<2x1xi1>
    %276 = vector.broadcast %275 : vector<2x1xi1> to vector<2x128xi1>
    %277 = arith.select %276, %267, %2 : vector<2x128xi1>, vector<2x128xi32>
    %c3_64 = arith.constant 3 : index
    %c0_65 = arith.constant 0 : index
    %c0_66 = arith.constant 0 : index
    %278 = vector.load %arg6[%c3_64, %c0_65, %c0_66] : memref<4x2x128xi32, #tpu.memory_space<vmem>>, vector<1x2x128xi32>
    %279 = vector.shape_cast %278 : vector<1x2x128xi32> to vector<2x128xi32>
    %280 = vector.shape_cast %277 : vector<2x128xi32> to vector<1x2x128xi32>
    tpu.vector_store %arg6[%c3_64, %c0_65, %c0_66], %280 {strides = array<i32>} : memref<4x2x128xi32, #tpu.memory_space<vmem>>, vector<1x2x128xi32>,
    %c0_67 = arith.constant 0 : index
    %c0_68 = arith.constant 0 : index
    %281 = vector.load %arg8[%c0_67, %c0_68] : memref<2x128xf32, #tpu.memory_space<vmem>>, vector<2x128xf32>
    %c0_69 = arith.constant 0 : index
    %c0_70 = arith.constant 0 : index
    %282 = vector.load %arg7[%c0_69, %c0_70] : memref<2x128xf32, #tpu.memory_space<vmem>>, vector<2x128xf32>
    tpu.vector_store %arg7[%c0_69, %c0_70], %281 {strides = array<i32>} : memref<2x128xf32, #tpu.memory_space<vmem>>, vector<2x128xf32>,
    return
  }
  func.func @transform_0(%arg0: i32, %arg1: i32) -> (i32, i32, i32) {
    %c0_i32 = arith.constant 0 : i32
    %c0_i32_0 = arith.constant 0 : i32
    return %arg1, %arg0, %c0_i32 : i32, i32, i32
  }
  func.func @transform_1(%arg0: i32, %arg1: i32) -> (i32, i32, i32) {
    %c0_i32 = arith.constant 0 : i32
    %c0_i32_0 = arith.constant 0 : i32
    return %arg1, %arg0, %c0_i32 : i32, i32, i32
  }
  func.func @transform_2(%arg0: i32, %arg1: i32) -> (i32, i32) {
    %c0_i32 = arith.constant 0 : i32
    %c0_i32_0 = arith.constant 0 : i32
    %c0_i32_1 = arith.constant 0 : i32
    return %c0_i32, %c0_i32_0 : i32, i32
  }
  func.func @transform_3(%arg0: i32, %arg1: i32) -> (i32, i32) {
    %c0_i32 = arith.constant 0 : i32
    %c0_i32_0 = arith.constant 0 : i32
    return %arg0, %c0_i32 : i32, i32
  }
  func.func @transform_4(%arg0: i32, %arg1: i32) -> (i32, i32, i32) {
    %c0_i32 = arith.constant 0 : i32
    %c0_i32_0 = arith.constant 0 : i32
    return %arg1, %arg0, %c0_i32 : i32, i32, i32
  }
  func.func @transform_5(%arg0: i32, %arg1: i32) -> (i32, i32) {
    %c0_i32 = arith.constant 0 : i32
    %c0_i32_0 = arith.constant 0 : i32
    return %arg0, %c0_i32 : i32, i32
  }
}

</mosaic_0001>

<llo_original>
// kernel: bilstm_crf_forward.7
$region0: #{bilstm_crf_forward.7}
  #allocation0 [shape = 'u32[]', space=smem, size = 0x4, offset = 0x4, fixed_abs, tag = 'smem constant byte address 0x4 - core index']
  #allocation1 [shape = 'u32[144,128]{1,0:T(1,128)}', space=vmem, size = 0x12000, scoped, tag = 'internal scratch']
  #allocation2 [shape = 's32[2,1]{1,0:T(2,128)}', space=vmem, size = 0x400, scoped, tag = 'scratch operand']
  %s0 = inlined_call_operand.vmem [shape: s32[8,2,128], index: 0, kind: input, shape index: {}]
  %s1 = inlined_call_operand.vmem [shape: s32[2,1], index: 1, kind: input, shape index: {}]
  %s2 = inlined_call_operand.vmem [shape: s32[8,2,1], index: 2, kind: output, shape index: {}]
  %s3 = sld [smem:[#allocation0]]
  $region45: #{bilstm_crf_forward.7} parent=0
    _
  %s5 = ssub.s32 1, %s3
  %s6 = scalar_select 0, %s5, %s3
  loop: start=0, step=1, limit=4
  $region2: #{bilstm_crf_forward.7} parent=0 // loop_pre_header
    _
  $region3: #{bilstm_crf_forward.7} parent=0 // loop_header
    %s8 = sphi 0, %s12
    %p9 = scmp.ge.s32.totalorder %s8, 4
    %s20 = sphi 0, %s22
    %s23 = sphi 0, %s20
    %s24 = sphi 0, %s23
    %s40 = sphi 0, %s24
    %s44 = sphi 0, %s44
    %s46 = sphi 0, %s44
    %s47 = sphi 0, %s46
    %s61 = sphi 0, %s47
    %s69 = sphi 0, %s71
    %s72 = sphi 0, %s69
    %s73 = sphi 0, %s72
    %s89 = sphi 0, %s73
  $region4: #{bilstm_crf_forward.7} parent=0 // loop_header_branch
    %11 = sbr.rel (%p9) target = $region8
  $region5: #{bilstm_crf_forward.7} parent=0 // loop_body
    %s13 = ssub.s32 %s8, 1
    %s14 = ssub.s32 %s8, 2
    %s15 = sadd.s32 %s8, 1
    %s16 = ssub.s32 1, %s8
    %s17 = ssub.s32 1, %s15
    %s18 = ssub.s32 %s16, %s17
    %p19 = scmp.eq.s32.totalorder %s18, 0
    %s21 = sadd.s32 %s20, 1
    %s22 = scalar_select %p19, %s20, %s21
    %p25 = pneg %p19
    %p26 = scmp.eq.s32.totalorder %s8, 1
    %p27 = por %p25, %p26
    %p28 = scmp.ne.s32.totalorder %s20, %s23
    %p29 = scmp.eq.s32.totalorder %s8, 0
    %p30 = por %p28, %p29
    %p31 = scmp.ne.s32.totalorder %s20, %s23
    %p32 = scmp.eq.s32.totalorder %s13, 1
    %p33 = por %p31, %p32
    %p34 = scmp.ne.s32.totalorder %s23, %s24
    %p35 = scmp.eq.s32.totalorder %s13, 0
    %p36 = por %p34, %p35
    %p37 = scmp.ne.s32.totalorder %s23, %s24
    %p38 = scmp.eq.s32.totalorder %s14, 1
    %p39 = por %p37, %p38
    %p41 = scmp.ne.s32.totalorder %s24, %s40
    %p42 = scmp.eq.s32.totalorder %s14, 0
    %p43 = por %p41, %p42
    %s45 = sadd.s32 %s44, 1
    %p48 = scmp.eq.s32.totalorder %s8, 1
    %p49 = scmp.ne.s32.totalorder %s44, %s46
    %p50 = scmp.eq.s32.totalorder %s8, 0
    %p51 = por %p49, %p50
    %p52 = scmp.ne.s32.totalorder %s44, %s46
    %p53 = scmp.eq.s32.totalorder %s13, 1
    %p54 = por %p52, %p53
    %p55 = scmp.ne.s32.totalorder %s46, %s47
    %p56 = scmp.eq.s32.totalorder %s13, 0
    %p57 = por %p55, %p56
    %p58 = scmp.ne.s32.totalorder %s46, %s47
    %p59 = scmp.eq.s32.totalorder %s14, 1
    %p60 = por %p58, %p59
    %p62 = scmp.ne.s32.totalorder %s47, %s61
    %p63 = scmp.eq.s32.totalorder %s14, 0
    %p64 = por %p62, %p63
    %s65 = ssub.s32 1, %s8
    %s66 = ssub.s32 1, %s15
    %s67 = ssub.s32 %s65, %s66
    %p68 = scmp.eq.s32.totalorder %s67, 0
    %s70 = sadd.s32 %s69, 1
    %s71 = scalar_select %p68, %s69, %s70
    %p74 = pneg %p68
    %p75 = scmp.eq.s32.totalorder %s8, 1
    %p76 = por %p74, %p75
    %p77 = scmp.ne.s32.totalorder %s69, %s72
    %p78 = scmp.eq.s32.totalorder %s8, 0
    %p79 = por %p77, %p78
    %p80 = scmp.ne.s32.totalorder %s69, %s72
    %p81 = scmp.eq.s32.totalorder %s13, 1
    %p82 = por %p80, %p81
    %p83 = scmp.ne.s32.totalorder %s72, %s73
    %p84 = scmp.eq.s32.totalorder %s13, 0
    %p85 = por %p83, %p84
    %p86 = scmp.ne.s32.totalorder %s72, %s73
    %p87 = scmp.eq.s32.totalorder %s14, 1
    %p88 = por %p86, %p87
    %p90 = scmp.ne.s32.totalorder %s73, %s89
    %p91 = scmp.eq.s32.totalorder %s14, 0
    %p92 = por %p90, %p91
    %p93 = scmp.le.s32.totalorder 1, %s8
    %p94 = scmp.lt.s32.totalorder %s8, 3
    %p95 = pnand %p93, %p94
    %p96 = pneg %p95
    // Predicated region
    $region9: #{bilstm_crf_forward.7} parent=5 // pred_check
      _
    $region10: #{bilstm_crf_forward.7} parent=5 // pred_check_branch
      %98 = sbr.rel (%p95) target = $region12
    $region11: #{bilstm_crf_forward.7} parent=5 // pred_region
      %s99 = ssub.s32 %s8, 1
      // Predicated region
      $region13: #{bilstm_crf_forward.7} parent=11 // pred_check
        %p100 = pneg %p57
      $region14: #{bilstm_crf_forward.7} parent=11 // pred_check_branch
        %102 = sbr.rel (%p100) target = $region16
      $region15: #{bilstm_crf_forward.7} parent=11 // pred_region
        _
      $region16: #{bilstm_crf_forward.7} parent=11 // pred_fallthru
        _
    $region12: #{bilstm_crf_forward.7} parent=5 // pred_fallthru
      _
    %p103 = scmp.lt.s32.totalorder %s8, 2
    // Predicated region
    $region17: #{bilstm_crf_forward.7} parent=5 // pred_check
      %p104 = pneg %p103
    $region18: #{bilstm_crf_forward.7} parent=5 // pred_check_branch
      %106 = sbr.rel (%p104) target = $region20
    $region19: #{bilstm_crf_forward.7} parent=5 // pred_region
      // Predicated region
      $region21: #{bilstm_crf_forward.7} parent=19 // pred_check
        %p107 = pneg %p30
      $region22: #{bilstm_crf_forward.7} parent=19 // pred_check_branch
        %109 = sbr.rel (%p107) target = $region24
      $region23: #{bilstm_crf_forward.7} parent=19 // pred_region
        %s110 = ssub.s32 1, %s8
        %s111 = smul.u32 4, %s110
        %p112 = scmp.lt.s32.totalorder %s111, 7
        %s113 = scalar_select %p112, %s111, 7
        %s114 = smul.addr %s113, 2
        %s115 = scalar_lea.vmem %s0, %s114
        %s116 = ssub.s32 1, %s8
        %s117 = smul.u32 4, %s116
      $region24: #{bilstm_crf_forward.7} parent=19 // pred_fallthru
        _
    $region20: #{bilstm_crf_forward.7} parent=5 // pred_fallthru
      _
    %p118 = scmp.le.s32.totalorder 1, %s8
    %p119 = scmp.lt.s32.totalorder %s8, 3
    %p120 = pnand %p118, %p119
    %p121 = pneg %p120
    // Predicated region
    $region25: #{bilstm_crf_forward.7} parent=5 // pred_check
      _
    $region26: #{bilstm_crf_forward.7} parent=5 // pred_check_branch
      %123 = sbr.rel (%p120) target = $region28
    $region27: #{bilstm_crf_forward.7} parent=5 // pred_region
      %s124 = ssub.s32 %s8, 1
      %s125 = ssub.s32 1, %s13
      %s126 = smul.u32 4, %s125
      %p127 = scmp.lt.s32.totalorder %s126, 7
      %s128 = scalar_select %p127, %s126, 7
      %s129 = smul.addr %s128, 2
      %s130 = scalar_lea.vmem %s0, %s129
      %p131 = pneg %p36
      %p132 = pneg %p33
      %p133 = pneg %p57
      %p134 = pneg %p54
      %p135 = pneg %p85
      %p136 = pneg %p82
      %s137 = ssub.s32 1, %s13
      %s138 = smul.u32 4, %s137
      %p139 = scmp.lt.s32.totalorder %s138, 7
      %s140 = scalar_select %p139, %s138, 7
      %s141 = smul.addr %s140, 2
      %s142 = scalar_lea.vmem %s2, %s141
      %s143 = ssub.s32 1, %s13
      %s144 = smul.u32 4, %s143
      %p145 = scmp.lt.s32.totalorder %s144, 7
      %s146 = scalar_select %p145, %s144, 7
      %s147 = smul.addr %s146, 2
      %s148 = scalar_lea.vmem %s0, %s147
      %s149 = ssub.s32 1, %s13
      %s150 = smul.u32 4, %s149
      %s151 = ssub.s32 1, %s13
      %s152 = smul.u32 4, %s151
      %p153 = scmp.lt.s32.totalorder %s152, 7
      %s154 = scalar_select %p153, %s152, 7
      %s155 = smul.addr %s154, 2
      %s156 = scalar_lea.vmem %s2, %s155
      %s157 = ssub.s32 1, %s13
      %s158 = smul.u32 4, %s157
      %p159 = scmp.eq.s32.totalorder %s13, 0
      // Predicated region
      $region29: #{bilstm_crf_forward.7} parent=27 // pred_check
        %p160 = pneg %p159
      $region30: #{bilstm_crf_forward.7} parent=27 // pred_check_branch
        %162 = sbr.rel (%p160) target = $region32
      $region31: #{bilstm_crf_forward.7} parent=27 // pred_region
        %v163 = vld [vmem:[%s1] sm:$0x3]
        %vm164 = vcmask 1024
        %165 = vst.msk [vmem:[#allocation2] sm:$0x3] %vm164, %v163
      $region32: #{bilstm_crf_forward.7} parent=27 // pred_fallthru
        _
      %v166 = vlaneseq
      %v167 = vand.u32 %v166, 127
      %v168 = vld [vmem:[#allocation2] sm:$0x3]
      %s169 = scalar_lea.vmem %s156, 6
      %vm170 = vcmask 1024
      %171 = vst.msk [vmem:[%s169] sm:$0x3] %vm170, %v168
      %172 = vset.pattern.permute.xlu0 0
      %173 = vperm.xlu0 %172, %v168
      %v174 = vpop.permute.xlu0 %173
      %vm175 = vcmp.eq.s32.totalorder %v167, %v174
      %s176 = scalar_lea.vmem %s148, 6
      %v177 = vld [vmem:[%s176] sm:$0x3]
      %v178 = vcvt.s32.f32 %v177
      %v179 = vsel %vm175, %v178, 0.0
      %vm180 = vcmask 1041408
      %v181 = vsel %vm180, %v179, 0.0
      %182 = vadd.xlane.f32.xlu0 %v181
      %v183 = vpop.xlane.xlu0 %182
      %v184 = vcvt.f32.s32.to.zero.pseudo %v183
      %185 = vst.msk [vmem:[#allocation2] sm:$0x3] %vm170, %v184
      %v186 = vld [vmem:[#allocation2] sm:$0x3]
      %s187 = scalar_lea.vmem %s156, 4
      %188 = vst.msk [vmem:[%s187] sm:$0x3] %vm170, %v186
      %189 = vset.pattern.permute.xlu0 0
      %190 = vperm.xlu0 %189, %v186
      %v191 = vpop.permute.xlu0 %190
      %vm192 = vcmp.eq.s32.totalorder %v167, %v191
      %s193 = scalar_lea.vmem %s148, 4
      %v194 = vld [vmem:[%s193] sm:$0x3]
      %v195 = vcvt.s32.f32 %v194
      %v196 = vsel %vm192, %v195, 0.0
      %v197 = vsel %vm180, %v196, 0.0
      %198 = vadd.xlane.f32.xlu0 %v197
      %v199 = vpop.xlane.xlu0 %198
      %v200 = vcvt.f32.s32.to.zero.pseudo %v199
      %201 = vst.msk [vmem:[#allocation2] sm:$0x3] %vm170, %v200
      %v202 = vld [vmem:[#allocation2] sm:$0x3]
      %s203 = scalar_lea.vmem %s156, 2
      %204 = vst.msk [vmem:[%s203] sm:$0x3] %vm170, %v202
      %205 = vset.pattern.permute.xlu0 0
      %206 = vperm.xlu0 %205, %v202
      %v207 = vpop.permute.xlu0 %206
      %vm208 = vcmp.eq.s32.totalorder %v167, %v207
      %s209 = scalar_lea.vmem %s148, 2
      %v210 = vld [vmem:[%s209] sm:$0x3]
      %v211 = vcvt.s32.f32 %v210
      %v212 = vsel %vm208, %v211, 0.0
      %v213 = vsel %vm180, %v212, 0.0
      %214 = vadd.xlane.f32.xlu0 %v213
      %v215 = vpop.xlane.xlu0 %214
      %v216 = vcvt.f32.s32.to.zero.pseudo %v215
      %217 = vst.msk [vmem:[#allocation2] sm:$0x3] %vm170, %v216
      %v218 = vld [vmem:[#allocation2] sm:$0x3]
      %219 = vst.msk [vmem:[%s156] sm:$0x3] %vm170, %v218
      %220 = vset.pattern.permute.xlu0 0
      %221 = vperm.xlu0 %220, %v218
      %v222 = vpop.permute.xlu0 %221
      %vm223 = vcmp.eq.s32.totalorder %v167, %v222
      %v224 = vld [vmem:[%s148] sm:$0x3]
      %v225 = vcvt.s32.f32 %v224
      %v226 = vsel %vm223, %v225, 0.0
      %v227 = vsel %vm180, %v226, 0.0
      %228 = vadd.xlane.f32.xlu0 %v227
      %v229 = vpop.xlane.xlu0 %228
      %v230 = vcvt.f32.s32.to.zero.pseudo %v229
      %231 = vst.msk [vmem:[#allocation2] sm:$0x3] %vm170, %v230
      %s232 = ssub.s32 1, %s13
      %s233 = smul.u32 4, %s232
      %p234 = scmp.lt.s32.totalorder %s233, 7
      %s235 = scalar_select %p234, %s233, 7
      %s236 = smul.addr %s235, 2
      %s237 = scalar_lea.vmem %s2, %s236
      // Predicated region
      $region33: #{bilstm_crf_forward.7} parent=27 // pred_check
        %p238 = pneg %p82
      $region34: #{bilstm_crf_forward.7} parent=27 // pred_check_branch
        %240 = sbr.rel (%p238) target = $region36
      $region35: #{bilstm_crf_forward.7} parent=27 // pred_region
        %s241 = ssub.s32 1, %s13
        %s242 = smul.u32 4, %s241
      $region36: #{bilstm_crf_forward.7} parent=27 // pred_fallthru
        _
    $region28: #{bilstm_crf_forward.7} parent=5 // pred_fallthru
      _
    %p243 = scmp.le.s32.totalorder 2, %s8
    // Predicated region
    $region37: #{bilstm_crf_forward.7} parent=5 // pred_check
      %p244 = pneg %p243
    $region38: #{bilstm_crf_forward.7} parent=5 // pred_check_branch
      %246 = sbr.rel (%p244) target = $region40
    $region39: #{bilstm_crf_forward.7} parent=5 // pred_region
      %s247 = ssub.s32 %s8, 2
      // Predicated region
      $region41: #{bilstm_crf_forward.7} parent=39 // pred_check
        %p248 = pneg %p88
      $region42: #{bilstm_crf_forward.7} parent=39 // pred_check_branch
        %250 = sbr.rel (%p248) target = $region44
      $region43: #{bilstm_crf_forward.7} parent=39 // pred_region
        %s251 = ssub.s32 1, %s14
        %s252 = smul.u32 4, %s251
        %p253 = scmp.lt.s32.totalorder %s252, 7
        %s254 = scalar_select %p253, %s252, 7
        %s255 = smul.addr %s254, 2
        %s256 = scalar_lea.vmem %s2, %s255
      $region44: #{bilstm_crf_forward.7} parent=39 // pred_fallthru
        _
    $region40: #{bilstm_crf_forward.7} parent=5 // pred_fallthru
      _
  $region6: #{bilstm_crf_forward.7} parent=0 // loop_footer
    %s12 = sadd.s32 1, %s8
  $region7: #{bilstm_crf_forward.7} parent=0 // loop_footer_branch
    %7 = sbr.rel target = $region3
  $region8: #{bilstm_crf_forward.7} parent=0 // loop_exit
    _

// kernel: bilstm_crf_forward.4
$region0: #{bilstm_crf_forward.4}
  #allocation0 [shape = 'u32[]', space=smem, size = 0x4, offset = 0x4, fixed_abs, tag = 'smem constant byte address 0x4 - core index']
  #allocation1 [shape = 'u32[144,128]{1,0:T(1,128)}', space=vmem, size = 0x12000, scoped, tag = 'internal scratch']
  %s0 = inlined_call_operand.vmem [shape: bf16[16,32], index: 0, kind: input, shape index: {}]
  %s1 = inlined_call_operand.hbm [shape: bf16[32,1024], index: 1, kind: input, shape index: {}]
  %s2 = inlined_call_operand.vmem [shape: f32[1,1024], index: 2, kind: input, shape index: {}]
  %s3 = inlined_call_operand.vmem [shape: bf16[16,1024], index: 3, kind: output, shape index: {}]
  %s4 = sld [smem:[#allocation0]]
  $region26: #{bilstm_crf_forward.4} parent=0
    _
  %s6 = ssub.s32 1, %s4
  %s7 = scalar_select 0, %s6, %s4
  $region1: #{bilstm_crf_forward.4} parent=0
    #allocation2 [shape = 'u8[65536]{0}', space=vmem, size = 0x10000, scoped, tag = 'input window, operand 1, single buffered']
    #allocation3 [shape = 's32[1]{0}', space=sflag, size = 0x4, scoped, tag = 'scoped memory for bilstm_crf_forward.4']
    %8 = vsyncpa [#allocation3], 0
    // Predicated region
    $region2: #{bilstm_crf_forward.4} parent=1 // pred_check
      _
    $region3: #{bilstm_crf_forward.4} parent=1 // pred_check_branch
      %10 = sbr.rel (0) target = $region5
    $region4: #{bilstm_crf_forward.4} parent=1 // pred_region
      _
    $region5: #{bilstm_crf_forward.4} parent=1 // pred_fallthru
      _
    // Predicated region
    $region6: #{bilstm_crf_forward.4} parent=1 // pred_check
      _
    $region7: #{bilstm_crf_forward.4} parent=1 // pred_check_branch
      %12 = sbr.rel (0) target = $region9
    $region8: #{bilstm_crf_forward.4} parent=1 // pred_region
      %s14 = ssub.s32 2048, 2048
      %15 = vsyncadd [#allocation3], %s14
      %s16 = sshll.u32 [#allocation2], 4
      %s17 = int_to_ptr.vmem [resolvable:$true] %s16
      %22 = dma.hbm_to_vmem [thread:$0]  %s1, 2048, %s17, [#allocation3], 512, 512, 32
    $region9: #{bilstm_crf_forward.4} parent=1 // pred_fallthru
      _
    // Predicated region
    $region10: #{bilstm_crf_forward.4} parent=1 // pred_check
      _
    $region11: #{bilstm_crf_forward.4} parent=1 // pred_check_branch
      %24 = sbr.rel (0) target = $region13
    $region12: #{bilstm_crf_forward.4} parent=1 // pred_region
      _
    $region13: #{bilstm_crf_forward.4} parent=1 // pred_fallthru
      _
    // Predicated region
    $region14: #{bilstm_crf_forward.4} parent=1 // pred_check
      _
    $region15: #{bilstm_crf_forward.4} parent=1 // pred_check_branch
      %26 = sbr.rel (0) target = $region17
    $region16: #{bilstm_crf_forward.4} parent=1 // pred_region
      %27 = dma.done [#allocation3], 2048
    $region17: #{bilstm_crf_forward.4} parent=1 // pred_fallthru
      _
    %v29 = vld [vmem:[%s0] sm:$0xf]
    %v30 = vld [vmem:[%s0 + $0x4] sm:$0xf]
    %v31 = vld [vmem:[#allocation2] sm:$0xff]
    %v32 = vld [vmem:[#allocation2 + $0x8] sm:$0xff]
    %v33 = vld [vmem:[#allocation2 + $0x10] sm:$0xff]
    %v34 = vld [vmem:[#allocation2 + $0x18] sm:$0xff]
    %v35 = vld [vmem:[#allocation2 + $0x20] sm:$0xff]
    %v36 = vld [vmem:[#allocation2 + $0x28] sm:$0xff]
    %v37 = vld [vmem:[#allocation2 + $0x30] sm:$0xff]
    %v38 = vld [vmem:[#allocation2 + $0x38] sm:$0xff]
    %v39 = vld [vmem:[#allocation2 + $0x40] sm:$0xff]
    %v40 = vld [vmem:[#allocation2 + $0x48] sm:$0xff]
    %v41 = vld [vmem:[#allocation2 + $0x50] sm:$0xff]
    %v42 = vld [vmem:[#allocation2 + $0x58] sm:$0xff]
    %v43 = vld [vmem:[#allocation2 + $0x60] sm:$0xff]
    %v44 = vld [vmem:[#allocation2 + $0x68] sm:$0xff]
    %v45 = vld [vmem:[#allocation2 + $0x70] sm:$0xff]
    %v46 = vld [vmem:[#allocation2 + $0x78] sm:$0xff]
    %v47 = vld [vmem:[%s2] sm:$0xff]
    %v49 = vlaneseq
    %v50 = vshrl.u32 %v49, 7
    %v51 = vsub.s32 0, %v50
    %v52 = vrot.slane %v47, %v51
    %v53 = vlaneseq
    %v54 = vshrl.u32 %v53, 7
    %v55 = vsub.s32 1, %v54
    %v56 = vrot.slane %v47, %v55
    %v57 = vlaneseq
    %v58 = vshrl.u32 %v57, 7
    %v59 = vsub.s32 2, %v58
    %v60 = vrot.slane %v47, %v59
    %v61 = vlaneseq
    %v62 = vshrl.u32 %v61, 7
    %v63 = vsub.s32 3, %v62
    %v64 = vrot.slane %v47, %v63
    %v65 = vlaneseq
    %v66 = vshrl.u32 %v65, 7
    %v67 = vsub.s32 4, %v66
    %v68 = vrot.slane %v47, %v67
    %v69 = vlaneseq
    %v70 = vshrl.u32 %v69, 7
    %v71 = vsub.s32 5, %v70
    %v72 = vrot.slane %v47, %v71
    %v73 = vlaneseq
    %v74 = vshrl.u32 %v73, 7
    %v75 = vsub.s32 6, %v74
    %v76 = vrot.slane %v47, %v75
    %v77 = vlaneseq
    %v78 = vshrl.u32 %v77, 7
    %v79 = vsub.s32 7, %v78
    %v80 = vrot.slane %v47, %v79
    %v91 = vunpack.c.l.b16 %v29
    %v92 = vunpack.c.l.b16 %v30
    %v93 = vpack.c.b16 %v92, %v91
    %v110 = vunpack.c.l.b16 %v31
    %v111 = vunpack.c.h.b16 %v31
    %v112 = vunpack.c.l.b16 %v32
    %v113 = vunpack.c.h.b16 %v32
    %v114 = vunpack.c.l.b16 %v33
    %v115 = vunpack.c.h.b16 %v33
    %v116 = vunpack.c.l.b16 %v34
    %v117 = vunpack.c.h.b16 %v34
    %v118 = vunpack.c.l.b16 %v35
    %v119 = vunpack.c.h.b16 %v35
    %v120 = vunpack.c.l.b16 %v36
    %v121 = vunpack.c.h.b16 %v36
    %v122 = vunpack.c.l.b16 %v37
    %v123 = vunpack.c.h.b16 %v37
    %v124 = vunpack.c.l.b16 %v38
    %v125 = vunpack.c.h.b16 %v38
    %v126 = vunpack.c.l.b16 %v39
    %v127 = vunpack.c.h.b16 %v39
    %v128 = vunpack.c.l.b16 %v40
    %v129 = vunpack.c.h.b16 %v40
    %v130 = vunpack.c.l.b16 %v41
    %v131 = vunpack.c.h.b16 %v41
    %v132 = vunpack.c.l.b16 %v42
    %v133 = vunpack.c.h.b16 %v42
    %v134 = vunpack.c.l.b16 %v43
    %v135 = vunpack.c.h.b16 %v43
    %v136 = vunpack.c.l.b16 %v44
    %v137 = vunpack.c.h.b16 %v44
    %v138 = vunpack.c.l.b16 %v45
    %v139 = vunpack.c.h.b16 %v45
    %v140 = vunpack.c.l.b16 %v46
    %v141 = vunpack.c.h.b16 %v46
    %v142 = vpack.c.b16 %v118, %v110
    %v143 = vpack.c.b16 %v119, %v111
    %v144 = vpack.c.b16 %v120, %v112
    %v145 = vpack.c.b16 %v121, %v113
    %v146 = vpack.c.b16 %v122, %v114
    %v147 = vpack.c.b16 %v123, %v115
    %v148 = vpack.c.b16 %v124, %v116
    %v149 = vpack.c.b16 %v125, %v117
    %v150 = vpack.c.b16 %v134, %v126
    %v151 = vpack.c.b16 %v135, %v127
    %v152 = vpack.c.b16 %v136, %v128
    %v153 = vpack.c.b16 %v137, %v129
    %v154 = vpack.c.b16 %v138, %v130
    %v155 = vpack.c.b16 %v139, %v131
    %v156 = vpack.c.b16 %v140, %v132
    %v157 = vpack.c.b16 %v141, %v133
    %vm174 = vcmask 261120
    %v176 = vsel %vm174, %v93, 0
    %178 = vmatprep.subr.bf16.mxu0 %v143
    %179 = vmatpush1.bf16.msra.mxu0 %v142
    %180 = vmatprep.subr.bf16.mxu0 %v151
    %181 = vmatpush1.bf16.msra.mxu0 %v150
    %182 = vmatprep.subr.bf16.mxu0 0
    %183 = vmatpush1.bf16.msra.mxu0 0
    %184 = vmatprep.subr.bf16.mxu0 0
    %185 = vmatpush1.bf16.msra.mxu0 0
    %186 = vmatprep.subr.bf16.mxu0 0
    %187 = vmatpush1.bf16.msra.mxu0 0
    %188 = vmatprep.subr.bf16.mxu0 0
    %189 = vmatpush1.bf16.msra.mxu0 0
    %190 = vmatprep.subr.bf16.mxu0 0
    %191 = vmatpush1.bf16.msra.mxu0 0
    %192 = vmatprep.subr.bf16.mxu0 0
    %193 = vmatpush1.bf16.msra.mxu0 0
    %194 = vmatprep.subr.bf16.mxu0 0
    %195 = vmatpush1.bf16.msra.mxu0 0
    %196 = vmatprep.subr.bf16.mxu0 0
    %197 = vmatpush1.bf16.msra.mxu0 0
    %198 = vmatprep.subr.bf16.mxu0 0
    %199 = vmatpush1.bf16.msra.mxu0 0
    %200 = vmatprep.subr.bf16.mxu0 0
    %201 = vmatpush1.bf16.msra.mxu0 0
    %202 = vmatprep.subr.bf16.mxu0 0
    %203 = vmatpush1.bf16.msra.mxu0 0
    %204 = vmatprep.subr.bf16.mxu0 0
    %205 = vmatpush1.bf16.msra.mxu0 0
    %206 = vmatprep.subr.bf16.mxu0 0
    %207 = vmatpush1.bf16.msra.mxu0 0
    %208 = vmatprep.subr.bf16.mxu0 0
    %209 = vmatpush1.bf16.msra.mxu0 0
    %210 = vmatprep.mubr.bf16.mxu0 0
    %211 = vmatmul.mubr.bf16.gmra.mrb[0].mxu0 %v176
    %v212 = vpop.f32.mrb[0].mxu0
    %v213 = vadd.f32 %v52, %v212
    %v214 = vpop.f32.mrb[0].mxu0
    %v215 = vadd.f32 %v56, %v214
    %v216 = vpop.f32.mrb[0].mxu0
    %v217 = vadd.f32 %v52, %v216
    %v218 = vpop.f32.mrb[0].mxu0
    %v219 = vadd.f32 %v56, %v218
    %220 = vdwg.mxu0
    %221 = vmatprep.subr.bf16.mxu0 %v145
    %222 = vmatpush1.bf16.msra.mxu0 %v144
    %223 = vmatprep.subr.bf16.mxu0 %v153
    %224 = vmatpush1.bf16.msra.mxu0 %v152
    %225 = vmatprep.subr.bf16.mxu0 0
    %226 = vmatpush1.bf16.msra.mxu0 0
    %227 = vmatprep.subr.bf16.mxu0 0
    %228 = vmatpush1.bf16.msra.mxu0 0
    %229 = vmatprep.subr.bf16.mxu0 0
    %230 = vmatpush1.bf16.msra.mxu0 0
    %231 = vmatprep.subr.bf16.mxu0 0
    %232 = vmatpush1.bf16.msra.mxu0 0
    %233 = vmatprep.subr.bf16.mxu0 0
    %234 = vmatpush1.bf16.msra.mxu0 0
    %235 = vmatprep.subr.bf16.mxu0 0
    %236 = vmatpush1.bf16.msra.mxu0 0
    %237 = vmatprep.subr.bf16.mxu0 0
    %238 = vmatpush1.bf16.msra.mxu0 0
    %239 = vmatprep.subr.bf16.mxu0 0
    %240 = vmatpush1.bf16.msra.mxu0 0
    %241 = vmatprep.subr.bf16.mxu0 0
    %242 = vmatpush1.bf16.msra.mxu0 0
    %243 = vmatprep.subr.bf16.mxu0 0
    %244 = vmatpush1.bf16.msra.mxu0 0
    %245 = vmatprep.subr.bf16.mxu0 0
    %246 = vmatpush1.bf16.msra.mxu0 0
    %247 = vmatprep.subr.bf16.mxu0 0
    %248 = vmatpush1.bf16.msra.mxu0 0
    %249 = vmatprep.subr.bf16.mxu0 0
    %250 = vmatpush1.bf16.msra.mxu0 0
    %251 = vmatprep.subr.bf16.mxu0 0
    %252 = vmatpush1.bf16.msra.mxu0 0
    %253 = vmatprep.mubr.bf16.mxu0 0
    %254 = vmatmul.mubr.bf16.gmra.mrb[0].mxu0 %v176
    %v255 = vpop.f32.mrb[0].mxu0
    %v256 = vadd.f32 %v60, %v255
    %v257 = vpop.f32.mrb[0].mxu0
    %v258 = vadd.f32 %v64, %v257
    %v259 = vpop.f32.mrb[0].mxu0
    %v260 = vadd.f32 %v60, %v259
    %v261 = vpop.f32.mrb[0].mxu0
    %v262 = vadd.f32 %v64, %v261
    %263 = vdwg.mxu0
    %264 = vmatprep.subr.bf16.mxu0 %v147
    %265 = vmatpush1.bf16.msra.mxu0 %v146
    %266 = vmatprep.subr.bf16.mxu0 %v155
    %267 = vmatpush1.bf16.msra.mxu0 %v154
    %268 = vmatprep.subr.bf16.mxu0 0
    %269 = vmatpush1.bf16.msra.mxu0 0
    %270 = vmatprep.subr.bf16.mxu0 0
    %271 = vmatpush1.bf16.msra.mxu0 0
    %272 = vmatprep.subr.bf16.mxu0 0
    %273 = vmatpush1.bf16.msra.mxu0 0
    %274 = vmatprep.subr.bf16.mxu0 0
    %275 = vmatpush1.bf16.msra.mxu0 0
    %276 = vmatprep.subr.bf16.mxu0 0
    %277 = vmatpush1.bf16.msra.mxu0 0
    %278 = vmatprep.subr.bf16.mxu0 0
    %279 = vmatpush1.bf16.msra.mxu0 0
    %280 = vmatprep.subr.bf16.mxu0 0
    %281 = vmatpush1.bf16.msra.mxu0 0
    %282 = vmatprep.subr.bf16.mxu0 0
    %283 = vmatpush1.bf16.msra.mxu0 0
    %284 = vmatprep.subr.bf16.mxu0 0
    %285 = vmatpush1.bf16.msra.mxu0 0
    %286 = vmatprep.subr.bf16.mxu0 0
    %287 = vmatpush1.bf16.msra.mxu0 0
    %288 = vmatprep.subr.bf16.mxu0 0
    %289 = vmatpush1.bf16.msra.mxu0 0
    %290 = vmatprep.subr.bf16.mxu0 0
    %291 = vmatpush1.bf16.msra.mxu0 0
    %292 = vmatprep.subr.bf16.mxu0 0
    %293 = vmatpush1.bf16.msra.mxu0 0
    %294 = vmatprep.subr.bf16.mxu0 0
    %295 = vmatpush1.bf16.msra.mxu0 0
    %296 = vmatprep.mubr.bf16.mxu0 0
    %297 = vmatmul.mubr.bf16.gmra.mrb[0].mxu0 %v176
    %v298 = vpop.f32.mrb[0].mxu0
    %v299 = vadd.f32 %v68, %v298
    %v300 = vpop.f32.mrb[0].mxu0
    %v301 = vadd.f32 %v72, %v300
    %v302 = vpop.f32.mrb[0].mxu0
    %v303 = vadd.f32 %v68, %v302
    %v304 = vpop.f32.mrb[0].mxu0
    %v305 = vadd.f32 %v72, %v304
    %306 = vdwg.mxu0
    %307 = vmatprep.subr.bf16.mxu0 %v149
    %308 = vmatpush1.bf16.msra.mxu0 %v148
    %309 = vmatprep.subr.bf16.mxu0 %v157
    %310 = vmatpush1.bf16.msra.mxu0 %v156
    %311 = vmatprep.subr.bf16.mxu0 0
    %312 = vmatpush1.bf16.msra.mxu0 0
    %313 = vmatprep.subr.bf16.mxu0 0
    %314 = vmatpush1.bf16.msra.mxu0 0
    %315 = vmatprep.subr.bf16.mxu0 0
    %316 = vmatpush1.bf16.msra.mxu0 0
    %317 = vmatprep.subr.bf16.mxu0 0
    %318 = vmatpush1.bf16.msra.mxu0 0
    %319 = vmatprep.subr.bf16.mxu0 0
    %320 = vmatpush1.bf16.msra.mxu0 0
    %321 = vmatprep.subr.bf16.mxu0 0
    %322 = vmatpush1.bf16.msra.mxu0 0
    %323 = vmatprep.subr.bf16.mxu0 0
    %324 = vmatpush1.bf16.msra.mxu0 0
    %325 = vmatprep.subr.bf16.mxu0 0
    %326 = vmatpush1.bf16.msra.mxu0 0
    %327 = vmatprep.subr.bf16.mxu0 0
    %328 = vmatpush1.bf16.msra.mxu0 0
    %329 = vmatprep.subr.bf16.mxu0 0
    %330 = vmatpush1.bf16.msra.mxu0 0
    %331 = vmatprep.subr.bf16.mxu0 0
    %332 = vmatpush1.bf16.msra.mxu0 0
    %333 = vmatprep.subr.bf16.mxu0 0
    %334 = vmatpush1.bf16.msra.mxu0 0
    %335 = vmatprep.subr.bf16.mxu0 0
    %336 = vmatpush1.bf16.msra.mxu0 0
    %337 = vmatprep.subr.bf16.mxu0 0
    %338 = vmatpush1.bf16.msra.mxu0 0
    %339 = vmatprep.mubr.bf16.mxu0 0
    %340 = vmatmul.mubr.bf16.gmra.mrb[0].mxu0 %v176
    %v341 = vpop.f32.mrb[0].mxu0
    %v342 = vadd.f32 %v76, %v341
    %v343 = vpop.f32.mrb[0].mxu0
    %v344 = vadd.f32 %v80, %v343
    %v345 = vpop.f32.mrb[0].mxu0
    %v346 = vadd.f32 %v76, %v345
    %v347 = vpop.f32.mrb[0].mxu0
    %v348 = vadd.f32 %v80, %v347
    %349 = vdwg.mxu0
    %v350 = vpack.c.bf16 %v217, %v213
    %v351 = vpack.c.bf16 %v219, %v215
    %v352 = vpack.c.bf16 %v260, %v256
    %v353 = vpack.c.bf16 %v262, %v258
    %v354 = vpack.c.bf16 %v303, %v299
    %v355 = vpack.c.bf16 %v305, %v301
    %v356 = vpack.c.bf16 %v346, %v342
    %v357 = vpack.c.bf16 %v348, %v344
    %v366 = vunpack.c.l.b16 %v350
    %v367 = vunpack.c.l.b16 %v351
    %v368 = vunpack.c.l.b16 %v352
    %v369 = vunpack.c.l.b16 %v353
    %v370 = vunpack.c.l.b16 %v354
    %v371 = vunpack.c.l.b16 %v355
    %v372 = vunpack.c.l.b16 %v356
    %v373 = vunpack.c.l.b16 %v357
    %v374 = vunpack.c.h.b16 %v350
    %v375 = vunpack.c.h.b16 %v351
    %v376 = vunpack.c.h.b16 %v352
    %v377 = vunpack.c.h.b16 %v353
    %v378 = vunpack.c.h.b16 %v354
    %v379 = vunpack.c.h.b16 %v355
    %v380 = vunpack.c.h.b16 %v356
    %v381 = vunpack.c.h.b16 %v357
    %v382 = vpack.c.b16 %v367, %v366
    %v383 = vpack.c.b16 %v369, %v368
    %v384 = vpack.c.b16 %v371, %v370
    %v385 = vpack.c.b16 %v373, %v372
    %v386 = vpack.c.b16 %v375, %v374
    %v387 = vpack.c.b16 %v377, %v376
    %v388 = vpack.c.b16 %v379, %v378
    %v389 = vpack.c.b16 %v381, %v380
    %398 = vst [vmem:[%s3] sm:$0xff] %v382
    %399 = vst [vmem:[%s3 + $0x8] sm:$0xff] %v383
    %400 = vst [vmem:[%s3 + $0x10] sm:$0xff] %v384
    %401 = vst [vmem:[%s3 + $0x18] sm:$0xff] %v385
    %402 = vst [vmem:[%s3 + $0x20] sm:$0xff] %v386
    %403 = vst [vmem:[%s3 + $0x28] sm:$0xff] %v387
    %404 = vst [vmem:[%s3 + $0x30] sm:$0xff] %v388
    %405 = vst [vmem:[%s3 + $0x38] sm:$0xff] %v389
    // Predicated region
    $region18: #{bilstm_crf_forward.4} parent=1 // pred_check
      _
    $region19: #{bilstm_crf_forward.4} parent=1 // pred_check_branch
      %407 = sbr.rel (0) target = $region21
    $region20: #{bilstm_crf_forward.4} parent=1 // pred_region
      _
    $region21: #{bilstm_crf_forward.4} parent=1 // pred_fallthru
      _
    // Predicated region
    $region22: #{bilstm_crf_forward.4} parent=1 // pred_check
      _
    $region23: #{bilstm_crf_forward.4} parent=1 // pred_check_branch
      %409 = sbr.rel (0) target = $region25
    $region24: #{bilstm_crf_forward.4} parent=1 // pred_region
      _
    $region25: #{bilstm_crf_forward.4} parent=1 // pred_fallthru
      _
    %410 = vsyncpa [#allocation3], 1

// kernel: bilstm_crf_forward.6
$region0: #{bilstm_crf_forward.6}
  #allocation0 [shape = 'u32[]', space=smem, size = 0x4, offset = 0x4, fixed_abs, tag = 'smem constant byte address 0x4 - core index']
  #allocation1 [shape = 'u32[144,128]{1,0:T(1,128)}', space=vmem, size = 0x12000, scoped, tag = 'internal scratch']
  #allocation2 [shape = 'f32[2,128]{1,0:T(2,128)}', space=vmem, size = 0x400, scoped, tag = 'scratch operand']
  %s0 = inlined_call_operand.vmem [shape: f32[8,2,128], index: 0, kind: input, shape index: {}]
  %s1 = inlined_call_operand.vmem [shape: f32[8,2,128], index: 1, kind: input, shape index: {}]
  %s2 = inlined_call_operand.vmem [shape: f32[8,128], index: 2, kind: input, shape index: {}]
  %s3 = inlined_call_operand.vmem [shape: s32[2,1], index: 3, kind: input, shape index: {}]
  %s4 = inlined_call_operand.vmem [shape: s32[8,2,128], index: 4, kind: output, shape index: {0}]
  %s5 = inlined_call_operand.vmem [shape: f32[2,128], index: 5, kind: output, shape index: {1}]
  %6 = xla_tuple %s4, %s5
  %s7 = sld [smem:[#allocation0]]
  $region65: #{bilstm_crf_forward.6} parent=0
    _
  %s9 = ssub.s32 1, %s7
  %s10 = scalar_select 0, %s9, %s7
  loop: start=0, step=1, limit=4
  $region2: #{bilstm_crf_forward.6} parent=0 // loop_pre_header
    _
  $region3: #{bilstm_crf_forward.6} parent=0 // loop_header
    %s12 = sphi 0, %s16
    %p13 = scmp.ge.s32.totalorder %s12, 4
    %s19 = sphi 0, %s31
    %s20 = sphi 0, %s27
    %s21 = sphi 0, %s19
    %s22 = sphi 0, %s20
    %s23 = sphi 0, %s21
    %s24 = sphi 0, %s22
    %s36 = sphi 0, %s38
    %s39 = sphi 0, %s36
    %s40 = sphi 0, %s39
    %s56 = sphi 0, %s40
    %s64 = sphi 0, %s66
    %s67 = sphi 0, %s64
    %s68 = sphi 0, %s67
    %s84 = sphi 0, %s68
    %s88 = sphi 0, %s88
    %s90 = sphi 0, %s88
    %s91 = sphi 0, %s90
    %s105 = sphi 0, %s91
    %s111 = sphi 0, %s113
    %s114 = sphi 0, %s111
    %s115 = sphi 0, %s114
    %s131 = sphi 0, %s115
    %s139 = sphi 0, %s141
    %s142 = sphi 0, %s139
    %s143 = sphi 0, %s142
    %s159 = sphi 0, %s143
    %s165 = sphi 0, %s167
    %s168 = sphi 0, %s165
    %s169 = sphi 0, %s168
    %s185 = sphi 0, %s169
  $region4: #{bilstm_crf_forward.6} parent=0 // loop_header_branch
    %15 = sbr.rel (%p13) target = $region8
  $region5: #{bilstm_crf_forward.6} parent=0 // loop_body
    %s17 = ssub.s32 %s12, 1
    %s18 = ssub.s32 %s12, 2
    %s25 = sadd.s32 1, %s20
    %p26 = scmp.ge.s32.totalorder %s25, 2
    %s27 = scalar_select %p26, 0, %s25
    %s28 = sadd.s32 1, %s19
    %s29 = scalar_select %p26, %s28, %s19
    %p30 = scmp.ge.s32.totalorder %s29, 1
    %s31 = scalar_select %p30, 0, %s29
    %s32 = ssub.s32 %s20, %s27
    %s33 = ssub.s32 %s19, %s31
    %s34 = sor.u32 %s32, %s33
    %p35 = scmp.eq.s32.totalorder %s34, 0
    %s37 = sadd.s32 %s36, 1
    %s38 = scalar_select %p35, %s36, %s37
    %p41 = pneg %p35
    %p42 = scmp.eq.s32.totalorder %s12, 1
    %p43 = por %p41, %p42
    %p44 = scmp.ne.s32.totalorder %s36, %s39
    %p45 = scmp.eq.s32.totalorder %s12, 0
    %p46 = por %p44, %p45
    %p47 = scmp.ne.s32.totalorder %s36, %s39
    %p48 = scmp.eq.s32.totalorder %s17, 1
    %p49 = por %p47, %p48
    %p50 = scmp.ne.s32.totalorder %s39, %s40
    %p51 = scmp.eq.s32.totalorder %s17, 0
    %p52 = por %p50, %p51
    %p53 = scmp.ne.s32.totalorder %s39, %s40
    %p54 = scmp.eq.s32.totalorder %s18, 1
    %p55 = por %p53, %p54
    %p57 = scmp.ne.s32.totalorder %s40, %s56
    %p58 = scmp.eq.s32.totalorder %s18, 0
    %p59 = por %p57, %p58
    %s60 = ssub.s32 %s20, %s27
    %s61 = ssub.s32 %s19, %s31
    %s62 = sor.u32 %s60, %s61
    %p63 = scmp.eq.s32.totalorder %s62, 0
    %s65 = sadd.s32 %s64, 1
    %s66 = scalar_select %p63, %s64, %s65
    %p69 = pneg %p63
    %p70 = scmp.eq.s32.totalorder %s12, 1
    %p71 = por %p69, %p70
    %p72 = scmp.ne.s32.totalorder %s64, %s67
    %p73 = scmp.eq.s32.totalorder %s12, 0
    %p74 = por %p72, %p73
    %p75 = scmp.ne.s32.totalorder %s64, %s67
    %p76 = scmp.eq.s32.totalorder %s17, 1
    %p77 = por %p75, %p76
    %p78 = scmp.ne.s32.totalorder %s67, %s68
    %p79 = scmp.eq.s32.totalorder %s17, 0
    %p80 = por %p78, %p79
    %p81 = scmp.ne.s32.totalorder %s67, %s68
    %p82 = scmp.eq.s32.totalorder %s18, 1
    %p83 = por %p81, %p82
    %p85 = scmp.ne.s32.totalorder %s68, %s84
    %p86 = scmp.eq.s32.totalorder %s18, 0
    %p87 = por %p85, %p86
    %s89 = sadd.s32 %s88, 1
    %p92 = scmp.eq.s32.totalorder %s12, 1
    %p93 = scmp.ne.s32.totalorder %s88, %s90
    %p94 = scmp.eq.s32.totalorder %s12, 0
    %p95 = por %p93, %p94
    %p96 = scmp.ne.s32.totalorder %s88, %s90
    %p97 = scmp.eq.s32.totalorder %s17, 1
    %p98 = por %p96, %p97
    %p99 = scmp.ne.s32.totalorder %s90, %s91
    %p100 = scmp.eq.s32.totalorder %s17, 0
    %p101 = por %p99, %p100
    %p102 = scmp.ne.s32.totalorder %s90, %s91
    %p103 = scmp.eq.s32.totalorder %s18, 1
    %p104 = por %p102, %p103
    %p106 = scmp.ne.s32.totalorder %s91, %s105
    %p107 = scmp.eq.s32.totalorder %s18, 0
    %p108 = por %p106, %p107
    %s109 = ssub.s32 %s19, %s31
    %p110 = scmp.eq.s32.totalorder %s109, 0
    %s112 = sadd.s32 %s111, 1
    %s113 = scalar_select %p110, %s111, %s112
    %p116 = pneg %p110
    %p117 = scmp.eq.s32.totalorder %s12, 1
    %p118 = por %p116, %p117
    %p119 = scmp.ne.s32.totalorder %s111, %s114
    %p120 = scmp.eq.s32.totalorder %s12, 0
    %p121 = por %p119, %p120
    %p122 = scmp.ne.s32.totalorder %s111, %s114
    %p123 = scmp.eq.s32.totalorder %s17, 1
    %p124 = por %p122, %p123
    %p125 = scmp.ne.s32.totalorder %s114, %s115
    %p126 = scmp.eq.s32.totalorder %s17, 0
    %p127 = por %p125, %p126
    %p128 = scmp.ne.s32.totalorder %s114, %s115
    %p129 = scmp.eq.s32.totalorder %s18, 1
    %p130 = por %p128, %p129
    %p132 = scmp.ne.s32.totalorder %s115, %s131
    %p133 = scmp.eq.s32.totalorder %s18, 0
    %p134 = por %p132, %p133
    %s135 = ssub.s32 %s20, %s27
    %s136 = ssub.s32 %s19, %s31
    %s137 = sor.u32 %s135, %s136
    %p138 = scmp.eq.s32.totalorder %s137, 0
    %s140 = sadd.s32 %s139, 1
    %s141 = scalar_select %p138, %s139, %s140
    %p144 = pneg %p138
    %p145 = scmp.eq.s32.totalorder %s12, 1
    %p146 = por %p144, %p145
    %p147 = scmp.ne.s32.totalorder %s139, %s142
    %p148 = scmp.eq.s32.totalorder %s12, 0
    %p149 = por %p147, %p148
    %p150 = scmp.ne.s32.totalorder %s139, %s142
    %p151 = scmp.eq.s32.totalorder %s17, 1
    %p152 = por %p150, %p151
    %p153 = scmp.ne.s32.totalorder %s142, %s143
    %p154 = scmp.eq.s32.totalorder %s17, 0
    %p155 = por %p153, %p154
    %p156 = scmp.ne.s32.totalorder %s142, %s143
    %p157 = scmp.eq.s32.totalorder %s18, 1
    %p158 = por %p156, %p157
    %p160 = scmp.ne.s32.totalorder %s143, %s159
    %p161 = scmp.eq.s32.totalorder %s18, 0
    %p162 = por %p160, %p161
    %s163 = ssub.s32 %s19, %s31
    %p164 = scmp.eq.s32.totalorder %s163, 0
    %s166 = sadd.s32 %s165, 1
    %s167 = scalar_select %p164, %s165, %s166
    %p170 = pneg %p164
    %p171 = scmp.eq.s32.totalorder %s12, 1
    %p172 = por %p170, %p171
    %p173 = scmp.ne.s32.totalorder %s165, %s168
    %p174 = scmp.eq.s32.totalorder %s12, 0
    %p175 = por %p173, %p174
    %p176 = scmp.ne.s32.totalorder %s165, %s168
    %p177 = scmp.eq.s32.totalorder %s17, 1
    %p178 = por %p176, %p177
    %p179 = scmp.ne.s32.totalorder %s168, %s169
    %p180 = scmp.eq.s32.totalorder %s17, 0
    %p181 = por %p179, %p180
    %p182 = scmp.ne.s32.totalorder %s168, %s169
    %p183 = scmp.eq.s32.totalorder %s18, 1
    %p184 = por %p182, %p183
    %p186 = scmp.ne.s32.totalorder %s169, %s185
    %p187 = scmp.eq.s32.totalorder %s18, 0
    %p188 = por %p186, %p187
    %p189 = scmp.le.s32.totalorder 1, %s12
    %p190 = scmp.lt.s32.totalorder %s12, 3
    %p191 = pnand %p189, %p190
    %p192 = pneg %p191
    // Predicated region
    $region9: #{bilstm_crf_forward.6} parent=5 // pred_check
      _
    $region10: #{bilstm_crf_forward.6} parent=5 // pred_check_branch
      %194 = sbr.rel (%p191) target = $region12
    $region11: #{bilstm_crf_forward.6} parent=5 // pred_region
      %s195 = ssub.s32 %s12, 1
      // Predicated region
      $region13: #{bilstm_crf_forward.6} parent=11 // pred_check
        %p196 = pneg %p101
      $region14: #{bilstm_crf_forward.6} parent=11 // pred_check_branch
        %198 = sbr.rel (%p196) target = $region16
      $region15: #{bilstm_crf_forward.6} parent=11 // pred_region
        _
      $region16: #{bilstm_crf_forward.6} parent=11 // pred_fallthru
        _
      // Predicated region
      $region17: #{bilstm_crf_forward.6} parent=11 // pred_check
        %p199 = pneg %p127
      $region18: #{bilstm_crf_forward.6} parent=11 // pred_check_branch
        %201 = sbr.rel (%p199) target = $region20
      $region19: #{bilstm_crf_forward.6} parent=11 // pred_region
        %p202 = scmp.lt.s32.totalorder %s21, 0
        %s203 = scalar_select %p202, %s21, 0
        %s204 = smul.addr %s203, 2
        %s205 = scalar_lea.vmem %s3, %s204
      $region20: #{bilstm_crf_forward.6} parent=11 // pred_fallthru
        _
    $region12: #{bilstm_crf_forward.6} parent=5 // pred_fallthru
      _
    %p206 = scmp.lt.s32.totalorder %s12, 2
    // Predicated region
    $region21: #{bilstm_crf_forward.6} parent=5 // pred_check
      %p207 = pneg %p206
    $region22: #{bilstm_crf_forward.6} parent=5 // pred_check_branch
      %209 = sbr.rel (%p207) target = $region24
    $region23: #{bilstm_crf_forward.6} parent=5 // pred_region
      // Predicated region
      $region25: #{bilstm_crf_forward.6} parent=23 // pred_check
        %p210 = pneg %p46
      $region26: #{bilstm_crf_forward.6} parent=23 // pred_check_branch
        %212 = sbr.rel (%p210) target = $region28
      $region27: #{bilstm_crf_forward.6} parent=23 // pred_region
        %s213 = smul.u32 4, %s20
        %p214 = scmp.lt.s32.totalorder %s213, 7
        %s215 = scalar_select %p214, %s213, 7
        %p216 = scmp.lt.s32.totalorder %s19, 0
        %s217 = scalar_select %p216, %s19, 0
        %s218 = sadd.s32 %s217, %s215
        %s219 = smul.addr %s218, 2
        %s220 = scalar_lea.vmem %s0, %s219
        %s221 = smul.u32 4, %s20
      $region28: #{bilstm_crf_forward.6} parent=23 // pred_fallthru
        _
      // Predicated region
      $region29: #{bilstm_crf_forward.6} parent=23 // pred_check
        %p222 = pneg %p74
      $region30: #{bilstm_crf_forward.6} parent=23 // pred_check_branch
        %224 = sbr.rel (%p222) target = $region32
      $region31: #{bilstm_crf_forward.6} parent=23 // pred_region
        %s225 = smul.u32 4, %s20
        %p226 = scmp.lt.s32.totalorder %s225, 7
        %s227 = scalar_select %p226, %s225, 7
        %p228 = scmp.lt.s32.totalorder %s19, 0
        %s229 = scalar_select %p228, %s19, 0
        %s230 = sadd.s32 %s229, %s227
        %s231 = smul.addr %s230, 2
        %s232 = scalar_lea.vmem %s1, %s231
        %s233 = smul.u32 4, %s20
      $region32: #{bilstm_crf_forward.6} parent=23 // pred_fallthru
        _
    $region24: #{bilstm_crf_forward.6} parent=5 // pred_fallthru
      _
    %p234 = scmp.le.s32.totalorder 1, %s12
    %p235 = scmp.lt.s32.totalorder %s12, 3
    %p236 = pnand %p234, %p235
    %p237 = pneg %p236
    // Predicated region
    $region33: #{bilstm_crf_forward.6} parent=5 // pred_check
      _
    $region34: #{bilstm_crf_forward.6} parent=5 // pred_check_branch
      %239 = sbr.rel (%p236) target = $region36
    $region35: #{bilstm_crf_forward.6} parent=5 // pred_region
      %s240 = ssub.s32 %s12, 1
      %s241 = smul.u32 4, %s22
      %p242 = scmp.lt.s32.totalorder %s241, 7
      %s243 = scalar_select %p242, %s241, 7
      %p244 = scmp.lt.s32.totalorder %s21, 0
      %s245 = scalar_select %p244, %s21, 0
      %s246 = sadd.s32 %s245, %s243
      %s247 = smul.addr %s246, 2
      %s248 = scalar_lea.vmem %s0, %s247
      %p249 = pneg %p52
      %p250 = pneg %p49
      %s251 = smul.u32 4, %s22
      %p252 = scmp.lt.s32.totalorder %s251, 7
      %s253 = scalar_select %p252, %s251, 7
      %p254 = scmp.lt.s32.totalorder %s21, 0
      %s255 = scalar_select %p254, %s21, 0
      %s256 = sadd.s32 %s255, %s253
      %s257 = smul.addr %s256, 2
      %s258 = scalar_lea.vmem %s1, %s257
      %p259 = pneg %p80
      %p260 = pneg %p77
      %p261 = pneg %p101
      %p262 = pneg %p98
      %p263 = scmp.lt.s32.totalorder %s21, 0
      %s264 = scalar_select %p263, %s21, 0
      %s265 = smul.addr %s264, 2
      %s266 = scalar_lea.vmem %s3, %s265
      %p267 = pneg %p127
      %p268 = pneg %p124
      %p269 = pneg %p155
      %p270 = pneg %p152
      %s271 = smul.u32 4, %s22
      %p272 = scmp.lt.s32.totalorder %s271, 7
      %s273 = scalar_select %p272, %s271, 7
      %p274 = scmp.lt.s32.totalorder %s21, 0
      %s275 = scalar_select %p274, %s21, 0
      %s276 = sadd.s32 %s275, %s273
      %s277 = smul.addr %s276, 2
      %s278 = scalar_lea.vmem %s4, %s277
      %p279 = pneg %p181
      %p280 = pneg %p178
      %p281 = scmp.lt.s32.totalorder %s21, 0
      %s282 = scalar_select %p281, %s21, 0
      %s283 = smul.addr %s282, 2
      %s284 = scalar_lea.vmem %s5, %s283
      %s285 = smul.u32 4, %s22
      %p286 = scmp.lt.s32.totalorder %s285, 7
      %s287 = scalar_select %p286, %s285, 7
      %p288 = scmp.lt.s32.totalorder %s21, 0
      %s289 = scalar_select %p288, %s21, 0
      %s290 = sadd.s32 %s289, %s287
      %s291 = smul.addr %s290, 2
      %s292 = scalar_lea.vmem %s0, %s291
      %s293 = smul.u32 4, %s22
      %s294 = smul.u32 4, %s22
      %p295 = scmp.lt.s32.totalorder %s294, 7
      %s296 = scalar_select %p295, %s294, 7
      %p297 = scmp.lt.s32.totalorder %s21, 0
      %s298 = scalar_select %p297, %s21, 0
      %s299 = sadd.s32 %s298, %s296
      %s300 = smul.addr %s299, 2
      %s301 = scalar_lea.vmem %s1, %s300
      %s302 = smul.u32 4, %s22
      %p303 = scmp.lt.s32.totalorder %s21, 0
      %s304 = scalar_select %p303, %s21, 0
      %s305 = smul.addr %s304, 2
      %s306 = scalar_lea.vmem %s3, %s305
      %s307 = smul.u32 4, %s22
      %p308 = scmp.lt.s32.totalorder %s307, 7
      %s309 = scalar_select %p308, %s307, 7
      %p310 = scmp.lt.s32.totalorder %s21, 0
      %s311 = scalar_select %p310, %s21, 0
      %s312 = sadd.s32 %s311, %s309
      %s313 = smul.addr %s312, 2
      %s314 = scalar_lea.vmem %s4, %s313
      %s315 = smul.u32 4, %s22
      %p316 = scmp.lt.s32.totalorder %s21, 0
      %s317 = scalar_select %p316, %s21, 0
      %s318 = smul.addr %s317, 2
      %s319 = scalar_lea.vmem %s5, %s318
      %v320 = vld [vmem:[%s2] sm:$0xff]
      %v321 = vld [vmem:[%s306] sm:$0x3]
      %v322 = vlaneseq
      %v323 = vand.u32 %v322, 127
      %s324 = smul.u32 %s22, 4
      %p325 = scmp.eq.s32.totalorder %s22, 0
      // Predicated region
      $region37: #{bilstm_crf_forward.6} parent=35 // pred_check
        %p326 = pneg %p325
      $region38: #{bilstm_crf_forward.6} parent=35 // pred_check_branch
        %328 = sbr.rel (%p326) target = $region40
      $region39: #{bilstm_crf_forward.6} parent=35 // pred_region
        %v329 = vld [vmem:[%s292] sm:$0x3]
        %v330 = vld [vmem:[%s301] sm:$0x3]
        %v331 = vadd.f32 %v329, %v330
        %v332 = vlaneseq
        %v333 = vshrl.u32 %v332, 7
        %v334 = vsub.s32 6, %v333
        %v335 = vrot.slane %v320, %v334
        %v336 = vadd.f32 %v331, %v335
        %337 = vst [vmem:[#allocation2] sm:$0x3] %v336
        %338 = vst [vmem:[%s314] sm:$0x3] 0
      $region40: #{bilstm_crf_forward.6} parent=35 // pred_fallthru
        _
      %p339 = scmp.gt.s32.totalorder %s22, 0
      // Predicated region
      $region41: #{bilstm_crf_forward.6} parent=35 // pred_check
        %p340 = pneg %p339
      $region42: #{bilstm_crf_forward.6} parent=35 // pred_check_branch
        %342 = sbr.rel (%p340) target = $region44
      $region43: #{bilstm_crf_forward.6} parent=35 // pred_region
        %v343 = vld [vmem:[%s292] sm:$0x3]
        %v344 = vld [vmem:[%s301] sm:$0x3]
        %v345 = vadd.f32 %v343, %v344
        %v346 = vld [vmem:[#allocation2] sm:$0x3]
        %348 = vset.pattern.permute.xlu0 0
        %349 = vperm.xlu0 %348, %v346
        %v350 = vpop.permute.xlu0 %349
        %v352 = vlaneseq
        %v353 = vshrl.u32 %v352, 7
        %v354 = vsub.s32 0, %v353
        %v355 = vrot.slane %v320, %v354
        %v356 = vadd.f32 %v350, %v355
        %357 = vset.pattern.permute.xlu0 1
        %358 = vperm.xlu0 %357, %v346
        %v359 = vpop.permute.xlu0 %358
        %v361 = vlaneseq
        %v362 = vshrl.u32 %v361, 7
        %v363 = vsub.s32 1, %v362
        %v364 = vrot.slane %v320, %v363
        %v365 = vadd.f32 %v359, %v364
        %vm366 = vcmp.gt.f32.partialorder %v365, %v356
        %v367 = vsel %vm366, %v365, %v356
        %v368 = vsel %vm366, 1, 0
        %369 = vset.pattern.permute.xlu0 2
        %370 = vperm.xlu0 %369, %v346
        %v371 = vpop.permute.xlu0 %370
        %v373 = vlaneseq
        %v374 = vshrl.u32 %v373, 7
        %v375 = vsub.s32 2, %v374
        %v376 = vrot.slane %v320, %v375
        %v377 = vadd.f32 %v371, %v376
        %vm378 = vcmp.gt.f32.partialorder %v377, %v367
        %v379 = vsel %vm378, %v377, %v367
        %v380 = vsel %vm378, 2, %v368
        %381 = vset.pattern.permute.xlu0 3
        %382 = vperm.xlu0 %381, %v346
        %v383 = vpop.permute.xlu0 %382
        %v385 = vlaneseq
        %v386 = vshrl.u32 %v385, 7
        %v387 = vsub.s32 3, %v386
        %v388 = vrot.slane %v320, %v387
        %v389 = vadd.f32 %v383, %v388
        %vm390 = vcmp.gt.f32.partialorder %v389, %v379
        %v391 = vsel %vm390, %v389, %v379
        %v392 = vsel %vm390, 3, %v380
        %393 = vset.pattern.permute.xlu0 4
        %394 = vperm.xlu0 %393, %v346
        %v395 = vpop.permute.xlu0 %394
        %v397 = vlaneseq
        %v398 = vshrl.u32 %v397, 7
        %v399 = vsub.s32 4, %v398
        %v400 = vrot.slane %v320, %v399
        %v401 = vadd.f32 %v395, %v400
        %vm402 = vcmp.gt.f32.partialorder %v401, %v391
        %v403 = vsel %vm402, %v401, %v391
        %v404 = vsel %vm402, 4, %v392
        %405 = vset.pattern.permute.xlu0 5
        %406 = vperm.xlu0 %405, %v346
        %v407 = vpop.permute.xlu0 %406
        %v409 = vlaneseq
        %v410 = vshrl.u32 %v409, 7
        %v411 = vsub.s32 5, %v410
        %v412 = vrot.slane %v320, %v411
        %v413 = vadd.f32 %v407, %v412
        %vm414 = vcmp.gt.f32.partialorder %v413, %v403
        %v415 = vsel %vm414, %v413, %v403
        %v416 = vsel %vm414, 5, %v404
        %417 = vset.pattern.permute.xlu0 6
        %418 = vperm.xlu0 %417, %v346
        %v419 = vpop.permute.xlu0 %418
        %v421 = vlaneseq
        %v422 = vshrl.u32 %v421, 7
        %v423 = vsub.s32 6, %v422
        %v424 = vrot.slane %v320, %v423
        %v425 = vadd.f32 %v419, %v424
        %vm426 = vcmp.gt.f32.partialorder %v425, %v415
        %v427 = vsel %vm426, %v425, %v415
        %v428 = vsel %vm426, 6, %v416
        %429 = vset.pattern.permute.xlu0 7
        %430 = vperm.xlu0 %429, %v346
        %v431 = vpop.permute.xlu0 %430
        %v433 = vlaneseq
        %v434 = vshrl.u32 %v433, 7
        %v435 = vsub.s32 7, %v434
        %v436 = vrot.slane %v320, %v435
        %v437 = vadd.f32 %v431, %v436
        %vm438 = vcmp.gt.f32.partialorder %v437, %v427
        %v439 = vsel %vm438, %v437, %v427
        %v440 = vsel %vm438, 7, %v428
        %v441 = vstv %s324
        %vm442 = vcmp.gt.s32.totalorder %v321, %v441
        %v443 = vadd.f32 %v439, %v345
        %v444 = vsel %vm442, 1, 0
        %445 = vset.pattern.permute.xlu0 0
        %446 = vperm.xlu0 %445, %v444
        %v447 = vpop.permute.xlu0 %446
        %vm448 = vcmp.eq.s32.totalorder %v447, 1
        %v449 = vsel %vm448, %v443, %v346
        %450 = vst [vmem:[#allocation2] sm:$0x3] %v449
        %v451 = vsel %vm448, %v440, %v323
        %452 = vst [vmem:[%s314] sm:$0x3] %v451
      $region44: #{bilstm_crf_forward.6} parent=35 // pred_fallthru
        _
      %s453 = sadd.s32 %s324, 1
      %s454 = scalar_lea.vmem %s292, 2
      %v455 = vld [vmem:[%s454] sm:$0x3]
      %s456 = scalar_lea.vmem %s301, 2
      %v457 = vld [vmem:[%s456] sm:$0x3]
      %v458 = vadd.f32 %v455, %v457
      %v459 = vld [vmem:[#allocation2] sm:$0x3]
      %461 = vset.pattern.permute.xlu0 0
      %462 = vperm.xlu0 %461, %v459
      %v463 = vpop.permute.xlu0 %462
      %v465 = vlaneseq
      %v466 = vshrl.u32 %v465, 7
      %v467 = vsub.s32 0, %v466
      %v468 = vrot.slane %v320, %v467
      %v469 = vadd.f32 %v463, %v468
      %470 = vset.pattern.permute.xlu0 1
      %471 = vperm.xlu0 %470, %v459
      %v472 = vpop.permute.xlu0 %471
      %v474 = vlaneseq
      %v475 = vshrl.u32 %v474, 7
      %v476 = vsub.s32 1, %v475
      %v477 = vrot.slane %v320, %v476
      %v478 = vadd.f32 %v472, %v477
      %vm479 = vcmp.gt.f32.partialorder %v478, %v469
      %v480 = vsel %vm479, %v478, %v469
      %v481 = vsel %vm479, 1, 0
      %482 = vset.pattern.permute.xlu0 2
      %483 = vperm.xlu0 %482, %v459
      %v484 = vpop.permute.xlu0 %483
      %v486 = vlaneseq
      %v487 = vshrl.u32 %v486, 7
      %v488 = vsub.s32 2, %v487
      %v489 = vrot.slane %v320, %v488
      %v490 = vadd.f32 %v484, %v489
      %vm491 = vcmp.gt.f32.partialorder %v490, %v480
      %v492 = vsel %vm491, %v490, %v480
      %v493 = vsel %vm491, 2, %v481
      %494 = vset.pattern.permute.xlu0 3
      %495 = vperm.xlu0 %494, %v459
      %v496 = vpop.permute.xlu0 %495
      %v498 = vlaneseq
      %v499 = vshrl.u32 %v498, 7
      %v500 = vsub.s32 3, %v499
      %v501 = vrot.slane %v320, %v500
      %v502 = vadd.f32 %v496, %v501
      %vm503 = vcmp.gt.f32.partialorder %v502, %v492
      %v504 = vsel %vm503, %v502, %v492
      %v505 = vsel %vm503, 3, %v493
      %506 = vset.pattern.permute.xlu0 4
      %507 = vperm.xlu0 %506, %v459
      %v508 = vpop.permute.xlu0 %507
      %v510 = vlaneseq
      %v511 = vshrl.u32 %v510, 7
      %v512 = vsub.s32 4, %v511
      %v513 = vrot.slane %v320, %v512
      %v514 = vadd.f32 %v508, %v513
      %vm515 = vcmp.gt.f32.partialorder %v514, %v504
      %v516 = vsel %vm515, %v514, %v504
      %v517 = vsel %vm515, 4, %v505
      %518 = vset.pattern.permute.xlu0 5
      %519 = vperm.xlu0 %518, %v459
      %v520 = vpop.permute.xlu0 %519
      %v522 = vlaneseq
      %v523 = vshrl.u32 %v522, 7
      %v524 = vsub.s32 5, %v523
      %v525 = vrot.slane %v320, %v524
      %v526 = vadd.f32 %v520, %v525
      %vm527 = vcmp.gt.f32.partialorder %v526, %v516
      %v528 = vsel %vm527, %v526, %v516
      %v529 = vsel %vm527, 5, %v517
      %530 = vset.pattern.permute.xlu0 6
      %531 = vperm.xlu0 %530, %v459
      %v532 = vpop.permute.xlu0 %531
      %v534 = vlaneseq
      %v535 = vshrl.u32 %v534, 7
      %v536 = vsub.s32 6, %v535
      %v537 = vrot.slane %v320, %v536
      %v538 = vadd.f32 %v532, %v537
      %vm539 = vcmp.gt.f32.partialorder %v538, %v528
      %v540 = vsel %vm539, %v538, %v528
      %v541 = vsel %vm539, 6, %v529
      %542 = vset.pattern.permute.xlu0 7
      %543 = vperm.xlu0 %542, %v459
      %v544 = vpop.permute.xlu0 %543
      %v546 = vlaneseq
      %v547 = vshrl.u32 %v546, 7
      %v548 = vsub.s32 7, %v547
      %v549 = vrot.slane %v320, %v548
      %v550 = vadd.f32 %v544, %v549
      %vm551 = vcmp.gt.f32.partialorder %v550, %v540
      %v552 = vsel %vm551, %v550, %v540
      %v553 = vsel %vm551, 7, %v541
      %v554 = vstv %s453
      %vm555 = vcmp.gt.s32.totalorder %v321, %v554
      %v556 = vadd.f32 %v552, %v458
      %v557 = vsel %vm555, 1, 0
      %558 = vset.pattern.permute.xlu0 0
      %559 = vperm.xlu0 %558, %v557
      %v560 = vpop.permute.xlu0 %559
      %vm561 = vcmp.eq.s32.totalorder %v560, 1
      %v562 = vsel %vm561, %v556, %v459
      %563 = vst [vmem:[#allocation2] sm:$0x3] %v562
      %v564 = vsel %vm561, %v553, %v323
      %s565 = scalar_lea.vmem %s314, 2
      %566 = vst [vmem:[%s565] sm:$0x3] %v564
      %s567 = sadd.s32 %s324, 2
      %s568 = scalar_lea.vmem %s292, 4
      %v569 = vld [vmem:[%s568] sm:$0x3]
      %s570 = scalar_lea.vmem %s301, 4
      %v571 = vld [vmem:[%s570] sm:$0x3]
      %v572 = vadd.f32 %v569, %v571
      %v573 = vld [vmem:[#allocation2] sm:$0x3]
      %575 = vset.pattern.permute.xlu0 0
      %576 = vperm.xlu0 %575, %v573
      %v577 = vpop.permute.xlu0 %576
      %v579 = vadd.f32 %v577, %v468
      %580 = vset.pattern.permute.xlu0 1
      %581 = vperm.xlu0 %580, %v573
      %v582 = vpop.permute.xlu0 %581
      %v584 = vadd.f32 %v582, %v477
      %vm585 = vcmp.gt.f32.partialorder %v584, %v579
      %v586 = vsel %vm585, %v584, %v579
      %v587 = vsel %vm585, 1, 0
      %588 = vset.pattern.permute.xlu0 2
      %589 = vperm.xlu0 %588, %v573
      %v590 = vpop.permute.xlu0 %589
      %v592 = vadd.f32 %v590, %v489
      %vm593 = vcmp.gt.f32.partialorder %v592, %v586
      %v594 = vsel %vm593, %v592, %v586
      %v595 = vsel %vm593, 2, %v587
      %596 = vset.pattern.permute.xlu0 3
      %597 = vperm.xlu0 %596, %v573
      %v598 = vpop.permute.xlu0 %597
      %v600 = vadd.f32 %v598, %v501
      %vm601 = vcmp.gt.f32.partialorder %v600, %v594
      %v602 = vsel %vm601, %v600, %v594
      %v603 = vsel %vm601, 3, %v595
      %604 = vset.pattern.permute.xlu0 4
      %605 = vperm.xlu0 %604, %v573
      %v606 = vpop.permute.xlu0 %605
      %v608 = vadd.f32 %v606, %v513
      %vm609 = vcmp.gt.f32.partialorder %v608, %v602
      %v610 = vsel %vm609, %v608, %v602
      %v611 = vsel %vm609, 4, %v603
      %612 = vset.pattern.permute.xlu0 5
      %613 = vperm.xlu0 %612, %v573
      %v614 = vpop.permute.xlu0 %613
      %v616 = vadd.f32 %v614, %v525
      %vm617 = vcmp.gt.f32.partialorder %v616, %v610
      %v618 = vsel %vm617, %v616, %v610
      %v619 = vsel %vm617, 5, %v611
      %620 = vset.pattern.permute.xlu0 6
      %621 = vperm.xlu0 %620, %v573
      %v622 = vpop.permute.xlu0 %621
      %v624 = vadd.f32 %v622, %v537
      %vm625 = vcmp.gt.f32.partialorder %v624, %v618
      %v626 = vsel %vm625, %v624, %v618
      %v627 = vsel %vm625, 6, %v619
      %628 = vset.pattern.permute.xlu0 7
      %629 = vperm.xlu0 %628, %v573
      %v630 = vpop.permute.xlu0 %629
      %v632 = vadd.f32 %v630, %v549
      %vm633 = vcmp.gt.f32.partialorder %v632, %v626
      %v634 = vsel %vm633, %v632, %v626
      %v635 = vsel %vm633, 7, %v627
      %v636 = vstv %s567
      %vm637 = vcmp.gt.s32.totalorder %v321, %v636
      %v638 = vadd.f32 %v634, %v572
      %v639 = vsel %vm637, 1, 0
      %640 = vset.pattern.permute.xlu0 0
      %641 = vperm.xlu0 %640, %v639
      %v642 = vpop.permute.xlu0 %641
      %vm643 = vcmp.eq.s32.totalorder %v642, 1
      %v644 = vsel %vm643, %v638, %v573
      %645 = vst [vmem:[#allocation2] sm:$0x3] %v644
      %v646 = vsel %vm643, %v635, %v323
      %s647 = scalar_lea.vmem %s314, 4
      %648 = vst [vmem:[%s647] sm:$0x3] %v646
      %s649 = sadd.s32 %s324, 3
      %s650 = scalar_lea.vmem %s292, 6
      %v651 = vld [vmem:[%s650] sm:$0x3]
      %s652 = scalar_lea.vmem %s301, 6
      %v653 = vld [vmem:[%s652] sm:$0x3]
      %v654 = vadd.f32 %v651, %v653
      %v655 = vld [vmem:[#allocation2] sm:$0x3]
      %657 = vset.pattern.permute.xlu0 0
      %658 = vperm.xlu0 %657, %v655
      %v659 = vpop.permute.xlu0 %658
      %v661 = vadd.f32 %v659, %v468
      %662 = vset.pattern.permute.xlu0 1
      %663 = vperm.xlu0 %662, %v655
      %v664 = vpop.permute.xlu0 %663
      %v666 = vadd.f32 %v664, %v477
      %vm667 = vcmp.gt.f32.partialorder %v666, %v661
      %v668 = vsel %vm667, %v666, %v661
      %v669 = vsel %vm667, 1, 0
      %670 = vset.pattern.permute.xlu0 2
      %671 = vperm.xlu0 %670, %v655
      %v672 = vpop.permute.xlu0 %671
      %v674 = vadd.f32 %v672, %v489
      %vm675 = vcmp.gt.f32.partialorder %v674, %v668
      %v676 = vsel %vm675, %v674, %v668
      %v677 = vsel %vm675, 2, %v669
      %678 = vset.pattern.permute.xlu0 3
      %679 = vperm.xlu0 %678, %v655
      %v680 = vpop.permute.xlu0 %679
      %v682 = vadd.f32 %v680, %v501
      %vm683 = vcmp.gt.f32.partialorder %v682, %v676
      %v684 = vsel %vm683, %v682, %v676
      %v685 = vsel %vm683, 3, %v677
      %686 = vset.pattern.permute.xlu0 4
      %687 = vperm.xlu0 %686, %v655
      %v688 = vpop.permute.xlu0 %687
      %v690 = vadd.f32 %v688, %v513
      %vm691 = vcmp.gt.f32.partialorder %v690, %v684
      %v692 = vsel %vm691, %v690, %v684
      %v693 = vsel %vm691, 4, %v685
      %694 = vset.pattern.permute.xlu0 5
      %695 = vperm.xlu0 %694, %v655
      %v696 = vpop.permute.xlu0 %695
      %v698 = vadd.f32 %v696, %v525
      %vm699 = vcmp.gt.f32.partialorder %v698, %v692
      %v700 = vsel %vm699, %v698, %v692
      %v701 = vsel %vm699, 5, %v693
      %702 = vset.pattern.permute.xlu0 6
      %703 = vperm.xlu0 %702, %v655
      %v704 = vpop.permute.xlu0 %703
      %v706 = vadd.f32 %v704, %v537
      %vm707 = vcmp.gt.f32.partialorder %v706, %v700
      %v708 = vsel %vm707, %v706, %v700
      %v709 = vsel %vm707, 6, %v701
      %710 = vset.pattern.permute.xlu0 7
      %711 = vperm.xlu0 %710, %v655
      %v712 = vpop.permute.xlu0 %711
      %v714 = vadd.f32 %v712, %v549
      %vm715 = vcmp.gt.f32.partialorder %v714, %v708
      %v716 = vsel %vm715, %v714, %v708
      %v717 = vsel %vm715, 7, %v709
      %v718 = vstv %s649
      %vm719 = vcmp.gt.s32.totalorder %v321, %v718
      %v720 = vadd.f32 %v716, %v654
      %v721 = vsel %vm719, 1, 0
      %722 = vset.pattern.permute.xlu0 0
      %723 = vperm.xlu0 %722, %v721
      %v724 = vpop.permute.xlu0 %723
      %vm725 = vcmp.eq.s32.totalorder %v724, 1
      %v726 = vsel %vm725, %v720, %v655
      %727 = vst [vmem:[#allocation2] sm:$0x3] %v726
      %v728 = vsel %vm725, %v717, %v323
      %s729 = scalar_lea.vmem %s314, 6
      %730 = vst [vmem:[%s729] sm:$0x3] %v728
      %v731 = vld [vmem:[#allocation2] sm:$0x3]
      %732 = vst [vmem:[%s319] sm:$0x3] %v731
      %s733 = smul.u32 4, %s22
      %p734 = scmp.lt.s32.totalorder %s733, 7
      %s735 = scalar_select %p734, %s733, 7
      %p736 = scmp.lt.s32.totalorder %s21, 0
      %s737 = scalar_select %p736, %s21, 0
      %s738 = sadd.s32 %s737, %s735
      %s739 = smul.addr %s738, 2
      %s740 = scalar_lea.vmem %s4, %s739
      %p741 = scmp.lt.s32.totalorder %s21, 0
      %s742 = scalar_select %p741, %s21, 0
      %s743 = smul.addr %s742, 2
      %s744 = scalar_lea.vmem %s5, %s743
      // Predicated region
      $region45: #{bilstm_crf_forward.6} parent=35 // pred_check
        %p745 = pneg %p152
      $region46: #{bilstm_crf_forward.6} parent=35 // pred_check_branch
        %747 = sbr.rel (%p745) target = $region48
      $region47: #{bilstm_crf_forward.6} parent=35 // pred_region
        %s748 = smul.u32 4, %s22
      $region48: #{bilstm_crf_forward.6} parent=35 // pred_fallthru
        _
      // Predicated region
      $region49: #{bilstm_crf_forward.6} parent=35 // pred_check
        %p749 = pneg %p178
      $region50: #{bilstm_crf_forward.6} parent=35 // pred_check_branch
        %751 = sbr.rel (%p749) target = $region52
      $region51: #{bilstm_crf_forward.6} parent=35 // pred_region
        _
      $region52: #{bilstm_crf_forward.6} parent=35 // pred_fallthru
        _
      // Predicated region
      $region53: #{bilstm_crf_forward.6} parent=35 // pred_check
        %p752 = pneg %p178
      $region54: #{bilstm_crf_forward.6} parent=35 // pred_check_branch
        %754 = sbr.rel (%p752) target = $region56
      $region55: #{bilstm_crf_forward.6} parent=35 // pred_region
        %p755 = scmp.lt.s32.totalorder %s21, 0
        %s756 = scalar_select %p755, %s21, 0
        %s757 = smul.addr %s756, 2
        %s758 = scalar_lea.vmem %s5, %s757
      $region56: #{bilstm_crf_forward.6} parent=35 // pred_fallthru
        _
    $region36: #{bilstm_crf_forward.6} parent=5 // pred_fallthru
      _
    %p759 = scmp.le.s32.totalorder 2, %s12
    // Predicated region
    $region57: #{bilstm_crf_forward.6} parent=5 // pred_check
      %p760 = pneg %p759
    $region58: #{bilstm_crf_forward.6} parent=5 // pred_check_branch
      %762 = sbr.rel (%p760) target = $region60
    $region59: #{bilstm_crf_forward.6} parent=5 // pred_region
      %s763 = ssub.s32 %s12, 2
      // Predicated region
      $region61: #{bilstm_crf_forward.6} parent=59 // pred_check
        %p764 = pneg %p158
      $region62: #{bilstm_crf_forward.6} parent=59 // pred_check_branch
        %766 = sbr.rel (%p764) target = $region64
      $region63: #{bilstm_crf_forward.6} parent=59 // pred_region
        %s767 = smul.u32 4, %s24
        %p768 = scmp.lt.s32.totalorder %s767, 7
        %s769 = scalar_select %p768, %s767, 7
        %p770 = scmp.lt.s32.totalorder %s23, 0
        %s771 = scalar_select %p770, %s23, 0
        %s772 = sadd.s32 %s771, %s769
        %s773 = smul.addr %s772, 2
        %s774 = scalar_lea.vmem %s4, %s773
      $region64: #{bilstm_crf_forward.6} parent=59 // pred_fallthru
        _
    $region60: #{bilstm_crf_forward.6} parent=5 // pred_fallthru
      _
  $region6: #{bilstm_crf_forward.6} parent=0 // loop_footer
    %s16 = sadd.s32 1, %s12
  $region7: #{bilstm_crf_forward.6} parent=0 // loop_footer_branch
    %11 = sbr.rel target = $region3
  $region8: #{bilstm_crf_forward.6} parent=0 // loop_exit
    _

// kernel: bilstm_crf_forward.5
$region0: #{bilstm_crf_forward.5}
  #allocation0 [shape = 'u32[]', space=smem, size = 0x4, offset = 0x4, fixed_abs, tag = 'smem constant byte address 0x4 - core index']
  #allocation1 [shape = 'u32[144,128]{1,0:T(1,128)}', space=vmem, size = 0x12000, scoped, tag = 'internal scratch']
  #allocation2 [shape = 'f32[2,128]{1,0:T(2,128)}', space=vmem, size = 0x400, scoped, tag = 'scratch operand']
  #allocation3 [shape = 'f32[2,128]{1,0:T(2,128)}', space=vmem, size = 0x400, scoped, tag = 'scratch operand']
  #allocation4 [shape = 'f32[2,128]{1,0:T(2,128)}', space=vmem, size = 0x400, scoped, tag = 'scratch operand']
  #allocation5 [shape = 'f32[2,128]{1,0:T(2,128)}', space=vmem, size = 0x400, scoped, tag = 'scratch operand']
  #allocation6 [shape = 'f32[8,128]{1,0:T(8,128)}', space=vmem, size = 0x1000, scoped, tag = 'scratch operand']
  #allocation7 [shape = 'f32[8,128]{1,0:T(8,128)}', space=vmem, size = 0x1000, scoped, tag = 'scratch operand']
  %s0 = inlined_call_operand.vmem [shape: bf16[8,2,1024], index: 0, kind: input, shape index: {}, may-alias: {0,1}]
  %s1 = inlined_call_operand.vmem [shape: bf16[8,2,1024], index: 1, kind: input, shape index: {}, may-alias: {0,1}]
  %s2 = inlined_call_operand.vmem [shape: bf16[128,512], index: 2, kind: input, shape index: {}]
  %s3 = inlined_call_operand.vmem [shape: bf16[128,512], index: 3, kind: input, shape index: {}]
  %s4 = inlined_call_operand.hbm [shape: bf16[128,128], index: 4, kind: input, shape index: {}]
  %s5 = inlined_call_operand.hbm [shape: bf16[128,128], index: 5, kind: input, shape index: {}]
  %s6 = inlined_call_operand.vmem [shape: f32[1,128], index: 6, kind: input, shape index: {}]
  %s7 = inlined_call_operand.vmem [shape: f32[8,2,128], index: 7, kind: output, shape index: {0}]
  %s8 = inlined_call_operand.vmem [shape: f32[8,2,128], index: 8, kind: output, shape index: {1}]
  %9 = xla_tuple %s7, %s8
  %s10 = sld [smem:[#allocation0]]
  $region163: #{bilstm_crf_forward.5} parent=0
    _
  %s12 = ssub.s32 1, %s10
  %s13 = scalar_select 0, %s12, %s10
  $region1: #{bilstm_crf_forward.5} parent=0
    #allocation8 [shape = 'u8[16384]{0}', space=vmem, size = 0x4000, scoped, tag = 'input window, operand 0']
    #allocation9 [shape = 'u8[16384]{0}', space=vmem, size = 0x4000, scoped, tag = 'input window, operand 1']
    #allocation10 [shape = 'u8[32768]{0}', space=vmem, size = 0x8000, scoped, tag = 'input window, operand 4, single buffered']
    #allocation11 [shape = 's32[2]{0}', space=sflag, size = 0x8, scoped, tag = 'scoped memory for bilstm_crf_forward.5']
    #allocation12 [shape = 'u8[32768]{0}', space=vmem, size = 0x8000, scoped, tag = 'input window, operand 5, single buffered']
    #allocation13 [shape = 's32[1]{0}', space=sflag, size = 0x4, scoped, tag = 'scoped memory for bilstm_crf_forward.5']
    %14 = vsyncpa [#allocation11], 0
    %15 = vsyncpa [#allocation13], 0
    loop: start=0, step=1, limit=4
    $region2: #{bilstm_crf_forward.5} parent=1 // loop_pre_header
      _
    $region3: #{bilstm_crf_forward.5} parent=1 // loop_header
      %s17 = sphi 0, %s21
      %p18 = scmp.ge.s32.totalorder %s17, 4
      %s24 = sphi 0, %s36
      %s25 = sphi 0, %s32
      %s26 = sphi 0, %s24
      %s27 = sphi 0, %s25
      %s28 = sphi 0, %s26
      %s29 = sphi 0, %s27
      %s41 = sphi 0, %s43
      %s44 = sphi 0, %s41
      %s45 = sphi 0, %s44
      %s61 = sphi 0, %s45
      %s71 = sphi 0, %s73
      %s74 = sphi 0, %s71
      %s75 = sphi 0, %s74
      %s91 = sphi 0, %s75
      %s95 = sphi 0, %s95
      %s97 = sphi 0, %s95
      %s98 = sphi 0, %s97
      %s112 = sphi 0, %s98
      %s116 = sphi 0, %s116
      %s118 = sphi 0, %s116
      %s119 = sphi 0, %s118
      %s133 = sphi 0, %s119
      %s137 = sphi 0, %s137
      %s139 = sphi 0, %s137
      %s140 = sphi 0, %s139
      %s154 = sphi 0, %s140
      %s158 = sphi 0, %s158
      %s160 = sphi 0, %s158
      %s161 = sphi 0, %s160
      %s175 = sphi 0, %s161
      %s179 = sphi 0, %s179
      %s181 = sphi 0, %s179
      %s182 = sphi 0, %s181
      %s196 = sphi 0, %s182
      %s204 = sphi 0, %s206
      %s207 = sphi 0, %s204
      %s208 = sphi 0, %s207
      %s224 = sphi 0, %s208
      %s234 = sphi 0, %s236
      %s237 = sphi 0, %s234
      %s238 = sphi 0, %s237
      %s254 = sphi 0, %s238
    $region4: #{bilstm_crf_forward.5} parent=1 // loop_header_branch
      %20 = sbr.rel (%p18) target = $region8
    $region5: #{bilstm_crf_forward.5} parent=1 // loop_body
      %s22 = ssub.s32 %s17, 1
      %s23 = ssub.s32 %s17, 2
      %s30 = sadd.s32 1, %s25
      %p31 = scmp.ge.s32.totalorder %s30, 2
      %s32 = scalar_select %p31, 0, %s30
      %s33 = sadd.s32 1, %s24
      %s34 = scalar_select %p31, %s33, %s24
      %p35 = scmp.ge.s32.totalorder %s34, 1
      %s36 = scalar_select %p35, 0, %s34
      %s37 = ssub.s32 %s25, %s32
      %s38 = ssub.s32 %s24, %s36
      %s39 = sor.u32 %s37, %s38
      %p40 = scmp.eq.s32.totalorder %s39, 0
      %s42 = sadd.s32 %s41, 1
      %s43 = scalar_select %p40, %s41, %s42
      %p46 = pneg %p40
      %p47 = scmp.eq.s32.totalorder %s17, 1
      %p48 = por %p46, %p47
      %p49 = scmp.ne.s32.totalorder %s41, %s44
      %p50 = scmp.eq.s32.totalorder %s17, 0
      %p51 = por %p49, %p50
      %p52 = scmp.ne.s32.totalorder %s41, %s44
      %p53 = scmp.eq.s32.totalorder %s22, 1
      %p54 = por %p52, %p53
      %p55 = scmp.ne.s32.totalorder %s44, %s45
      %p56 = scmp.eq.s32.totalorder %s22, 0
      %p57 = por %p55, %p56
      %p58 = scmp.ne.s32.totalorder %s44, %s45
      %p59 = scmp.eq.s32.totalorder %s23, 1
      %p60 = por %p58, %p59
      %p62 = scmp.ne.s32.totalorder %s45, %s61
      %p63 = scmp.eq.s32.totalorder %s23, 0
      %p64 = por %p62, %p63
      %s65 = ssub.s32 1, %s25
      %s66 = ssub.s32 1, %s32
      %s67 = ssub.s32 %s65, %s66
      %s68 = ssub.s32 %s24, %s36
      %s69 = sor.u32 %s67, %s68
      %p70 = scmp.eq.s32.totalorder %s69, 0
      %s72 = sadd.s32 %s71, 1
      %s73 = scalar_select %p70, %s71, %s72
      %p76 = pneg %p70
      %p77 = scmp.eq.s32.totalorder %s17, 1
      %p78 = por %p76, %p77
      %p79 = scmp.ne.s32.totalorder %s71, %s74
      %p80 = scmp.eq.s32.totalorder %s17, 0
      %p81 = por %p79, %p80
      %p82 = scmp.ne.s32.totalorder %s71, %s74
      %p83 = scmp.eq.s32.totalorder %s22, 1
      %p84 = por %p82, %p83
      %p85 = scmp.ne.s32.totalorder %s74, %s75
      %p86 = scmp.eq.s32.totalorder %s22, 0
      %p87 = por %p85, %p86
      %p88 = scmp.ne.s32.totalorder %s74, %s75
      %p89 = scmp.eq.s32.totalorder %s23, 1
      %p90 = por %p88, %p89
      %p92 = scmp.ne.s32.totalorder %s75, %s91
      %p93 = scmp.eq.s32.totalorder %s23, 0
      %p94 = por %p92, %p93
      %s96 = sadd.s32 %s95, 1
      %p99 = scmp.eq.s32.totalorder %s17, 1
      %p100 = scmp.ne.s32.totalorder %s95, %s97
      %p101 = scmp.eq.s32.totalorder %s17, 0
      %p102 = por %p100, %p101
      %p103 = scmp.ne.s32.totalorder %s95, %s97
      %p104 = scmp.eq.s32.totalorder %s22, 1
      %p105 = por %p103, %p104
      %p106 = scmp.ne.s32.totalorder %s97, %s98
      %p107 = scmp.eq.s32.totalorder %s22, 0
      %p108 = por %p106, %p107
      %p109 = scmp.ne.s32.totalorder %s97, %s98
      %p110 = scmp.eq.s32.totalorder %s23, 1
      %p111 = por %p109, %p110
      %p113 = scmp.ne.s32.totalorder %s98, %s112
      %p114 = scmp.eq.s32.totalorder %s23, 0
      %p115 = por %p113, %p114
      %s117 = sadd.s32 %s116, 1
      %p120 = scmp.eq.s32.totalorder %s17, 1
      %p121 = scmp.ne.s32.totalorder %s116, %s118
      %p122 = scmp.eq.s32.totalorder %s17, 0
      %p123 = por %p121, %p122
      %p124 = scmp.ne.s32.totalorder %s116, %s118
      %p125 = scmp.eq.s32.totalorder %s22, 1
      %p126 = por %p124, %p125
      %p127 = scmp.ne.s32.totalorder %s118, %s119
      %p128 = scmp.eq.s32.totalorder %s22, 0
      %p129 = por %p127, %p128
      %p130 = scmp.ne.s32.totalorder %s118, %s119
      %p131 = scmp.eq.s32.totalorder %s23, 1
      %p132 = por %p130, %p131
      %p134 = scmp.ne.s32.totalorder %s119, %s133
      %p135 = scmp.eq.s32.totalorder %s23, 0
      %p136 = por %p134, %p135
      %s138 = sadd.s32 %s137, 1
      %p141 = scmp.eq.s32.totalorder %s17, 1
      %p142 = scmp.ne.s32.totalorder %s137, %s139
      %p143 = scmp.eq.s32.totalorder %s17, 0
      %p144 = por %p142, %p143
      %p145 = scmp.ne.s32.totalorder %s137, %s139
      %p146 = scmp.eq.s32.totalorder %s22, 1
      %p147 = por %p145, %p146
      %p148 = scmp.ne.s32.totalorder %s139, %s140
      %p149 = scmp.eq.s32.totalorder %s22, 0
      %p150 = por %p148, %p149
      %p151 = scmp.ne.s32.totalorder %s139, %s140
      %p152 = scmp.eq.s32.totalorder %s23, 1
      %p153 = por %p151, %p152
      %p155 = scmp.ne.s32.totalorder %s140, %s154
      %p156 = scmp.eq.s32.totalorder %s23, 0
      %p157 = por %p155, %p156
      %s159 = sadd.s32 %s158, 1
      %p162 = scmp.eq.s32.totalorder %s17, 1
      %p163 = scmp.ne.s32.totalorder %s158, %s160
      %p164 = scmp.eq.s32.totalorder %s17, 0
      %p165 = por %p163, %p164
      %p166 = scmp.ne.s32.totalorder %s158, %s160
      %p167 = scmp.eq.s32.totalorder %s22, 1
      %p168 = por %p166, %p167
      %p169 = scmp.ne.s32.totalorder %s160, %s161
      %p170 = scmp.eq.s32.totalorder %s22, 0
      %p171 = por %p169, %p170
      %p172 = scmp.ne.s32.totalorder %s160, %s161
      %p173 = scmp.eq.s32.totalorder %s23, 1
      %p174 = por %p172, %p173
      %p176 = scmp.ne.s32.totalorder %s161, %s175
      %p177 = scmp.eq.s32.totalorder %s23, 0
      %p178 = por %p176, %p177
      %s180 = sadd.s32 %s179, 1
      %p183 = scmp.eq.s32.totalorder %s17, 1
      %p184 = scmp.ne.s32.totalorder %s179, %s181
      %p185 = scmp.eq.s32.totalorder %s17, 0
      %p186 = por %p184, %p185
      %p187 = scmp.ne.s32.totalorder %s179, %s181
      %p188 = scmp.eq.s32.totalorder %s22, 1
      %p189 = por %p187, %p188
      %p190 = scmp.ne.s32.totalorder %s181, %s182
      %p191 = scmp.eq.s32.totalorder %s22, 0
      %p192 = por %p190, %p191
      %p193 = scmp.ne.s32.totalorder %s181, %s182
      %p194 = scmp.eq.s32.totalorder %s23, 1
      %p195 = por %p193, %p194
      %p197 = scmp.ne.s32.totalorder %s182, %s196
      %p198 = scmp.eq.s32.totalorder %s23, 0
      %p199 = por %p197, %p198
      %s200 = ssub.s32 %s25, %s32
      %s201 = ssub.s32 %s24, %s36
      %s202 = sor.u32 %s200, %s201
      %p203 = scmp.eq.s32.totalorder %s202, 0
      %s205 = sadd.s32 %s204, 1
      %s206 = scalar_select %p203, %s204, %s205
      %p209 = pneg %p203
      %p210 = scmp.eq.s32.totalorder %s17, 1
      %p211 = por %p209, %p210
      %p212 = scmp.ne.s32.totalorder %s204, %s207
      %p213 = scmp.eq.s32.totalorder %s17, 0
      %p214 = por %p212, %p213
      %p215 = scmp.ne.s32.totalorder %s204, %s207
      %p216 = scmp.eq.s32.totalorder %s22, 1
      %p217 = por %p215, %p216
      %p218 = scmp.ne.s32.totalorder %s207, %s208
      %p219 = scmp.eq.s32.totalorder %s22, 0
      %p220 = por %p218, %p219
      %p221 = scmp.ne.s32.totalorder %s207, %s208
      %p222 = scmp.eq.s32.totalorder %s23, 1
      %p223 = por %p221, %p222
      %p225 = scmp.ne.s32.totalorder %s208, %s224
      %p226 = scmp.eq.s32.totalorder %s23, 0
      %p227 = por %p225, %p226
      %s228 = ssub.s32 1, %s25
      %s229 = ssub.s32 1, %s32
      %s230 = ssub.s32 %s228, %s229
      %s231 = ssub.s32 %s24, %s36
      %s232 = sor.u32 %s230, %s231
      %p233 = scmp.eq.s32.totalorder %s232, 0
      %s235 = sadd.s32 %s234, 1
      %s236 = scalar_select %p233, %s234, %s235
      %p239 = pneg %p233
      %p240 = scmp.eq.s32.totalorder %s17, 1
      %p241 = por %p239, %p240
      %p242 = scmp.ne.s32.totalorder %s234, %s237
      %p243 = scmp.eq.s32.totalorder %s17, 0
      %p244 = por %p242, %p243
      %p245 = scmp.ne.s32.totalorder %s234, %s237
      %p246 = scmp.eq.s32.totalorder %s22, 1
      %p247 = por %p245, %p246
      %p248 = scmp.ne.s32.totalorder %s237, %s238
      %p249 = scmp.eq.s32.totalorder %s22, 0
      %p250 = por %p248, %p249
      %p251 = scmp.ne.s32.totalorder %s237, %s238
      %p252 = scmp.eq.s32.totalorder %s23, 1
      %p253 = por %p251, %p252
      %p255 = scmp.ne.s32.totalorder %s238, %s254
      %p256 = scmp.eq.s32.totalorder %s23, 0
      %p257 = por %p255, %p256
      %p258 = scmp.le.s32.totalorder 1, %s17
      %p259 = scmp.lt.s32.totalorder %s17, 3
      %p260 = pnand %p258, %p259
      %p261 = pneg %p260
      // Predicated region
      $region9: #{bilstm_crf_forward.5} parent=5 // pred_check
        _
      $region10: #{bilstm_crf_forward.5} parent=5 // pred_check_branch
        %263 = sbr.rel (%p260) target = $region12
      $region11: #{bilstm_crf_forward.5} parent=5 // pred_region
        %s264 = ssub.s32 %s17, 1
        // Predicated region
        $region13: #{bilstm_crf_forward.5} parent=11 // pred_check
          %p265 = pneg %p108
        $region14: #{bilstm_crf_forward.5} parent=11 // pred_check_branch
          %267 = sbr.rel (%p265) target = $region16
        $region15: #{bilstm_crf_forward.5} parent=11 // pred_region
          _
        $region16: #{bilstm_crf_forward.5} parent=11 // pred_fallthru
          _
        // Predicated region
        $region17: #{bilstm_crf_forward.5} parent=11 // pred_check
          %p268 = pneg %p129
        $region18: #{bilstm_crf_forward.5} parent=11 // pred_check_branch
          %270 = sbr.rel (%p268) target = $region20
        $region19: #{bilstm_crf_forward.5} parent=11 // pred_region
          _
        $region20: #{bilstm_crf_forward.5} parent=11 // pred_fallthru
          _
        // Predicated region
        $region21: #{bilstm_crf_forward.5} parent=11 // pred_check
          %p271 = pneg %p150
        $region22: #{bilstm_crf_forward.5} parent=11 // pred_check_branch
          %273 = sbr.rel (%p271) target = $region24
        $region23: #{bilstm_crf_forward.5} parent=11 // pred_region
          %s275 = ssub.s32 1024, 1024
          %276 = vsyncadd [#allocation11], %s275
          %s277 = sshll.u32 [#allocation10], 4
          %s278 = int_to_ptr.vmem [resolvable:$true] %s277
          %283 = dma.hbm_to_vmem [thread:$0]  %s4, 1024, %s278, [#allocation11], 64, 64, 4
        $region24: #{bilstm_crf_forward.5} parent=11 // pred_fallthru
          _
        // Predicated region
        $region25: #{bilstm_crf_forward.5} parent=11 // pred_check
          %p284 = pneg %p171
        $region26: #{bilstm_crf_forward.5} parent=11 // pred_check_branch
          %286 = sbr.rel (%p284) target = $region28
        $region27: #{bilstm_crf_forward.5} parent=11 // pred_region
          %s288 = ssub.s32 1024, 1024
          %289 = vsyncadd [#allocation13], %s288
          %s290 = sshll.u32 [#allocation12], 4
          %s291 = int_to_ptr.vmem [resolvable:$true] %s290
          %296 = dma.hbm_to_vmem [thread:$0]  %s5, 1024, %s291, [#allocation13], 64, 64, 4
        $region28: #{bilstm_crf_forward.5} parent=11 // pred_fallthru
          _
        // Predicated region
        $region29: #{bilstm_crf_forward.5} parent=11 // pred_check
          %p297 = pneg %p192
        $region30: #{bilstm_crf_forward.5} parent=11 // pred_check_branch
          %299 = sbr.rel (%p297) target = $region32
        $region31: #{bilstm_crf_forward.5} parent=11 // pred_region
          _
        $region32: #{bilstm_crf_forward.5} parent=11 // pred_fallthru
          _
      $region12: #{bilstm_crf_forward.5} parent=5 // pred_fallthru
        _
      %p300 = scmp.lt.s32.totalorder %s17, 2
      // Predicated region
      $region33: #{bilstm_crf_forward.5} parent=5 // pred_check
        %p301 = pneg %p300
      $region34: #{bilstm_crf_forward.5} parent=5 // pred_check_branch
        %303 = sbr.rel (%p301) target = $region36
      $region35: #{bilstm_crf_forward.5} parent=5 // pred_region
        // Predicated region
        $region37: #{bilstm_crf_forward.5} parent=35 // pred_check
          %p304 = pneg %p51
        $region38: #{bilstm_crf_forward.5} parent=35 // pred_check_branch
          %306 = sbr.rel (%p304) target = $region40
        $region39: #{bilstm_crf_forward.5} parent=35 // pred_region
          %s307 = sand.u32 %s41, 1
          %s308 = sand.u32 %s41, 1
          %s309 = smul.addr %s308, 16
          %s310 = scalar_lea.vmem [#allocation8], %s309
          %s311 = smul.u32 4, %s25
          %s312 = smul.addr %s24, 8
          %s313 = smul.addr %s311, 8
          %s314 = sadd.s32 %s312, %s313
          %s315 = scalar_lea.vmem %s0, %s314
          // Predicated region
          $region41: #{bilstm_crf_forward.5} parent=39 // pred_check
            _
          $region42: #{bilstm_crf_forward.5} parent=39 // pred_check_branch
            %317 = sbr.rel (0) target = $region44
          $region43: #{bilstm_crf_forward.5} parent=39 // pred_region
            // Predicated region
            $region45: #{bilstm_crf_forward.5} parent=43 // pred_check
              _
            $region46: #{bilstm_crf_forward.5} parent=43 // pred_check_branch
              %319 = sbr.rel target = $region48
            $region47: #{bilstm_crf_forward.5} parent=43 // pred_region
              // Predicated region
              $region60: #{bilstm_crf_forward.5} parent=47 // pred_check
                _
              $region61: #{bilstm_crf_forward.5} parent=47 // pred_check_branch
                %340 = sbr.rel (0) target = $region63
              $region62: #{bilstm_crf_forward.5} parent=47 // pred_region
                loop: start=0, step=1, limit=1
                $region64: #{bilstm_crf_forward.5} parent=62 // loop_pre_header
                  _
                $region65: #{bilstm_crf_forward.5} parent=62 // loop_header
                  %s342 = sphi 0, %s346
                  %p343 = scmp.ge.s32.totalorder %s342, 1
                  %s347 = sphi %s315, %s315
                  %s348 = sphi %s310, %s310
                $region66: #{bilstm_crf_forward.5} parent=62 // loop_header_branch
                  %345 = sbr.rel (%p343) target = $region70
                $region67: #{bilstm_crf_forward.5} parent=62 // loop_body
                  _
                $region68: #{bilstm_crf_forward.5} parent=62 // loop_footer
                  %s346 = sadd.s32 1, %s342
                $region69: #{bilstm_crf_forward.5} parent=62 // loop_footer_branch
                  %341 = sbr.rel target = $region65
                $region70: #{bilstm_crf_forward.5} parent=62 // loop_exit
                  _
                loop: start=0, step=1, limit=1
                $region71: #{bilstm_crf_forward.5} parent=62 // loop_pre_header
                  _
                $region72: #{bilstm_crf_forward.5} parent=62 // loop_header
                  %s351 = sphi 0, %s355
                  %p352 = scmp.ge.s32.totalorder %s351, 1
                  %s356 = sphi %s315, %s315
                  %s357 = sphi %s310, %s310
                $region73: #{bilstm_crf_forward.5} parent=62 // loop_header_branch
                  %354 = sbr.rel (%p352) target = $region77
                $region74: #{bilstm_crf_forward.5} parent=62 // loop_body
                  %v358 = vld [vmem:[%s356] sm:$0xf]
                  %359 = vst [vmem:[%s357] sm:$0xf] %v358
                  %v360 = vld [vmem:[%s356 + $0x8] sm:$0xf]
                  %361 = vst [vmem:[%s357 + $0x4] sm:$0xf] %v360
                  %v362 = vld [vmem:[%s356 + $0x10] sm:$0xf]
                  %363 = vst [vmem:[%s357 + $0x8] sm:$0xf] %v362
                  %v364 = vld [vmem:[%s356 + $0x18] sm:$0xf]
                  %365 = vst [vmem:[%s357 + $0xc] sm:$0xf] %v364
                $region75: #{bilstm_crf_forward.5} parent=62 // loop_footer
                  %s355 = sadd.s32 1, %s351
                $region76: #{bilstm_crf_forward.5} parent=62 // loop_footer_branch
                  %350 = sbr.rel target = $region72
                $region77: #{bilstm_crf_forward.5} parent=62 // loop_exit
                  _
              $region63: #{bilstm_crf_forward.5} parent=47 // pred_fallthru
                _
            $region48: #{bilstm_crf_forward.5} parent=43 // pred_fallthru
              _
            // Predicated region
            $region49: #{bilstm_crf_forward.5} parent=43 // pred_check
              _
            $region50: #{bilstm_crf_forward.5} parent=43 // pred_check_branch
              %321 = sbr.rel (0) target = $region52
            $region51: #{bilstm_crf_forward.5} parent=43 // pred_region
              loop: start=0, step=1, limit=1
              $region53: #{bilstm_crf_forward.5} parent=51 // loop_pre_header
                _
              $region54: #{bilstm_crf_forward.5} parent=51 // loop_header
                %s324 = sphi 0, %s328
                %p325 = scmp.ge.s32.totalorder %s324, 1
                %s329 = sphi %s315, %s315
                %s330 = sphi %s310, %s310
              $region55: #{bilstm_crf_forward.5} parent=51 // loop_header_branch
                %327 = sbr.rel (%p325) target = $region59
              $region56: #{bilstm_crf_forward.5} parent=51 // loop_body
                %v331 = vld [vmem:[%s329] sm:$0xf]
                %332 = vst [vmem:[%s330] sm:$0xf] %v331
                %v333 = vld [vmem:[%s329 + $0x8] sm:$0xf]
                %334 = vst [vmem:[%s330 + $0x4] sm:$0xf] %v333
                %v335 = vld [vmem:[%s329 + $0x10] sm:$0xf]
                %336 = vst [vmem:[%s330 + $0x8] sm:$0xf] %v335
                %v337 = vld [vmem:[%s329 + $0x18] sm:$0xf]
                %338 = vst [vmem:[%s330 + $0xc] sm:$0xf] %v337
              $region57: #{bilstm_crf_forward.5} parent=51 // loop_footer
                %s328 = sadd.s32 1, %s324
              $region58: #{bilstm_crf_forward.5} parent=51 // loop_footer_branch
                %323 = sbr.rel target = $region54
              $region59: #{bilstm_crf_forward.5} parent=51 // loop_exit
                _
            $region52: #{bilstm_crf_forward.5} parent=43 // pred_fallthru
              _
          $region44: #{bilstm_crf_forward.5} parent=39 // pred_fallthru
            _
          %366 = vnop
        $region40: #{bilstm_crf_forward.5} parent=35 // pred_fallthru
          _
        // Predicated region
        $region78: #{bilstm_crf_forward.5} parent=35 // pred_check
          %p367 = pneg %p81
        $region79: #{bilstm_crf_forward.5} parent=35 // pred_check_branch
          %369 = sbr.rel (%p367) target = $region81
        $region80: #{bilstm_crf_forward.5} parent=35 // pred_region
          %s370 = sand.u32 %s71, 1
          %s371 = sand.u32 %s71, 1
          %s372 = smul.addr %s371, 16
          %s373 = scalar_lea.vmem [#allocation9], %s372
          %s374 = ssub.s32 1, %s25
          %s375 = smul.u32 4, %s374
          %s376 = smul.addr %s24, 8
          %s377 = sadd.s32 4, %s376
          %s378 = smul.addr %s375, 8
          %s379 = sadd.s32 %s377, %s378
          %s380 = scalar_lea.vmem %s1, %s379
          // Predicated region
          $region82: #{bilstm_crf_forward.5} parent=80 // pred_check
            _
          $region83: #{bilstm_crf_forward.5} parent=80 // pred_check_branch
            %382 = sbr.rel (0) target = $region85
          $region84: #{bilstm_crf_forward.5} parent=80 // pred_region
            // Predicated region
            $region86: #{bilstm_crf_forward.5} parent=84 // pred_check
              _
            $region87: #{bilstm_crf_forward.5} parent=84 // pred_check_branch
              %384 = sbr.rel target = $region89
            $region88: #{bilstm_crf_forward.5} parent=84 // pred_region
              // Predicated region
              $region101: #{bilstm_crf_forward.5} parent=88 // pred_check
                _
              $region102: #{bilstm_crf_forward.5} parent=88 // pred_check_branch
                %405 = sbr.rel (0) target = $region104
              $region103: #{bilstm_crf_forward.5} parent=88 // pred_region
                loop: start=0, step=1, limit=1
                $region105: #{bilstm_crf_forward.5} parent=103 // loop_pre_header
                  _
                $region106: #{bilstm_crf_forward.5} parent=103 // loop_header
                  %s407 = sphi 0, %s411
                  %p408 = scmp.ge.s32.totalorder %s407, 1
                  %s412 = sphi %s380, %s380
                  %s413 = sphi %s373, %s373
                $region107: #{bilstm_crf_forward.5} parent=103 // loop_header_branch
                  %410 = sbr.rel (%p408) target = $region111
                $region108: #{bilstm_crf_forward.5} parent=103 // loop_body
                  _
                $region109: #{bilstm_crf_forward.5} parent=103 // loop_footer
                  %s411 = sadd.s32 1, %s407
                $region110: #{bilstm_crf_forward.5} parent=103 // loop_footer_branch
                  %406 = sbr.rel target = $region106
                $region111: #{bilstm_crf_forward.5} parent=103 // loop_exit
                  _
                loop: start=0, step=1, limit=1
                $region112: #{bilstm_crf_forward.5} parent=103 // loop_pre_header
                  _
                $region113: #{bilstm_crf_forward.5} parent=103 // loop_header
                  %s416 = sphi 0, %s420
                  %p417 = scmp.ge.s32.totalorder %s416, 1
                  %s421 = sphi %s380, %s380
                  %s422 = sphi %s373, %s373
                $region114: #{bilstm_crf_forward.5} parent=103 // loop_header_branch
                  %419 = sbr.rel (%p417) target = $region118
                $region115: #{bilstm_crf_forward.5} parent=103 // loop_body
                  %v423 = vld [vmem:[%s421] sm:$0xf]
                  %424 = vst [vmem:[%s422] sm:$0xf] %v423
                  %v425 = vld [vmem:[%s421 + $0x8] sm:$0xf]
                  %426 = vst [vmem:[%s422 + $0x4] sm:$0xf] %v425
                  %v427 = vld [vmem:[%s421 + $0x10] sm:$0xf]
                  %428 = vst [vmem:[%s422 + $0x8] sm:$0xf] %v427
                  %v429 = vld [vmem:[%s421 + $0x18] sm:$0xf]
                  %430 = vst [vmem:[%s422 + $0xc] sm:$0xf] %v429
                $region116: #{bilstm_crf_forward.5} parent=103 // loop_footer
                  %s420 = sadd.s32 1, %s416
                $region117: #{bilstm_crf_forward.5} parent=103 // loop_footer_branch
                  %415 = sbr.rel target = $region113
                $region118: #{bilstm_crf_forward.5} parent=103 // loop_exit
                  _
              $region104: #{bilstm_crf_forward.5} parent=88 // pred_fallthru
                _
            $region89: #{bilstm_crf_forward.5} parent=84 // pred_fallthru
              _
            // Predicated region
            $region90: #{bilstm_crf_forward.5} parent=84 // pred_check
              _
            $region91: #{bilstm_crf_forward.5} parent=84 // pred_check_branch
              %386 = sbr.rel (0) target = $region93
            $region92: #{bilstm_crf_forward.5} parent=84 // pred_region
              loop: start=0, step=1, limit=1
              $region94: #{bilstm_crf_forward.5} parent=92 // loop_pre_header
                _
              $region95: #{bilstm_crf_forward.5} parent=92 // loop_header
                %s389 = sphi 0, %s393
                %p390 = scmp.ge.s32.totalorder %s389, 1
                %s394 = sphi %s380, %s380
                %s395 = sphi %s373, %s373
              $region96: #{bilstm_crf_forward.5} parent=92 // loop_header_branch
                %392 = sbr.rel (%p390) target = $region100
              $region97: #{bilstm_crf_forward.5} parent=92 // loop_body
                %v396 = vld [vmem:[%s394] sm:$0xf]
                %397 = vst [vmem:[%s395] sm:$0xf] %v396
                %v398 = vld [vmem:[%s394 + $0x8] sm:$0xf]
                %399 = vst [vmem:[%s395 + $0x4] sm:$0xf] %v398
                %v400 = vld [vmem:[%s394 + $0x10] sm:$0xf]
                %401 = vst [vmem:[%s395 + $0x8] sm:$0xf] %v400
                %v402 = vld [vmem:[%s394 + $0x18] sm:$0xf]
                %403 = vst [vmem:[%s395 + $0xc] sm:$0xf] %v402
              $region98: #{bilstm_crf_forward.5} parent=92 // loop_footer
                %s393 = sadd.s32 1, %s389
              $region99: #{bilstm_crf_forward.5} parent=92 // loop_footer_branch
                %388 = sbr.rel target = $region95
              $region100: #{bilstm_crf_forward.5} parent=92 // loop_exit
                _
            $region93: #{bilstm_crf_forward.5} parent=84 // pred_fallthru
              _
          $region85: #{bilstm_crf_forward.5} parent=80 // pred_fallthru
            _
          %431 = vnop
        $region81: #{bilstm_crf_forward.5} parent=35 // pred_fallthru
          _
      $region36: #{bilstm_crf_forward.5} parent=5 // pred_fallthru
        _
      %p432 = scmp.le.s32.totalorder 1, %s17
      %p433 = scmp.lt.s32.totalorder %s17, 3
      %p434 = pnand %p432, %p433
      %p435 = pneg %p434
      // Predicated region
      $region119: #{bilstm_crf_forward.5} parent=5 // pred_check
        _
      $region120: #{bilstm_crf_forward.5} parent=5 // pred_check_branch
        %437 = sbr.rel (%p434) target = $region122
      $region121: #{bilstm_crf_forward.5} parent=5 // pred_region
        %s438 = ssub.s32 %s17, 1
        %s439 = sand.u32 %s44, 1
        %s440 = sand.u32 %s44, 1
        %s441 = smul.addr %s440, 16
        %s442 = scalar_lea.vmem [#allocation8], %s441
        // Predicated region
        $region123: #{bilstm_crf_forward.5} parent=121 // pred_check
          %p443 = pneg %p57
        $region124: #{bilstm_crf_forward.5} parent=121 // pred_check_branch
          %445 = sbr.rel (%p443) target = $region126
        $region125: #{bilstm_crf_forward.5} parent=121 // pred_region
          _
        $region126: #{bilstm_crf_forward.5} parent=121 // pred_fallthru
          _
        %s446 = sand.u32 %s74, 1
        %s447 = sand.u32 %s74, 1
        %s448 = smul.addr %s447, 16
        %s449 = scalar_lea.vmem [#allocation9], %s448
        // Predicated region
        $region127: #{bilstm_crf_forward.5} parent=121 // pred_check
          %p450 = pneg %p87
        $region128: #{bilstm_crf_forward.5} parent=121 // pred_check_branch
          %452 = sbr.rel (%p450) target = $region130
        $region129: #{bilstm_crf_forward.5} parent=121 // pred_region
          _
        $region130: #{bilstm_crf_forward.5} parent=121 // pred_fallthru
          _
        // Predicated region
        $region131: #{bilstm_crf_forward.5} parent=121 // pred_check
          %p453 = pneg %p150
        $region132: #{bilstm_crf_forward.5} parent=121 // pred_check_branch
          %455 = sbr.rel (%p453) target = $region134
        $region133: #{bilstm_crf_forward.5} parent=121 // pred_region
          %456 = dma.done [#allocation11], 1024
        $region134: #{bilstm_crf_forward.5} parent=121 // pred_fallthru
          _
        // Predicated region
        $region135: #{bilstm_crf_forward.5} parent=121 // pred_check
          %p457 = pneg %p171
        $region136: #{bilstm_crf_forward.5} parent=121 // pred_check_branch
          %459 = sbr.rel (%p457) target = $region138
        $region137: #{bilstm_crf_forward.5} parent=121 // pred_region
          %460 = dma.done [#allocation13], 1024
        $region138: #{bilstm_crf_forward.5} parent=121 // pred_fallthru
          _
        %s461 = sand.u32 %s44, 1
        %s462 = sand.u32 %s44, 1
        %s463 = smul.addr %s462, 16
        %s464 = scalar_lea.vmem [#allocation8], %s463
        %p465 = pneg %p57
        %p466 = pneg %p54
        %s467 = sand.u32 %s74, 1
        %s468 = sand.u32 %s74, 1
        %s469 = smul.addr %s468, 16
        %s470 = scalar_lea.vmem [#allocation9], %s469
        %p471 = pneg %p87
        %p472 = pneg %p84
        %p473 = pneg %p108
        %p474 = pneg %p105
        %p475 = pneg %p129
        %p476 = pneg %p126
        %p477 = pneg %p150
        %p478 = pneg %p147
        %p479 = pneg %p171
        %p480 = pneg %p168
        %p481 = pneg %p192
        %p482 = pneg %p189
        %p483 = pneg %p220
        %p484 = pneg %p217
        %s485 = smul.u32 4, %s27
        %p486 = scmp.lt.s32.totalorder %s485, 7
        %s487 = scalar_select %p486, %s485, 7
        %p488 = scmp.lt.s32.totalorder %s26, 0
        %s489 = scalar_select %p488, %s26, 0
        %s490 = sadd.s32 %s489, %s487
        %s491 = smul.addr %s490, 2
        %s492 = scalar_lea.vmem %s7, %s491
        %p493 = pneg %p250
        %p494 = pneg %p247
        %s495 = ssub.s32 1, %s27
        %s496 = smul.u32 4, %s495
        %p497 = scmp.lt.s32.totalorder %s496, 7
        %s498 = scalar_select %p497, %s496, 7
        %p499 = scmp.lt.s32.totalorder %s26, 0
        %s500 = scalar_select %p499, %s26, 0
        %s501 = sadd.s32 %s500, %s498
        %s502 = smul.addr %s501, 2
        %s503 = scalar_lea.vmem %s8, %s502
        %s504 = smul.u32 4, %s27
        %s505 = ssub.s32 1, %s27
        %s506 = smul.u32 4, %s505
        %s507 = smul.u32 4, %s27
        %p508 = scmp.lt.s32.totalorder %s507, 7
        %s509 = scalar_select %p508, %s507, 7
        %p510 = scmp.lt.s32.totalorder %s26, 0
        %s511 = scalar_select %p510, %s26, 0
        %s512 = sadd.s32 %s511, %s509
        %s513 = smul.addr %s512, 2
        %s514 = scalar_lea.vmem %s7, %s513
        %s515 = smul.u32 4, %s27
        %s516 = ssub.s32 1, %s27
        %s517 = smul.u32 4, %s516
        %p518 = scmp.lt.s32.totalorder %s517, 7
        %s519 = scalar_select %p518, %s517, 7
        %p520 = scmp.lt.s32.totalorder %s26, 0
        %s521 = scalar_select %p520, %s26, 0
        %s522 = sadd.s32 %s521, %s519
        %s523 = smul.addr %s522, 2
        %s524 = scalar_lea.vmem %s8, %s523
        %s525 = ssub.s32 1, %s27
        %s526 = smul.u32 4, %s525
        %p528 = scmp.eq.s32.totalorder %s27, 0
        // Predicated region
        $region139: #{bilstm_crf_forward.5} parent=121 // pred_check
          %p529 = pneg %p528
        $region140: #{bilstm_crf_forward.5} parent=121 // pred_check_branch
          %531 = sbr.rel (%p529) target = $region142
        $region141: #{bilstm_crf_forward.5} parent=121 // pred_region
          %532 = vst [vmem:[#allocation2] sm:$0x3] 0.0
          %533 = vst [vmem:[#allocation3] sm:$0x3] 0.0
          %534 = vst [vmem:[#allocation4] sm:$0x3] 0.0
          %535 = vst [vmem:[#allocation5] sm:$0x3] 0.0
        $region142: #{bilstm_crf_forward.5} parent=121 // pred_fallthru
          _
        %v536 = vld [vmem:[%s2] sm:$0xff]
        %v537 = vld [vmem:[%s2 + $0x8] sm:$0xff]
        %v538 = vld [vmem:[%s2 + $0x10] sm:$0xff]
        %v539 = vld [vmem:[%s2 + $0x18] sm:$0xff]
        %v540 = vld [vmem:[%s2 + $0x20] sm:$0xff]
        %v541 = vld [vmem:[%s2 + $0x28] sm:$0xff]
        %v542 = vld [vmem:[%s2 + $0x30] sm:$0xff]
        %v543 = vld [vmem:[%s2 + $0x38] sm:$0xff]
        %v544 = vld [vmem:[%s2 + $0x40] sm:$0xff]
        %v545 = vld [vmem:[%s2 + $0x48] sm:$0xff]
        %v546 = vld [vmem:[%s2 + $0x50] sm:$0xff]
        %v547 = vld [vmem:[%s2 + $0x58] sm:$0xff]
        %v548 = vld [vmem:[%s2 + $0x60] sm:$0xff]
        %v549 = vld [vmem:[%s2 + $0x68] sm:$0xff]
        %v550 = vld [vmem:[%s2 + $0x70] sm:$0xff]
        %v551 = vld [vmem:[%s2 + $0x78] sm:$0xff]
        %v552 = vld [vmem:[%s2 + $0x80] sm:$0xff]
        %v553 = vld [vmem:[%s2 + $0x88] sm:$0xff]
        %v554 = vld [vmem:[%s2 + $0x90] sm:$0xff]
        %v555 = vld [vmem:[%s2 + $0x98] sm:$0xff]
        %v556 = vld [vmem:[%s2 + $0xa0] sm:$0xff]
        %v557 = vld [vmem:[%s2 + $0xa8] sm:$0xff]
        %v558 = vld [vmem:[%s2 + $0xb0] sm:$0xff]
        %v559 = vld [vmem:[%s2 + $0xb8] sm:$0xff]
        %v560 = vld [vmem:[%s2 + $0xc0] sm:$0xff]
        %v561 = vld [vmem:[%s2 + $0xc8] sm:$0xff]
        %v562 = vld [vmem:[%s2 + $0xd0] sm:$0xff]
        %v563 = vld [vmem:[%s2 + $0xd8] sm:$0xff]
        %v564 = vld [vmem:[%s2 + $0xe0] sm:$0xff]
        %v565 = vld [vmem:[%s2 + $0xe8] sm:$0xff]
        %v566 = vld [vmem:[%s2 + $0xf0] sm:$0xff]
        %v567 = vld [vmem:[%s2 + $0xf8] sm:$0xff]
        %v568 = vld [vmem:[%s3] sm:$0xff]
        %v569 = vld [vmem:[%s3 + $0x8] sm:$0xff]
        %v570 = vld [vmem:[%s3 + $0x10] sm:$0xff]
        %v571 = vld [vmem:[%s3 + $0x18] sm:$0xff]
        %v572 = vld [vmem:[%s3 + $0x20] sm:$0xff]
        %v573 = vld [vmem:[%s3 + $0x28] sm:$0xff]
        %v574 = vld [vmem:[%s3 + $0x30] sm:$0xff]
        %v575 = vld [vmem:[%s3 + $0x38] sm:$0xff]
        %v576 = vld [vmem:[%s3 + $0x40] sm:$0xff]
        %v577 = vld [vmem:[%s3 + $0x48] sm:$0xff]
        %v578 = vld [vmem:[%s3 + $0x50] sm:$0xff]
        %v579 = vld [vmem:[%s3 + $0x58] sm:$0xff]
        %v580 = vld [vmem:[%s3 + $0x60] sm:$0xff]
        %v581 = vld [vmem:[%s3 + $0x68] sm:$0xff]
        %v582 = vld [vmem:[%s3 + $0x70] sm:$0xff]
        %v583 = vld [vmem:[%s3 + $0x78] sm:$0xff]
        %v584 = vld [vmem:[%s3 + $0x80] sm:$0xff]
        %v585 = vld [vmem:[%s3 + $0x88] sm:$0xff]
        %v586 = vld [vmem:[%s3 + $0x90] sm:$0xff]
        %v587 = vld [vmem:[%s3 + $0x98] sm:$0xff]
        %v588 = vld [vmem:[%s3 + $0xa0] sm:$0xff]
        %v589 = vld [vmem:[%s3 + $0xa8] sm:$0xff]
        %v590 = vld [vmem:[%s3 + $0xb0] sm:$0xff]
        %v591 = vld [vmem:[%s3 + $0xb8] sm:$0xff]
        %v592 = vld [vmem:[%s3 + $0xc0] sm:$0xff]
        %v593 = vld [vmem:[%s3 + $0xc8] sm:$0xff]
        %v594 = vld [vmem:[%s3 + $0xd0] sm:$0xff]
        %v595 = vld [vmem:[%s3 + $0xd8] sm:$0xff]
        %v596 = vld [vmem:[%s3 + $0xe0] sm:$0xff]
        %v597 = vld [vmem:[%s3 + $0xe8] sm:$0xff]
        %v598 = vld [vmem:[%s3 + $0xf0] sm:$0xff]
        %v599 = vld [vmem:[%s3 + $0xf8] sm:$0xff]
        %v600 = vld [vmem:[%s442] sm:$0xf]
        %v601 = vld [vmem:[#allocation2] sm:$0x3]
        %v602 = vld [vmem:[#allocation3] sm:$0x3]
        %v603 = vunpack.c.l.bf16 %v600
        %v604 = vpack.c.bf16 %v601, %v601
        %v637 = vunpack.c.l.b16 %v536
        %v638 = vunpack.c.h.b16 %v536
        %v639 = vunpack.c.l.b16 %v537
        %v640 = vunpack.c.h.b16 %v537
        %v641 = vunpack.c.l.b16 %v538
        %v642 = vunpack.c.h.b16 %v538
        %v643 = vunpack.c.l.b16 %v539
        %v644 = vunpack.c.h.b16 %v539
        %v645 = vunpack.c.l.b16 %v540
        %v646 = vunpack.c.h.b16 %v540
        %v647 = vunpack.c.l.b16 %v541
        %v648 = vunpack.c.h.b16 %v541
        %v649 = vunpack.c.l.b16 %v542
        %v650 = vunpack.c.h.b16 %v542
        %v651 = vunpack.c.l.b16 %v543
        %v652 = vunpack.c.h.b16 %v543
        %v653 = vunpack.c.l.b16 %v544
        %v654 = vunpack.c.h.b16 %v544
        %v655 = vunpack.c.l.b16 %v545
        %v656 = vunpack.c.h.b16 %v545
        %v657 = vunpack.c.l.b16 %v546
        %v658 = vunpack.c.h.b16 %v546
        %v659 = vunpack.c.l.b16 %v547
        %v660 = vunpack.c.h.b16 %v547
        %v661 = vunpack.c.l.b16 %v548
        %v662 = vunpack.c.h.b16 %v548
        %v663 = vunpack.c.l.b16 %v549
        %v664 = vunpack.c.h.b16 %v549
        %v665 = vunpack.c.l.b16 %v550
        %v666 = vunpack.c.h.b16 %v550
        %v667 = vunpack.c.l.b16 %v551
        %v668 = vunpack.c.h.b16 %v551
        %v669 = vunpack.c.l.b16 %v552
        %v670 = vunpack.c.h.b16 %v552
        %v671 = vunpack.c.l.b16 %v553
        %v672 = vunpack.c.h.b16 %v553
        %v673 = vunpack.c.l.b16 %v554
        %v674 = vunpack.c.h.b16 %v554
        %v675 = vunpack.c.l.b16 %v555
        %v676 = vunpack.c.h.b16 %v555
        %v677 = vunpack.c.l.b16 %v556
        %v678 = vunpack.c.h.b16 %v556
        %v679 = vunpack.c.l.b16 %v557
        %v680 = vunpack.c.h.b16 %v557
        %v681 = vunpack.c.l.b16 %v558
        %v682 = vunpack.c.h.b16 %v558
        %v683 = vunpack.c.l.b16 %v559
        %v684 = vunpack.c.h.b16 %v559
        %v685 = vunpack.c.l.b16 %v560
        %v686 = vunpack.c.h.b16 %v560
        %v687 = vunpack.c.l.b16 %v561
        %v688 = vunpack.c.h.b16 %v561
        %v689 = vunpack.c.l.b16 %v562
        %v690 = vunpack.c.h.b16 %v562
        %v691 = vunpack.c.l.b16 %v563
        %v692 = vunpack.c.h.b16 %v563
        %v693 = vunpack.c.l.b16 %v564
        %v694 = vunpack.c.h.b16 %v564
        %v695 = vunpack.c.l.b16 %v565
        %v696 = vunpack.c.h.b16 %v565
        %v697 = vunpack.c.l.b16 %v566
        %v698 = vunpack.c.h.b16 %v566
        %v699 = vunpack.c.l.b16 %v567
        %v700 = vunpack.c.h.b16 %v567
        %v701 = vpack.c.b16 %v641, %v637
        %v702 = vpack.c.b16 %v642, %v638
        %v703 = vpack.c.b16 %v643, %v639
        %v704 = vpack.c.b16 %v644, %v640
        %v705 = vpack.c.b16 %v649, %v645
        %v706 = vpack.c.b16 %v650, %v646
        %v707 = vpack.c.b16 %v651, %v647
        %v708 = vpack.c.b16 %v652, %v648
        %v709 = vpack.c.b16 %v657, %v653
        %v710 = vpack.c.b16 %v658, %v654
        %v711 = vpack.c.b16 %v659, %v655
        %v712 = vpack.c.b16 %v660, %v656
        %v713 = vpack.c.b16 %v665, %v661
        %v714 = vpack.c.b16 %v666, %v662
        %v715 = vpack.c.b16 %v667, %v663
        %v716 = vpack.c.b16 %v668, %v664
        %v717 = vpack.c.b16 %v673, %v669
        %v718 = vpack.c.b16 %v674, %v670
        %v719 = vpack.c.b16 %v675, %v671
        %v720 = vpack.c.b16 %v676, %v672
        %v721 = vpack.c.b16 %v681, %v677
        %v722 = vpack.c.b16 %v682, %v678
        %v723 = vpack.c.b16 %v683, %v679
        %v724 = vpack.c.b16 %v684, %v680
        %v725 = vpack.c.b16 %v689, %v685
        %v726 = vpack.c.b16 %v690, %v686
        %v727 = vpack.c.b16 %v691, %v687
        %v728 = vpack.c.b16 %v692, %v688
        %v729 = vpack.c.b16 %v697, %v693
        %v730 = vpack.c.b16 %v698, %v694
        %v731 = vpack.c.b16 %v699, %v695
        %v732 = vpack.c.b16 %v700, %v696
        %765 = vmatprep.subr.bf16.mxu0 %v702
        %766 = vmatpush1.bf16.msra.mxu0 %v701
        %767 = vmatprep.subr.bf16.mxu0 %v706
        %768 = vmatpush1.bf16.msra.mxu0 %v705
        %769 = vmatprep.subr.bf16.mxu0 %v710
        %770 = vmatpush1.bf16.msra.mxu0 %v709
        %771 = vmatprep.subr.bf16.mxu0 %v714
        %772 = vmatpush1.bf16.msra.mxu0 %v713
        %773 = vmatprep.subr.bf16.mxu0 %v718
        %774 = vmatpush1.bf16.msra.mxu0 %v717
        %775 = vmatprep.subr.bf16.mxu0 %v722
        %776 = vmatpush1.bf16.msra.mxu0 %v721
        %777 = vmatprep.subr.bf16.mxu0 %v726
        %778 = vmatpush1.bf16.msra.mxu0 %v725
        %779 = vmatprep.subr.bf16.mxu0 %v730
        %780 = vmatpush1.bf16.msra.mxu0 %v729
        %781 = vmatprep.subr.bf16.mxu0 0
        %782 = vmatpush1.bf16.msra.mxu0 0
        %783 = vmatprep.subr.bf16.mxu0 0
        %784 = vmatpush1.bf16.msra.mxu0 0
        %785 = vmatprep.subr.bf16.mxu0 0
        %786 = vmatpush1.bf16.msra.mxu0 0
        %787 = vmatprep.subr.bf16.mxu0 0
        %788 = vmatpush1.bf16.msra.mxu0 0
        %789 = vmatprep.subr.bf16.mxu0 0
        %790 = vmatpush1.bf16.msra.mxu0 0
        %791 = vmatprep.subr.bf16.mxu0 0
        %792 = vmatpush1.bf16.msra.mxu0 0
        %793 = vmatprep.subr.bf16.mxu0 0
        %794 = vmatpush1.bf16.msra.mxu0 0
        %795 = vmatprep.subr.bf16.mxu0 0
        %796 = vmatpush1.bf16.msra.mxu0 0
        %797 = vmatprep.mubr.bf16.mxu0 0
        %798 = vmatmul.mubr.bf16.gmra.mrb[0].mxu0 %v604
        %v799 = vpop.f32.mrb[0].mxu0
        %v800 = vadd.f32 0.0, %v799
        %v801 = vpop.f32.mrb[0].mxu0
        %v802 = vadd.f32 0.0, %v801
        %v803 = vpop.f32.mrb[0].mxu0
        %v804 = vpop.f32.mrb[0].mxu0
        %805 = vdwg.mxu0
        %806 = vmatprep.subr.bf16.mxu0 %v704
        %807 = vmatpush1.bf16.msra.mxu0 %v703
        %808 = vmatprep.subr.bf16.mxu0 %v708
        %809 = vmatpush1.bf16.msra.mxu0 %v707
        %810 = vmatprep.subr.bf16.mxu0 %v712
        %811 = vmatpush1.bf16.msra.mxu0 %v711
        %812 = vmatprep.subr.bf16.mxu0 %v716
        %813 = vmatpush1.bf16.msra.mxu0 %v715
        %814 = vmatprep.subr.bf16.mxu0 %v720
        %815 = vmatpush1.bf16.msra.mxu0 %v719
        %816 = vmatprep.subr.bf16.mxu0 %v724
        %817 = vmatpush1.bf16.msra.mxu0 %v723
        %818 = vmatprep.subr.bf16.mxu0 %v728
        %819 = vmatpush1.bf16.msra.mxu0 %v727
        %820 = vmatprep.subr.bf16.mxu0 %v732
        %821 = vmatpush1.bf16.msra.mxu0 %v731
        %822 = vmatprep.subr.bf16.mxu0 0
        %823 = vmatpush1.bf16.msra.mxu0 0
        %824 = vmatprep.subr.bf16.mxu0 0
        %825 = vmatpush1.bf16.msra.mxu0 0
        %826 = vmatprep.subr.bf16.mxu0 0
        %827 = vmatpush1.bf16.msra.mxu0 0
        %828 = vmatprep.subr.bf16.mxu0 0
        %829 = vmatpush1.bf16.msra.mxu0 0
        %830 = vmatprep.subr.bf16.mxu0 0
        %831 = vmatpush1.bf16.msra.mxu0 0
        %832 = vmatprep.subr.bf16.mxu0 0
        %833 = vmatpush1.bf16.msra.mxu0 0
        %834 = vmatprep.subr.bf16.mxu0 0
        %835 = vmatpush1.bf16.msra.mxu0 0
        %836 = vmatprep.subr.bf16.mxu0 0
        %837 = vmatpush1.bf16.msra.mxu0 0
        %838 = vmatprep.mubr.bf16.mxu0 0
        %839 = vmatmul.mubr.bf16.gmra.mrb[0].mxu0 %v604
        %v840 = vpop.f32.mrb[0].mxu0
        %v841 = vadd.f32 0.0, %v840
        %v842 = vpop.f32.mrb[0].mxu0
        %v843 = vadd.f32 0.0, %v842
        %v844 = vpop.f32.mrb[0].mxu0
        %v845 = vpop.f32.mrb[0].mxu0
        %846 = vdwg.mxu0
        %v851 = vcombine.low %v800, %v802
        %v852 = vcombine.low %v841, %v843
        %v854 = vunpack.c.l.s4 1983009808
        %v855 = vunpack.c.0.s8 %v854
        %v856 = vlaneseq
        %v857 = vshrl.u32 %v856, 7
        %v858 = vsub.s32 %v855, %v857
        %v859 = vrot.slane %v851, %v858
        %v861 = vunpack.c.l.s4 1983009808
        %v862 = vunpack.c.0.s8 %v861
        %v863 = vlaneseq
        %v864 = vshrl.u32 %v863, 7
        %v865 = vsub.s32 %v862, %v864
        %v866 = vrot.slane %v852, %v865
        %v867 = vcombine.low %v859, %v866
        %v869 = vadd.f32 %v603, %v867
        %v870 = vxor.u32 %v869, 2147483648
        %v871 = vmul.f32 %v870, 1.442695
        %v872 = vpow.pop %v871
        %v873 = vadd.f32 %v872, 1.0
        %v874 = vrcp.pop %v873
        %v875 = vmul.f32 1.0, %v874
        %v877 = vrot.slane %v869, 2
        %v879 = vxor.u32 %v877, 2147483648
        %v880 = vmul.f32 %v879, 1.442695
        %v881 = vpow.pop %v880
        %v882 = vadd.f32 %v881, 1.0
        %v883 = vrcp.pop %v882
        %v884 = vmul.f32 1.0, %v883
        %v885 = vrot.slane %v869, 4
        %v887 = vtanh.pop %v885
        %v888 = vrot.slane %v869, 6
        %v890 = vxor.u32 %v888, 2147483648
        %v891 = vmul.f32 %v890, 1.442695
        %v892 = vpow.pop %v891
        %v893 = vadd.f32 %v892, 1.0
        %v894 = vrcp.pop %v893
        %v895 = vmul.f32 1.0, %v894
        %v896 = vmul.f32 %v884, %v602
        %v897 = vmul.f32 %v875, %v887
        %v898 = vadd.f32 %v896, %v897
        %v899 = vtanh.pop %v898
        %v900 = vmul.f32 %v895, %v899
        %901 = vst [vmem:[#allocation2] sm:$0x3] %v900
        %902 = vst [vmem:[#allocation3] sm:$0x3] %v898
        %903 = vst [vmem:[#allocation6] sm:$0x3] %v900
        %s904 = scalar_lea.vmem %s449, 12 [#allocation9]
        %v905 = vld [vmem:[%s904] sm:$0xf]
        %v906 = vld [vmem:[#allocation4] sm:$0x3]
        %v907 = vld [vmem:[#allocation5] sm:$0x3]
        %v908 = vunpack.c.l.bf16 %v905
        %v909 = vpack.c.bf16 %v906, %v906
        %v942 = vunpack.c.l.b16 %v568
        %v943 = vunpack.c.h.b16 %v568
        %v944 = vunpack.c.l.b16 %v569
        %v945 = vunpack.c.h.b16 %v569
        %v946 = vunpack.c.l.b16 %v570
        %v947 = vunpack.c.h.b16 %v570
        %v948 = vunpack.c.l.b16 %v571
        %v949 = vunpack.c.h.b16 %v571
        %v950 = vunpack.c.l.b16 %v572
        %v951 = vunpack.c.h.b16 %v572
        %v952 = vunpack.c.l.b16 %v573
        %v953 = vunpack.c.h.b16 %v573
        %v954 = vunpack.c.l.b16 %v574
        %v955 = vunpack.c.h.b16 %v574
        %v956 = vunpack.c.l.b16 %v575
        %v957 = vunpack.c.h.b16 %v575
        %v958 = vunpack.c.l.b16 %v576
        %v959 = vunpack.c.h.b16 %v576
        %v960 = vunpack.c.l.b16 %v577
        %v961 = vunpack.c.h.b16 %v577
        %v962 = vunpack.c.l.b16 %v578
        %v963 = vunpack.c.h.b16 %v578
        %v964 = vunpack.c.l.b16 %v579
        %v965 = vunpack.c.h.b16 %v579
        %v966 = vunpack.c.l.b16 %v580
        %v967 = vunpack.c.h.b16 %v580
        %v968 = vunpack.c.l.b16 %v581
        %v969 = vunpack.c.h.b16 %v581
        %v970 = vunpack.c.l.b16 %v582
        %v971 = vunpack.c.h.b16 %v582
        %v972 = vunpack.c.l.b16 %v583
        %v973 = vunpack.c.h.b16 %v583
        %v974 = vunpack.c.l.b16 %v584
        %v975 = vunpack.c.h.b16 %v584
        %v976 = vunpack.c.l.b16 %v585
        %v977 = vunpack.c.h.b16 %v585
        %v978 = vunpack.c.l.b16 %v586
        %v979 = vunpack.c.h.b16 %v586
        %v980 = vunpack.c.l.b16 %v587
        %v981 = vunpack.c.h.b16 %v587
        %v982 = vunpack.c.l.b16 %v588
        %v983 = vunpack.c.h.b16 %v588
        %v984 = vunpack.c.l.b16 %v589
        %v985 = vunpack.c.h.b16 %v589
        %v986 = vunpack.c.l.b16 %v590
        %v987 = vunpack.c.h.b16 %v590
        %v988 = vunpack.c.l.b16 %v591
        %v989 = vunpack.c.h.b16 %v591
        %v990 = vunpack.c.l.b16 %v592
        %v991 = vunpack.c.h.b16 %v592
        %v992 = vunpack.c.l.b16 %v593
        %v993 = vunpack.c.h.b16 %v593
        %v994 = vunpack.c.l.b16 %v594
        %v995 = vunpack.c.h.b16 %v594
        %v996 = vunpack.c.l.b16 %v595
        %v997 = vunpack.c.h.b16 %v595
        %v998 = vunpack.c.l.b16 %v596
        %v999 = vunpack.c.h.b16 %v596
        %v1000 = vunpack.c.l.b16 %v597
        %v1001 = vunpack.c.h.b16 %v597
        %v1002 = vunpack.c.l.b16 %v598
        %v1003 = vunpack.c.h.b16 %v598
        %v1004 = vunpack.c.l.b16 %v599
        %v1005 = vunpack.c.h.b16 %v599
        %v1006 = vpack.c.b16 %v946, %v942
        %v1007 = vpack.c.b16 %v947, %v943
        %v1008 = vpack.c.b16 %v948, %v944
        %v1009 = vpack.c.b16 %v949, %v945
        %v1010 = vpack.c.b16 %v954, %v950
        %v1011 = vpack.c.b16 %v955, %v951
        %v1012 = vpack.c.b16 %v956, %v952
        %v1013 = vpack.c.b16 %v957, %v953
        %v1014 = vpack.c.b16 %v962, %v958
        %v1015 = vpack.c.b16 %v963, %v959
        %v1016 = vpack.c.b16 %v964, %v960
        %v1017 = vpack.c.b16 %v965, %v961
        %v1018 = vpack.c.b16 %v970, %v966
        %v1019 = vpack.c.b16 %v971, %v967
        %v1020 = vpack.c.b16 %v972, %v968
        %v1021 = vpack.c.b16 %v973, %v969
        %v1022 = vpack.c.b16 %v978, %v974
        %v1023 = vpack.c.b16 %v979, %v975
        %v1024 = vpack.c.b16 %v980, %v976
        %v1025 = vpack.c.b16 %v981, %v977
        %v1026 = vpack.c.b16 %v986, %v982
        %v1027 = vpack.c.b16 %v987, %v983
        %v1028 = vpack.c.b16 %v988, %v984
        %v1029 = vpack.c.b16 %v989, %v985
        %v1030 = vpack.c.b16 %v994, %v990
        %v1031 = vpack.c.b16 %v995, %v991
        %v1032 = vpack.c.b16 %v996, %v992
        %v1033 = vpack.c.b16 %v997, %v993
        %v1034 = vpack.c.b16 %v1002, %v998
        %v1035 = vpack.c.b16 %v1003, %v999
        %v1036 = vpack.c.b16 %v1004, %v1000
        %v1037 = vpack.c.b16 %v1005, %v1001
        %1070 = vmatprep.subr.bf16.mxu0 %v1007
        %1071 = vmatpush1.bf16.msra.mxu0 %v1006
        %1072 = vmatprep.subr.bf16.mxu0 %v1011
        %1073 = vmatpush1.bf16.msra.mxu0 %v1010
        %1074 = vmatprep.subr.bf16.mxu0 %v1015
        %1075 = vmatpush1.bf16.msra.mxu0 %v1014
        %1076 = vmatprep.subr.bf16.mxu0 %v1019
        %1077 = vmatpush1.bf16.msra.mxu0 %v1018
        %1078 = vmatprep.subr.bf16.mxu0 %v1023
        %1079 = vmatpush1.bf16.msra.mxu0 %v1022
        %1080 = vmatprep.subr.bf16.mxu0 %v1027
        %1081 = vmatpush1.bf16.msra.mxu0 %v1026
        %1082 = vmatprep.subr.bf16.mxu0 %v1031
        %1083 = vmatpush1.bf16.msra.mxu0 %v1030
        %1084 = vmatprep.subr.bf16.mxu0 %v1035
        %1085 = vmatpush1.bf16.msra.mxu0 %v1034
        %1086 = vmatprep.subr.bf16.mxu0 0
        %1087 = vmatpush1.bf16.msra.mxu0 0
        %1088 = vmatprep.subr.bf16.mxu0 0
        %1089 = vmatpush1.bf16.msra.mxu0 0
        %1090 = vmatprep.subr.bf16.mxu0 0
        %1091 = vmatpush1.bf16.msra.mxu0 0
        %1092 = vmatprep.subr.bf16.mxu0 0
        %1093 = vmatpush1.bf16.msra.mxu0 0
        %1094 = vmatprep.subr.bf16.mxu0 0
        %1095 = vmatpush1.bf16.msra.mxu0 0
        %1096 = vmatprep.subr.bf16.mxu0 0
        %1097 = vmatpush1.bf16.msra.mxu0 0
        %1098 = vmatprep.subr.bf16.mxu0 0
        %1099 = vmatpush1.bf16.msra.mxu0 0
        %1100 = vmatprep.subr.bf16.mxu0 0
        %1101 = vmatpush1.bf16.msra.mxu0 0
        %1102 = vmatprep.mubr.bf16.mxu0 0
        %1103 = vmatmul.mubr.bf16.gmra.mrb[0].mxu0 %v909
        %v1104 = vpop.f32.mrb[0].mxu0
        %v1105 = vadd.f32 0.0, %v1104
        %v1106 = vpop.f32.mrb[0].mxu0
        %v1107 = vadd.f32 0.0, %v1106
        %v1108 = vpop.f32.mrb[0].mxu0
        %v1109 = vpop.f32.mrb[0].mxu0
        %1110 = vdwg.mxu0
        %1111 = vmatprep.subr.bf16.mxu0 %v1009
        %1112 = vmatpush1.bf16.msra.mxu0 %v1008
        %1113 = vmatprep.subr.bf16.mxu0 %v1013
        %1114 = vmatpush1.bf16.msra.mxu0 %v1012
        %1115 = vmatprep.subr.bf16.mxu0 %v1017
        %1116 = vmatpush1.bf16.msra.mxu0 %v1016
        %1117 = vmatprep.subr.bf16.mxu0 %v1021
        %1118 = vmatpush1.bf16.msra.mxu0 %v1020
        %1119 = vmatprep.subr.bf16.mxu0 %v1025
        %1120 = vmatpush1.bf16.msra.mxu0 %v1024
        %1121 = vmatprep.subr.bf16.mxu0 %v1029
        %1122 = vmatpush1.bf16.msra.mxu0 %v1028
        %1123 = vmatprep.subr.bf16.mxu0 %v1033
        %1124 = vmatpush1.bf16.msra.mxu0 %v1032
        %1125 = vmatprep.subr.bf16.mxu0 %v1037
        %1126 = vmatpush1.bf16.msra.mxu0 %v1036
        %1127 = vmatprep.subr.bf16.mxu0 0
        %1128 = vmatpush1.bf16.msra.mxu0 0
        %1129 = vmatprep.subr.bf16.mxu0 0
        %1130 = vmatpush1.bf16.msra.mxu0 0
        %1131 = vmatprep.subr.bf16.mxu0 0
        %1132 = vmatpush1.bf16.msra.mxu0 0
        %1133 = vmatprep.subr.bf16.mxu0 0
        %1134 = vmatpush1.bf16.msra.mxu0 0
        %1135 = vmatprep.subr.bf16.mxu0 0
        %1136 = vmatpush1.bf16.msra.mxu0 0
        %1137 = vmatprep.subr.bf16.mxu0 0
        %1138 = vmatpush1.bf16.msra.mxu0 0
        %1139 = vmatprep.subr.bf16.mxu0 0
        %1140 = vmatpush1.bf16.msra.mxu0 0
        %1141 = vmatprep.subr.bf16.mxu0 0
        %1142 = vmatpush1.bf16.msra.mxu0 0
        %1143 = vmatprep.mubr.bf16.mxu0 0
        %1144 = vmatmul.mubr.bf16.gmra.mrb[0].mxu0 %v909
        %v1145 = vpop.f32.mrb[0].mxu0
        %v1146 = vadd.f32 0.0, %v1145
        %v1147 = vpop.f32.mrb[0].mxu0
        %v1148 = vadd.f32 0.0, %v1147
        %v1149 = vpop.f32.mrb[0].mxu0
        %v1150 = vpop.f32.mrb[0].mxu0
        %1151 = vdwg.mxu0
        %v1156 = vcombine.low %v1105, %v1107
        %v1157 = vcombine.low %v1146, %v1148
        %v1159 = vunpack.c.l.s4 1983009808
        %v1160 = vunpack.c.0.s8 %v1159
        %v1161 = vlaneseq
        %v1162 = vshrl.u32 %v1161, 7
        %v1163 = vsub.s32 %v1160, %v1162
        %v1164 = vrot.slane %v1156, %v1163
        %v1166 = vunpack.c.l.s4 1983009808
        %v1167 = vunpack.c.0.s8 %v1166
        %v1168 = vlaneseq
        %v1169 = vshrl.u32 %v1168, 7
        %v1170 = vsub.s32 %v1167, %v1169
        %v1171 = vrot.slane %v1157, %v1170
        %v1172 = vcombine.low %v1164, %v1171
        %v1174 = vadd.f32 %v908, %v1172
        %v1175 = vxor.u32 %v1174, 2147483648
        %v1176 = vmul.f32 %v1175, 1.442695
        %v1177 = vpow.pop %v1176
        %v1178 = vadd.f32 %v1177, 1.0
        %v1179 = vrcp.pop %v1178
        %v1180 = vmul.f32 1.0, %v1179
        %v1182 = vrot.slane %v1174, 2
        %v1184 = vxor.u32 %v1182, 2147483648
        %v1185 = vmul.f32 %v1184, 1.442695
        %v1186 = vpow.pop %v1185
        %v1187 = vadd.f32 %v1186, 1.0
        %v1188 = vrcp.pop %v1187
        %v1189 = vmul.f32 1.0, %v1188
        %v1190 = vrot.slane %v1174, 4
        %v1192 = vtanh.pop %v1190
        %v1193 = vrot.slane %v1174, 6
        %v1195 = vxor.u32 %v1193, 2147483648
        %v1196 = vmul.f32 %v1195, 1.442695
        %v1197 = vpow.pop %v1196
        %v1198 = vadd.f32 %v1197, 1.0
        %v1199 = vrcp.pop %v1198
        %v1200 = vmul.f32 1.0, %v1199
        %v1201 = vmul.f32 %v1189, %v907
        %v1202 = vmul.f32 %v1180, %v1192
        %v1203 = vadd.f32 %v1201, %v1202
        %v1204 = vtanh.pop %v1203
        %v1205 = vmul.f32 %v1200, %v1204
        %1206 = vst [vmem:[#allocation4] sm:$0x3] %v1205
        %1207 = vst [vmem:[#allocation5] sm:$0x3] %v1203
        %1208 = vst [vmem:[#allocation7 + $0x6] sm:$0x3] %v1205
        %s1209 = scalar_lea.vmem %s442, 4 [#allocation8]
        %v1210 = vld [vmem:[%s1209] sm:$0xf]
        %v1211 = vld [vmem:[#allocation2] sm:$0x3]
        %v1212 = vld [vmem:[#allocation3] sm:$0x3]
        %v1213 = vunpack.c.l.bf16 %v1210
        %v1214 = vpack.c.bf16 %v1211, %v1211
        %1215 = vmatprep.subr.bf16.mxu0 %v702
        %1216 = vmatpush1.bf16.msra.mxu0 %v701
        %1217 = vmatprep.subr.bf16.mxu0 %v706
        %1218 = vmatpush1.bf16.msra.mxu0 %v705
        %1219 = vmatprep.subr.bf16.mxu0 %v710
        %1220 = vmatpush1.bf16.msra.mxu0 %v709
        %1221 = vmatprep.subr.bf16.mxu0 %v714
        %1222 = vmatpush1.bf16.msra.mxu0 %v713
        %1223 = vmatprep.subr.bf16.mxu0 %v718
        %1224 = vmatpush1.bf16.msra.mxu0 %v717
        %1225 = vmatprep.subr.bf16.mxu0 %v722
        %1226 = vmatpush1.bf16.msra.mxu0 %v721
        %1227 = vmatprep.subr.bf16.mxu0 %v726
        %1228 = vmatpush1.bf16.msra.mxu0 %v725
        %1229 = vmatprep.subr.bf16.mxu0 %v730
        %1230 = vmatpush1.bf16.msra.mxu0 %v729
        %1231 = vmatprep.subr.bf16.mxu0 0
        %1232 = vmatpush1.bf16.msra.mxu0 0
        %1233 = vmatprep.subr.bf16.mxu0 0
        %1234 = vmatpush1.bf16.msra.mxu0 0
        %1235 = vmatprep.subr.bf16.mxu0 0
        %1236 = vmatpush1.bf16.msra.mxu0 0
        %1237 = vmatprep.subr.bf16.mxu0 0
        %1238 = vmatpush1.bf16.msra.mxu0 0
        %1239 = vmatprep.subr.bf16.mxu0 0
        %1240 = vmatpush1.bf16.msra.mxu0 0
        %1241 = vmatprep.subr.bf16.mxu0 0
        %1242 = vmatpush1.bf16.msra.mxu0 0
        %1243 = vmatprep.subr.bf16.mxu0 0
        %1244 = vmatpush1.bf16.msra.mxu0 0
        %1245 = vmatprep.subr.bf16.mxu0 0
        %1246 = vmatpush1.bf16.msra.mxu0 0
        %1247 = vmatprep.mubr.bf16.mxu0 0
        %1248 = vmatmul.mubr.bf16.gmra.mrb[0].mxu0 %v1214
        %v1249 = vpop.f32.mrb[0].mxu0
        %v1250 = vadd.f32 0.0, %v1249
        %v1251 = vpop.f32.mrb[0].mxu0
        %v1252 = vadd.f32 0.0, %v1251
        %v1253 = vpop.f32.mrb[0].mxu0
        %v1254 = vpop.f32.mrb[0].mxu0
        %1255 = vdwg.mxu0
        %1256 = vmatprep.subr.bf16.mxu0 %v704
        %1257 = vmatpush1.bf16.msra.mxu0 %v703
        %1258 = vmatprep.subr.bf16.mxu0 %v708
        %1259 = vmatpush1.bf16.msra.mxu0 %v707
        %1260 = vmatprep.subr.bf16.mxu0 %v712
        %1261 = vmatpush1.bf16.msra.mxu0 %v711
        %1262 = vmatprep.subr.bf16.mxu0 %v716
        %1263 = vmatpush1.bf16.msra.mxu0 %v715
        %1264 = vmatprep.subr.bf16.mxu0 %v720
        %1265 = vmatpush1.bf16.msra.mxu0 %v719
        %1266 = vmatprep.subr.bf16.mxu0 %v724
        %1267 = vmatpush1.bf16.msra.mxu0 %v723
        %1268 = vmatprep.subr.bf16.mxu0 %v728
        %1269 = vmatpush1.bf16.msra.mxu0 %v727
        %1270 = vmatprep.subr.bf16.mxu0 %v732
        %1271 = vmatpush1.bf16.msra.mxu0 %v731
        %1272 = vmatprep.subr.bf16.mxu0 0
        %1273 = vmatpush1.bf16.msra.mxu0 0
        %1274 = vmatprep.subr.bf16.mxu0 0
        %1275 = vmatpush1.bf16.msra.mxu0 0
        %1276 = vmatprep.subr.bf16.mxu0 0
        %1277 = vmatpush1.bf16.msra.mxu0 0
        %1278 = vmatprep.subr.bf16.mxu0 0
        %1279 = vmatpush1.bf16.msra.mxu0 0
        %1280 = vmatprep.subr.bf16.mxu0 0
        %1281 = vmatpush1.bf16.msra.mxu0 0
        %1282 = vmatprep.subr.bf16.mxu0 0
        %1283 = vmatpush1.bf16.msra.mxu0 0
        %1284 = vmatprep.subr.bf16.mxu0 0
        %1285 = vmatpush1.bf16.msra.mxu0 0
        %1286 = vmatprep.subr.bf16.mxu0 0
        %1287 = vmatpush1.bf16.msra.mxu0 0
        %1288 = vmatprep.mubr.bf16.mxu0 0
        %1289 = vmatmul.mubr.bf16.gmra.mrb[0].mxu0 %v1214
        %v1290 = vpop.f32.mrb[0].mxu0
        %v1291 = vadd.f32 0.0, %v1290
        %v1292 = vpop.f32.mrb[0].mxu0
        %v1293 = vadd.f32 0.0, %v1292
        %v1294 = vpop.f32.mrb[0].mxu0
        %v1295 = vpop.f32.mrb[0].mxu0
        %1296 = vdwg.mxu0
        %v1301 = vcombine.low %v1250, %v1252
        %v1302 = vcombine.low %v1291, %v1293
        %v1304 = vunpack.c.l.s4 1983009808
        %v1305 = vunpack.c.0.s8 %v1304
        %v1306 = vlaneseq
        %v1307 = vshrl.u32 %v1306, 7
        %v1308 = vsub.s32 %v1305, %v1307
        %v1309 = vrot.slane %v1301, %v1308
        %v1311 = vunpack.c.l.s4 1983009808
        %v1312 = vunpack.c.0.s8 %v1311
        %v1313 = vlaneseq
        %v1314 = vshrl.u32 %v1313, 7
        %v1315 = vsub.s32 %v1312, %v1314
        %v1316 = vrot.slane %v1302, %v1315
        %v1317 = vcombine.low %v1309, %v1316
        %v1319 = vadd.f32 %v1213, %v1317
        %v1320 = vxor.u32 %v1319, 2147483648
        %v1321 = vmul.f32 %v1320, 1.442695
        %v1322 = vpow.pop %v1321
        %v1323 = vadd.f32 %v1322, 1.0
        %v1324 = vrcp.pop %v1323
        %v1325 = vmul.f32 1.0, %v1324
        %v1327 = vrot.slane %v1319, 2
        %v1329 = vxor.u32 %v1327, 2147483648
        %v1330 = vmul.f32 %v1329, 1.442695
        %v1331 = vpow.pop %v1330
        %v1332 = vadd.f32 %v1331, 1.0
        %v1333 = vrcp.pop %v1332
        %v1334 = vmul.f32 1.0, %v1333
        %v1335 = vrot.slane %v1319, 4
        %v1337 = vtanh.pop %v1335
        %v1338 = vrot.slane %v1319, 6
        %v1340 = vxor.u32 %v1338, 2147483648
        %v1341 = vmul.f32 %v1340, 1.442695
        %v1342 = vpow.pop %v1341
        %v1343 = vadd.f32 %v1342, 1.0
        %v1344 = vrcp.pop %v1343
        %v1345 = vmul.f32 1.0, %v1344
        %v1346 = vmul.f32 %v1334, %v1212
        %v1347 = vmul.f32 %v1325, %v1337
        %v1348 = vadd.f32 %v1346, %v1347
        %v1349 = vtanh.pop %v1348
        %v1350 = vmul.f32 %v1345, %v1349
        %1351 = vst [vmem:[#allocation2] sm:$0x3] %v1350
        %1352 = vst [vmem:[#allocation3] sm:$0x3] %v1348
        %1353 = vst [vmem:[#allocation6 + $0x2] sm:$0x3] %v1350
        %s1354 = scalar_lea.vmem %s449, 8 [#allocation9]
        %v1355 = vld [vmem:[%s1354] sm:$0xf]
        %v1356 = vld [vmem:[#allocation4] sm:$0x3]
        %v1357 = vld [vmem:[#allocation5] sm:$0x3]
        %v1358 = vunpack.c.l.bf16 %v1355
        %v1359 = vpack.c.bf16 %v1356, %v1356
        %1360 = vmatprep.subr.bf16.mxu0 %v1007
        %1361 = vmatpush1.bf16.msra.mxu0 %v1006
        %1362 = vmatprep.subr.bf16.mxu0 %v1011
        %1363 = vmatpush1.bf16.msra.mxu0 %v1010
        %1364 = vmatprep.subr.bf16.mxu0 %v1015
        %1365 = vmatpush1.bf16.msra.mxu0 %v1014
        %1366 = vmatprep.subr.bf16.mxu0 %v1019
        %1367 = vmatpush1.bf16.msra.mxu0 %v1018
        %1368 = vmatprep.subr.bf16.mxu0 %v1023
        %1369 = vmatpush1.bf16.msra.mxu0 %v1022
        %1370 = vmatprep.subr.bf16.mxu0 %v1027
        %1371 = vmatpush1.bf16.msra.mxu0 %v1026
        %1372 = vmatprep.subr.bf16.mxu0 %v1031
        %1373 = vmatpush1.bf16.msra.mxu0 %v1030
        %1374 = vmatprep.subr.bf16.mxu0 %v1035
        %1375 = vmatpush1.bf16.msra.mxu0 %v1034
        %1376 = vmatprep.subr.bf16.mxu0 0
        %1377 = vmatpush1.bf16.msra.mxu0 0
        %1378 = vmatprep.subr.bf16.mxu0 0
        %1379 = vmatpush1.bf16.msra.mxu0 0
        %1380 = vmatprep.subr.bf16.mxu0 0
        %1381 = vmatpush1.bf16.msra.mxu0 0
        %1382 = vmatprep.subr.bf16.mxu0 0
        %1383 = vmatpush1.bf16.msra.mxu0 0
        %1384 = vmatprep.subr.bf16.mxu0 0
        %1385 = vmatpush1.bf16.msra.mxu0 0
        %1386 = vmatprep.subr.bf16.mxu0 0
        %1387 = vmatpush1.bf16.msra.mxu0 0
        %1388 = vmatprep.subr.bf16.mxu0 0
        %1389 = vmatpush1.bf16.msra.mxu0 0
        %1390 = vmatprep.subr.bf16.mxu0 0
        %1391 = vmatpush1.bf16.msra.mxu0 0
        %1392 = vmatprep.mubr.bf16.mxu0 0
        %1393 = vmatmul.mubr.bf16.gmra.mrb[0].mxu0 %v1359
        %v1394 = vpop.f32.mrb[0].mxu0
        %v1395 = vadd.f32 0.0, %v1394
        %v1396 = vpop.f32.mrb[0].mxu0
        %v1397 = vadd.f32 0.0, %v1396
        %v1398 = vpop.f32.mrb[0].mxu0
        %v1399 = vpop.f32.mrb[0].mxu0
        %1400 = vdwg.mxu0
        %1401 = vmatprep.subr.bf16.mxu0 %v1009
        %1402 = vmatpush1.bf16.msra.mxu0 %v1008
        %1403 = vmatprep.subr.bf16.mxu0 %v1013
        %1404 = vmatpush1.bf16.msra.mxu0 %v1012
        %1405 = vmatprep.subr.bf16.mxu0 %v1017
        %1406 = vmatpush1.bf16.msra.mxu0 %v1016
        %1407 = vmatprep.subr.bf16.mxu0 %v1021
        %1408 = vmatpush1.bf16.msra.mxu0 %v1020
        %1409 = vmatprep.subr.bf16.mxu0 %v1025
        %1410 = vmatpush1.bf16.msra.mxu0 %v1024
        %1411 = vmatprep.subr.bf16.mxu0 %v1029
        %1412 = vmatpush1.bf16.msra.mxu0 %v1028
        %1413 = vmatprep.subr.bf16.mxu0 %v1033
        %1414 = vmatpush1.bf16.msra.mxu0 %v1032
        %1415 = vmatprep.subr.bf16.mxu0 %v1037
        %1416 = vmatpush1.bf16.msra.mxu0 %v1036
        %1417 = vmatprep.subr.bf16.mxu0 0
        %1418 = vmatpush1.bf16.msra.mxu0 0
        %1419 = vmatprep.subr.bf16.mxu0 0
        %1420 = vmatpush1.bf16.msra.mxu0 0
        %1421 = vmatprep.subr.bf16.mxu0 0
        %1422 = vmatpush1.bf16.msra.mxu0 0
        %1423 = vmatprep.subr.bf16.mxu0 0
        %1424 = vmatpush1.bf16.msra.mxu0 0
        %1425 = vmatprep.subr.bf16.mxu0 0
        %1426 = vmatpush1.bf16.msra.mxu0 0
        %1427 = vmatprep.subr.bf16.mxu0 0
        %1428 = vmatpush1.bf16.msra.mxu0 0
        %1429 = vmatprep.subr.bf16.mxu0 0
        %1430 = vmatpush1.bf16.msra.mxu0 0
        %1431 = vmatprep.subr.bf16.mxu0 0
        %1432 = vmatpush1.bf16.msra.mxu0 0
        %1433 = vmatprep.mubr.bf16.mxu0 0
        %1434 = vmatmul.mubr.bf16.gmra.mrb[0].mxu0 %v1359
        %v1435 = vpop.f32.mrb[0].mxu0
        %v1436 = vadd.f32 0.0, %v1435
        %v1437 = vpop.f32.mrb[0].mxu0
        %v1438 = vadd.f32 0.0, %v1437
        %v1439 = vpop.f32.mrb[0].mxu0
        %v1440 = vpop.f32.mrb[0].mxu0
        %1441 = vdwg.mxu0
        %v1446 = vcombine.low %v1395, %v1397
        %v1447 = vcombine.low %v1436, %v1438
        %v1449 = vunpack.c.l.s4 1983009808
        %v1450 = vunpack.c.0.s8 %v1449
        %v1451 = vlaneseq
        %v1452 = vshrl.u32 %v1451, 7
        %v1453 = vsub.s32 %v1450, %v1452
        %v1454 = vrot.slane %v1446, %v1453
        %v1456 = vunpack.c.l.s4 1983009808
        %v1457 = vunpack.c.0.s8 %v1456
        %v1458 = vlaneseq
        %v1459 = vshrl.u32 %v1458, 7
        %v1460 = vsub.s32 %v1457, %v1459
        %v1461 = vrot.slane %v1447, %v1460
        %v1462 = vcombine.low %v1454, %v1461
        %v1464 = vadd.f32 %v1358, %v1462
        %v1465 = vxor.u32 %v1464, 2147483648
        %v1466 = vmul.f32 %v1465, 1.442695
        %v1467 = vpow.pop %v1466
        %v1468 = vadd.f32 %v1467, 1.0
        %v1469 = vrcp.pop %v1468
        %v1470 = vmul.f32 1.0, %v1469
        %v1472 = vrot.slane %v1464, 2
        %v1474 = vxor.u32 %v1472, 2147483648
        %v1475 = vmul.f32 %v1474, 1.442695
        %v1476 = vpow.pop %v1475
        %v1477 = vadd.f32 %v1476, 1.0
        %v1478 = vrcp.pop %v1477
        %v1479 = vmul.f32 1.0, %v1478
        %v1480 = vrot.slane %v1464, 4
        %v1482 = vtanh.pop %v1480
        %v1483 = vrot.slane %v1464, 6
        %v1485 = vxor.u32 %v1483, 2147483648
        %v1486 = vmul.f32 %v1485, 1.442695
        %v1487 = vpow.pop %v1486
        %v1488 = vadd.f32 %v1487, 1.0
        %v1489 = vrcp.pop %v1488
        %v1490 = vmul.f32 1.0, %v1489
        %v1491 = vmul.f32 %v1479, %v1357
        %v1492 = vmul.f32 %v1470, %v1482
        %v1493 = vadd.f32 %v1491, %v1492
        %v1494 = vtanh.pop %v1493
        %v1495 = vmul.f32 %v1490, %v1494
        %1496 = vst [vmem:[#allocation4] sm:$0x3] %v1495
        %1497 = vst [vmem:[#allocation5] sm:$0x3] %v1493
        %1498 = vst [vmem:[#allocation7 + $0x4] sm:$0x3] %v1495
        %s1499 = scalar_lea.vmem %s442, 8 [#allocation8]
        %v1500 = vld [vmem:[%s1499] sm:$0xf]
        %v1501 = vld [vmem:[#allocation2] sm:$0x3]
        %v1502 = vld [vmem:[#allocation3] sm:$0x3]
        %v1503 = vunpack.c.l.bf16 %v1500
        %v1504 = vpack.c.bf16 %v1501, %v1501
        %1505 = vmatprep.subr.bf16.mxu0 %v702
        %1506 = vmatpush1.bf16.msra.mxu0 %v701
        %1507 = vmatprep.subr.bf16.mxu0 %v706
        %1508 = vmatpush1.bf16.msra.mxu0 %v705
        %1509 = vmatprep.subr.bf16.mxu0 %v710
        %1510 = vmatpush1.bf16.msra.mxu0 %v709
        %1511 = vmatprep.subr.bf16.mxu0 %v714
        %1512 = vmatpush1.bf16.msra.mxu0 %v713
        %1513 = vmatprep.subr.bf16.mxu0 %v718
        %1514 = vmatpush1.bf16.msra.mxu0 %v717
        %1515 = vmatprep.subr.bf16.mxu0 %v722
        %1516 = vmatpush1.bf16.msra.mxu0 %v721
        %1517 = vmatprep.subr.bf16.mxu0 %v726
        %1518 = vmatpush1.bf16.msra.mxu0 %v725
        %1519 = vmatprep.subr.bf16.mxu0 %v730
        %1520 = vmatpush1.bf16.msra.mxu0 %v729
        %1521 = vmatprep.subr.bf16.mxu0 0
        %1522 = vmatpush1.bf16.msra.mxu0 0
        %1523 = vmatprep.subr.bf16.mxu0 0
        %1524 = vmatpush1.bf16.msra.mxu0 0
        %1525 = vmatprep.subr.bf16.mxu0 0
        %1526 = vmatpush1.bf16.msra.mxu0 0
        %1527 = vmatprep.subr.bf16.mxu0 0
        %1528 = vmatpush1.bf16.msra.mxu0 0
        %1529 = vmatprep.subr.bf16.mxu0 0
        %1530 = vmatpush1.bf16.msra.mxu0 0
        %1531 = vmatprep.subr.bf16.mxu0 0
        %1532 = vmatpush1.bf16.msra.mxu0 0
        %1533 = vmatprep.subr.bf16.mxu0 0
        %1534 = vmatpush1.bf16.msra.mxu0 0
        %1535 = vmatprep.subr.bf16.mxu0 0
        %1536 = vmatpush1.bf16.msra.mxu0 0
        %1537 = vmatprep.mubr.bf16.mxu0 0
        %1538 = vmatmul.mubr.bf16.gmra.mrb[0].mxu0 %v1504
        %v1539 = vpop.f32.mrb[0].mxu0
        %v1540 = vadd.f32 0.0, %v1539
        %v1541 = vpop.f32.mrb[0].mxu0
        %v1542 = vadd.f32 0.0, %v1541
        %v1543 = vpop.f32.mrb[0].mxu0
        %v1544 = vpop.f32.mrb[0].mxu0
        %1545 = vdwg.mxu0
        %1546 = vmatprep.subr.bf16.mxu0 %v704
        %1547 = vmatpush1.bf16.msra.mxu0 %v703
        %1548 = vmatprep.subr.bf16.mxu0 %v708
        %1549 = vmatpush1.bf16.msra.mxu0 %v707
        %1550 = vmatprep.subr.bf16.mxu0 %v712
        %1551 = vmatpush1.bf16.msra.mxu0 %v711
        %1552 = vmatprep.subr.bf16.mxu0 %v716
        %1553 = vmatpush1.bf16.msra.mxu0 %v715
        %1554 = vmatprep.subr.bf16.mxu0 %v720
        %1555 = vmatpush1.bf16.msra.mxu0 %v719
        %1556 = vmatprep.subr.bf16.mxu0 %v724
        %1557 = vmatpush1.bf16.msra.mxu0 %v723
        %1558 = vmatprep.subr.bf16.mxu0 %v728
        %1559 = vmatpush1.bf16.msra.mxu0 %v727
        %1560 = vmatprep.subr.bf16.mxu0 %v732
        %1561 = vmatpush1.bf16.msra.mxu0 %v731
        %1562 = vmatprep.subr.bf16.mxu0 0
        %1563 = vmatpush1.bf16.msra.mxu0 0
        %1564 = vmatprep.subr.bf16.mxu0 0
        %1565 = vmatpush1.bf16.msra.mxu0 0
        %1566 = vmatprep.subr.bf16.mxu0 0
        %1567 = vmatpush1.bf16.msra.mxu0 0
        %1568 = vmatprep.subr.bf16.mxu0 0
        %1569 = vmatpush1.bf16.msra.mxu0 0
        %1570 = vmatprep.subr.bf16.mxu0 0
        %1571 = vmatpush1.bf16.msra.mxu0 0
        %1572 = vmatprep.subr.bf16.mxu0 0
        %1573 = vmatpush1.bf16.msra.mxu0 0
        %1574 = vmatprep.subr.bf16.mxu0 0
        %1575 = vmatpush1.bf16.msra.mxu0 0
        %1576 = vmatprep.subr.bf16.mxu0 0
        %1577 = vmatpush1.bf16.msra.mxu0 0
        %1578 = vmatprep.mubr.bf16.mxu0 0
        %1579 = vmatmul.mubr.bf16.gmra.mrb[0].mxu0 %v1504
        %v1580 = vpop.f32.mrb[0].mxu0
        %v1581 = vadd.f32 0.0, %v1580
        %v1582 = vpop.f32.mrb[0].mxu0
        %v1583 = vadd.f32 0.0, %v1582
        %v1584 = vpop.f32.mrb[0].mxu0
        %v1585 = vpop.f32.mrb[0].mxu0
        %1586 = vdwg.mxu0
        %v1591 = vcombine.low %v1540, %v1542
        %v1592 = vcombine.low %v1581, %v1583
        %v1594 = vunpack.c.l.s4 1983009808
        %v1595 = vunpack.c.0.s8 %v1594
        %v1596 = vlaneseq
        %v1597 = vshrl.u32 %v1596, 7
        %v1598 = vsub.s32 %v1595, %v1597
        %v1599 = vrot.slane %v1591, %v1598
        %v1601 = vunpack.c.l.s4 1983009808
        %v1602 = vunpack.c.0.s8 %v1601
        %v1603 = vlaneseq
        %v1604 = vshrl.u32 %v1603, 7
        %v1605 = vsub.s32 %v1602, %v1604
        %v1606 = vrot.slane %v1592, %v1605
        %v1607 = vcombine.low %v1599, %v1606
        %v1609 = vadd.f32 %v1503, %v1607
        %v1610 = vxor.u32 %v1609, 2147483648
        %v1611 = vmul.f32 %v1610, 1.442695
        %v1612 = vpow.pop %v1611
        %v1613 = vadd.f32 %v1612, 1.0
        %v1614 = vrcp.pop %v1613
        %v1615 = vmul.f32 1.0, %v1614
        %v1617 = vrot.slane %v1609, 2
        %v1619 = vxor.u32 %v1617, 2147483648
        %v1620 = vmul.f32 %v1619, 1.442695
        %v1621 = vpow.pop %v1620
        %v1622 = vadd.f32 %v1621, 1.0
        %v1623 = vrcp.pop %v1622
        %v1624 = vmul.f32 1.0, %v1623
        %v1625 = vrot.slane %v1609, 4
        %v1627 = vtanh.pop %v1625
        %v1628 = vrot.slane %v1609, 6
        %v1630 = vxor.u32 %v1628, 2147483648
        %v1631 = vmul.f32 %v1630, 1.442695
        %v1632 = vpow.pop %v1631
        %v1633 = vadd.f32 %v1632, 1.0
        %v1634 = vrcp.pop %v1633
        %v1635 = vmul.f32 1.0, %v1634
        %v1636 = vmul.f32 %v1624, %v1502
        %v1637 = vmul.f32 %v1615, %v1627
        %v1638 = vadd.f32 %v1636, %v1637
        %v1639 = vtanh.pop %v1638
        %v1640 = vmul.f32 %v1635, %v1639
        %1641 = vst [vmem:[#allocation2] sm:$0x3] %v1640
        %1642 = vst [vmem:[#allocation3] sm:$0x3] %v1638
        %1643 = vst [vmem:[#allocation6 + $0x4] sm:$0x3] %v1640
        %s1644 = scalar_lea.vmem %s449, 4 [#allocation9]
        %v1645 = vld [vmem:[%s1644] sm:$0xf]
        %v1646 = vld [vmem:[#allocation4] sm:$0x3]
        %v1647 = vld [vmem:[#allocation5] sm:$0x3]
        %v1648 = vunpack.c.l.bf16 %v1645
        %v1649 = vpack.c.bf16 %v1646, %v1646
        %1650 = vmatprep.subr.bf16.mxu0 %v1007
        %1651 = vmatpush1.bf16.msra.mxu0 %v1006
        %1652 = vmatprep.subr.bf16.mxu0 %v1011
        %1653 = vmatpush1.bf16.msra.mxu0 %v1010
        %1654 = vmatprep.subr.bf16.mxu0 %v1015
        %1655 = vmatpush1.bf16.msra.mxu0 %v1014
        %1656 = vmatprep.subr.bf16.mxu0 %v1019
        %1657 = vmatpush1.bf16.msra.mxu0 %v1018
        %1658 = vmatprep.subr.bf16.mxu0 %v1023
        %1659 = vmatpush1.bf16.msra.mxu0 %v1022
        %1660 = vmatprep.subr.bf16.mxu0 %v1027
        %1661 = vmatpush1.bf16.msra.mxu0 %v1026
        %1662 = vmatprep.subr.bf16.mxu0 %v1031
        %1663 = vmatpush1.bf16.msra.mxu0 %v1030
        %1664 = vmatprep.subr.bf16.mxu0 %v1035
        %1665 = vmatpush1.bf16.msra.mxu0 %v1034
        %1666 = vmatprep.subr.bf16.mxu0 0
        %1667 = vmatpush1.bf16.msra.mxu0 0
        %1668 = vmatprep.subr.bf16.mxu0 0
        %1669 = vmatpush1.bf16.msra.mxu0 0
        %1670 = vmatprep.subr.bf16.mxu0 0
        %1671 = vmatpush1.bf16.msra.mxu0 0
        %1672 = vmatprep.subr.bf16.mxu0 0
        %1673 = vmatpush1.bf16.msra.mxu0 0
        %1674 = vmatprep.subr.bf16.mxu0 0
        %1675 = vmatpush1.bf16.msra.mxu0 0
        %1676 = vmatprep.subr.bf16.mxu0 0
        %1677 = vmatpush1.bf16.msra.mxu0 0
        %1678 = vmatprep.subr.bf16.mxu0 0
        %1679 = vmatpush1.bf16.msra.mxu0 0
        %1680 = vmatprep.subr.bf16.mxu0 0
        %1681 = vmatpush1.bf16.msra.mxu0 0
        %1682 = vmatprep.mubr.bf16.mxu0 0
        %1683 = vmatmul.mubr.bf16.gmra.mrb[0].mxu0 %v1649
        %v1684 = vpop.f32.mrb[0].mxu0
        %v1685 = vadd.f32 0.0, %v1684
        %v1686 = vpop.f32.mrb[0].mxu0
        %v1687 = vadd.f32 0.0, %v1686
        %v1688 = vpop.f32.mrb[0].mxu0
        %v1689 = vpop.f32.mrb[0].mxu0
        %1690 = vdwg.mxu0
        %1691 = vmatprep.subr.bf16.mxu0 %v1009
        %1692 = vmatpush1.bf16.msra.mxu0 %v1008
        %1693 = vmatprep.subr.bf16.mxu0 %v1013
        %1694 = vmatpush1.bf16.msra.mxu0 %v1012
        %1695 = vmatprep.subr.bf16.mxu0 %v1017
        %1696 = vmatpush1.bf16.msra.mxu0 %v1016
        %1697 = vmatprep.subr.bf16.mxu0 %v1021
        %1698 = vmatpush1.bf16.msra.mxu0 %v1020
        %1699 = vmatprep.subr.bf16.mxu0 %v1025
        %1700 = vmatpush1.bf16.msra.mxu0 %v1024
        %1701 = vmatprep.subr.bf16.mxu0 %v1029
        %1702 = vmatpush1.bf16.msra.mxu0 %v1028
        %1703 = vmatprep.subr.bf16.mxu0 %v1033
        %1704 = vmatpush1.bf16.msra.mxu0 %v1032
        %1705 = vmatprep.subr.bf16.mxu0 %v1037
        %1706 = vmatpush1.bf16.msra.mxu0 %v1036
        %1707 = vmatprep.subr.bf16.mxu0 0
        %1708 = vmatpush1.bf16.msra.mxu0 0
        %1709 = vmatprep.subr.bf16.mxu0 0
        %1710 = vmatpush1.bf16.msra.mxu0 0
        %1711 = vmatprep.subr.bf16.mxu0 0
        %1712 = vmatpush1.bf16.msra.mxu0 0
        %1713 = vmatprep.subr.bf16.mxu0 0
        %1714 = vmatpush1.bf16.msra.mxu0 0
        %1715 = vmatprep.subr.bf16.mxu0 0
        %1716 = vmatpush1.bf16.msra.mxu0 0
        %1717 = vmatprep.subr.bf16.mxu0 0
        %1718 = vmatpush1.bf16.msra.mxu0 0
        %1719 = vmatprep.subr.bf16.mxu0 0
        %1720 = vmatpush1.bf16.msra.mxu0 0
        %1721 = vmatprep.subr.bf16.mxu0 0
        %1722 = vmatpush1.bf16.msra.mxu0 0
        %1723 = vmatprep.mubr.bf16.mxu0 0
        %1724 = vmatmul.mubr.bf16.gmra.mrb[0].mxu0 %v1649
        %v1725 = vpop.f32.mrb[0].mxu0
        %v1726 = vadd.f32 0.0, %v1725
        %v1727 = vpop.f32.mrb[0].mxu0
        %v1728 = vadd.f32 0.0, %v1727
        %v1729 = vpop.f32.mrb[0].mxu0
        %v1730 = vpop.f32.mrb[0].mxu0
        %1731 = vdwg.mxu0
        %v1736 = vcombine.low %v1685, %v1687
        %v1737 = vcombine.low %v1726, %v1728
        %v1739 = vunpack.c.l.s4 1983009808
        %v1740 = vunpack.c.0.s8 %v1739
        %v1741 = vlaneseq
        %v1742 = vshrl.u32 %v1741, 7
        %v1743 = vsub.s32 %v1740, %v1742
        %v1744 = vrot.slane %v1736, %v1743
        %v1746 = vunpack.c.l.s4 1983009808
        %v1747 = vunpack.c.0.s8 %v1746
        %v1748 = vlaneseq
        %v1749 = vshrl.u32 %v1748, 7
        %v1750 = vsub.s32 %v1747, %v1749
        %v1751 = vrot.slane %v1737, %v1750
        %v1752 = vcombine.low %v1744, %v1751
        %v1754 = vadd.f32 %v1648, %v1752
        %v1755 = vxor.u32 %v1754, 2147483648
        %v1756 = vmul.f32 %v1755, 1.442695
        %v1757 = vpow.pop %v1756
        %v1758 = vadd.f32 %v1757, 1.0
        %v1759 = vrcp.pop %v1758
        %v1760 = vmul.f32 1.0, %v1759
        %v1762 = vrot.slane %v1754, 2
        %v1764 = vxor.u32 %v1762, 2147483648
        %v1765 = vmul.f32 %v1764, 1.442695
        %v1766 = vpow.pop %v1765
        %v1767 = vadd.f32 %v1766, 1.0
        %v1768 = vrcp.pop %v1767
        %v1769 = vmul.f32 1.0, %v1768
        %v1770 = vrot.slane %v1754, 4
        %v1772 = vtanh.pop %v1770
        %v1773 = vrot.slane %v1754, 6
        %v1775 = vxor.u32 %v1773, 2147483648
        %v1776 = vmul.f32 %v1775, 1.442695
        %v1777 = vpow.pop %v1776
        %v1778 = vadd.f32 %v1777, 1.0
        %v1779 = vrcp.pop %v1778
        %v1780 = vmul.f32 1.0, %v1779
        %v1781 = vmul.f32 %v1769, %v1647
        %v1782 = vmul.f32 %v1760, %v1772
        %v1783 = vadd.f32 %v1781, %v1782
        %v1784 = vtanh.pop %v1783
        %v1785 = vmul.f32 %v1780, %v1784
        %1786 = vst [vmem:[#allocation4] sm:$0x3] %v1785
        %1787 = vst [vmem:[#allocation5] sm:$0x3] %v1783
        %1788 = vst [vmem:[#allocation7 + $0x2] sm:$0x3] %v1785
        %s1789 = scalar_lea.vmem %s442, 12 [#allocation8]
        %v1790 = vld [vmem:[%s1789] sm:$0xf]
        %v1791 = vld [vmem:[#allocation2] sm:$0x3]
        %v1792 = vld [vmem:[#allocation3] sm:$0x3]
        %v1793 = vunpack.c.l.bf16 %v1790
        %v1794 = vpack.c.bf16 %v1791, %v1791
        %1795 = vmatprep.subr.bf16.mxu0 %v702
        %1796 = vmatpush1.bf16.msra.mxu0 %v701
        %1797 = vmatprep.subr.bf16.mxu0 %v706
        %1798 = vmatpush1.bf16.msra.mxu0 %v705
        %1799 = vmatprep.subr.bf16.mxu0 %v710
        %1800 = vmatpush1.bf16.msra.mxu0 %v709
        %1801 = vmatprep.subr.bf16.mxu0 %v714
        %1802 = vmatpush1.bf16.msra.mxu0 %v713
        %1803 = vmatprep.subr.bf16.mxu0 %v718
        %1804 = vmatpush1.bf16.msra.mxu0 %v717
        %1805 = vmatprep.subr.bf16.mxu0 %v722
        %1806 = vmatpush1.bf16.msra.mxu0 %v721
        %1807 = vmatprep.subr.bf16.mxu0 %v726
        %1808 = vmatpush1.bf16.msra.mxu0 %v725
        %1809 = vmatprep.subr.bf16.mxu0 %v730
        %1810 = vmatpush1.bf16.msra.mxu0 %v729
        %1811 = vmatprep.subr.bf16.mxu0 0
        %1812 = vmatpush1.bf16.msra.mxu0 0
        %1813 = vmatprep.subr.bf16.mxu0 0
        %1814 = vmatpush1.bf16.msra.mxu0 0
        %1815 = vmatprep.subr.bf16.mxu0 0
        %1816 = vmatpush1.bf16.msra.mxu0 0
        %1817 = vmatprep.subr.bf16.mxu0 0
        %1818 = vmatpush1.bf16.msra.mxu0 0
        %1819 = vmatprep.subr.bf16.mxu0 0
        %1820 = vmatpush1.bf16.msra.mxu0 0
        %1821 = vmatprep.subr.bf16.mxu0 0
        %1822 = vmatpush1.bf16.msra.mxu0 0
        %1823 = vmatprep.subr.bf16.mxu0 0
        %1824 = vmatpush1.bf16.msra.mxu0 0
        %1825 = vmatprep.subr.bf16.mxu0 0
        %1826 = vmatpush1.bf16.msra.mxu0 0
        %1827 = vmatprep.mubr.bf16.mxu0 0
        %1828 = vmatmul.mubr.bf16.gmra.mrb[0].mxu0 %v1794
        %v1829 = vpop.f32.mrb[0].mxu0
        %v1830 = vadd.f32 0.0, %v1829
        %v1831 = vpop.f32.mrb[0].mxu0
        %v1832 = vadd.f32 0.0, %v1831
        %v1833 = vpop.f32.mrb[0].mxu0
        %v1834 = vpop.f32.mrb[0].mxu0
        %1835 = vdwg.mxu0
        %1836 = vmatprep.subr.bf16.mxu0 %v704
        %1837 = vmatpush1.bf16.msra.mxu0 %v703
        %1838 = vmatprep.subr.bf16.mxu0 %v708
        %1839 = vmatpush1.bf16.msra.mxu0 %v707
        %1840 = vmatprep.subr.bf16.mxu0 %v712
        %1841 = vmatpush1.bf16.msra.mxu0 %v711
        %1842 = vmatprep.subr.bf16.mxu0 %v716
        %1843 = vmatpush1.bf16.msra.mxu0 %v715
        %1844 = vmatprep.subr.bf16.mxu0 %v720
        %1845 = vmatpush1.bf16.msra.mxu0 %v719
        %1846 = vmatprep.subr.bf16.mxu0 %v724
        %1847 = vmatpush1.bf16.msra.mxu0 %v723
        %1848 = vmatprep.subr.bf16.mxu0 %v728
        %1849 = vmatpush1.bf16.msra.mxu0 %v727
        %1850 = vmatprep.subr.bf16.mxu0 %v732
        %1851 = vmatpush1.bf16.msra.mxu0 %v731
        %1852 = vmatprep.subr.bf16.mxu0 0
        %1853 = vmatpush1.bf16.msra.mxu0 0
        %1854 = vmatprep.subr.bf16.mxu0 0
        %1855 = vmatpush1.bf16.msra.mxu0 0
        %1856 = vmatprep.subr.bf16.mxu0 0
        %1857 = vmatpush1.bf16.msra.mxu0 0
        %1858 = vmatprep.subr.bf16.mxu0 0
        %1859 = vmatpush1.bf16.msra.mxu0 0
        %1860 = vmatprep.subr.bf16.mxu0 0
        %1861 = vmatpush1.bf16.msra.mxu0 0
        %1862 = vmatprep.subr.bf16.mxu0 0
        %1863 = vmatpush1.bf16.msra.mxu0 0
        %1864 = vmatprep.subr.bf16.mxu0 0
        %1865 = vmatpush1.bf16.msra.mxu0 0
        %1866 = vmatprep.subr.bf16.mxu0 0
        %1867 = vmatpush1.bf16.msra.mxu0 0
        %1868 = vmatprep.mubr.bf16.mxu0 0
        %1869 = vmatmul.mubr.bf16.gmra.mrb[0].mxu0 %v1794
        %v1870 = vpop.f32.mrb[0].mxu0
        %v1871 = vadd.f32 0.0, %v1870
        %v1872 = vpop.f32.mrb[0].mxu0
        %v1873 = vadd.f32 0.0, %v1872
        %v1874 = vpop.f32.mrb[0].mxu0
        %v1875 = vpop.f32.mrb[0].mxu0
        %1876 = vdwg.mxu0
        %v1881 = vcombine.low %v1830, %v1832
        %v1882 = vcombine.low %v1871, %v1873
        %v1884 = vunpack.c.l.s4 1983009808
        %v1885 = vunpack.c.0.s8 %v1884
        %v1886 = vlaneseq
        %v1887 = vshrl.u32 %v1886, 7
        %v1888 = vsub.s32 %v1885, %v1887
        %v1889 = vrot.slane %v1881, %v1888
        %v1891 = vunpack.c.l.s4 1983009808
        %v1892 = vunpack.c.0.s8 %v1891
        %v1893 = vlaneseq
        %v1894 = vshrl.u32 %v1893, 7
        %v1895 = vsub.s32 %v1892, %v1894
        %v1896 = vrot.slane %v1882, %v1895
        %v1897 = vcombine.low %v1889, %v1896
        %v1899 = vadd.f32 %v1793, %v1897
        %v1900 = vxor.u32 %v1899, 2147483648
        %v1901 = vmul.f32 %v1900, 1.442695
        %v1902 = vpow.pop %v1901
        %v1903 = vadd.f32 %v1902, 1.0
        %v1904 = vrcp.pop %v1903
        %v1905 = vmul.f32 1.0, %v1904
        %v1907 = vrot.slane %v1899, 2
        %v1909 = vxor.u32 %v1907, 2147483648
        %v1910 = vmul.f32 %v1909, 1.442695
        %v1911 = vpow.pop %v1910
        %v1912 = vadd.f32 %v1911, 1.0
        %v1913 = vrcp.pop %v1912
        %v1914 = vmul.f32 1.0, %v1913
        %v1915 = vrot.slane %v1899, 4
        %v1917 = vtanh.pop %v1915
        %v1918 = vrot.slane %v1899, 6
        %v1920 = vxor.u32 %v1918, 2147483648
        %v1921 = vmul.f32 %v1920, 1.442695
        %v1922 = vpow.pop %v1921
        %v1923 = vadd.f32 %v1922, 1.0
        %v1924 = vrcp.pop %v1923
        %v1925 = vmul.f32 1.0, %v1924
        %v1926 = vmul.f32 %v1914, %v1792
        %v1927 = vmul.f32 %v1905, %v1917
        %v1928 = vadd.f32 %v1926, %v1927
        %v1929 = vtanh.pop %v1928
        %v1930 = vmul.f32 %v1925, %v1929
        %1931 = vst [vmem:[#allocation2] sm:$0x3] %v1930
        %1932 = vst [vmem:[#allocation3] sm:$0x3] %v1928
        %1933 = vst [vmem:[#allocation6 + $0x6] sm:$0x3] %v1930
        %v1934 = vld [vmem:[%s449] sm:$0xf]
        %v1935 = vld [vmem:[#allocation4] sm:$0x3]
        %v1936 = vld [vmem:[#allocation5] sm:$0x3]
        %v1937 = vunpack.c.l.bf16 %v1934
        %v1938 = vpack.c.bf16 %v1935, %v1935
        %1939 = vmatprep.subr.bf16.mxu0 %v1007
        %1940 = vmatpush1.bf16.msra.mxu0 %v1006
        %1941 = vmatprep.subr.bf16.mxu0 %v1011
        %1942 = vmatpush1.bf16.msra.mxu0 %v1010
        %1943 = vmatprep.subr.bf16.mxu0 %v1015
        %1944 = vmatpush1.bf16.msra.mxu0 %v1014
        %1945 = vmatprep.subr.bf16.mxu0 %v1019
        %1946 = vmatpush1.bf16.msra.mxu0 %v1018
        %1947 = vmatprep.subr.bf16.mxu0 %v1023
        %1948 = vmatpush1.bf16.msra.mxu0 %v1022
        %1949 = vmatprep.subr.bf16.mxu0 %v1027
        %1950 = vmatpush1.bf16.msra.mxu0 %v1026
        %1951 = vmatprep.subr.bf16.mxu0 %v1031
        %1952 = vmatpush1.bf16.msra.mxu0 %v1030
        %1953 = vmatprep.subr.bf16.mxu0 %v1035
        %1954 = vmatpush1.bf16.msra.mxu0 %v1034
        %1955 = vmatprep.subr.bf16.mxu0 0
        %1956 = vmatpush1.bf16.msra.mxu0 0
        %1957 = vmatprep.subr.bf16.mxu0 0
        %1958 = vmatpush1.bf16.msra.mxu0 0
        %1959 = vmatprep.subr.bf16.mxu0 0
        %1960 = vmatpush1.bf16.msra.mxu0 0
        %1961 = vmatprep.subr.bf16.mxu0 0
        %1962 = vmatpush1.bf16.msra.mxu0 0
        %1963 = vmatprep.subr.bf16.mxu0 0
        %1964 = vmatpush1.bf16.msra.mxu0 0
        %1965 = vmatprep.subr.bf16.mxu0 0
        %1966 = vmatpush1.bf16.msra.mxu0 0
        %1967 = vmatprep.subr.bf16.mxu0 0
        %1968 = vmatpush1.bf16.msra.mxu0 0
        %1969 = vmatprep.subr.bf16.mxu0 0
        %1970 = vmatpush1.bf16.msra.mxu0 0
        %1971 = vmatprep.mubr.bf16.mxu0 0
        %1972 = vmatmul.mubr.bf16.gmra.mrb[0].mxu0 %v1938
        %v1973 = vpop.f32.mrb[0].mxu0
        %v1974 = vadd.f32 0.0, %v1973
        %v1975 = vpop.f32.mrb[0].mxu0
        %v1976 = vadd.f32 0.0, %v1975
        %v1977 = vpop.f32.mrb[0].mxu0
        %v1978 = vpop.f32.mrb[0].mxu0
        %1979 = vdwg.mxu0
        %1980 = vmatprep.subr.bf16.mxu0 %v1009
        %1981 = vmatpush1.bf16.msra.mxu0 %v1008
        %1982 = vmatprep.subr.bf16.mxu0 %v1013
        %1983 = vmatpush1.bf16.msra.mxu0 %v1012
        %1984 = vmatprep.subr.bf16.mxu0 %v1017
        %1985 = vmatpush1.bf16.msra.mxu0 %v1016
        %1986 = vmatprep.subr.bf16.mxu0 %v1021
        %1987 = vmatpush1.bf16.msra.mxu0 %v1020
        %1988 = vmatprep.subr.bf16.mxu0 %v1025
        %1989 = vmatpush1.bf16.msra.mxu0 %v1024
        %1990 = vmatprep.subr.bf16.mxu0 %v1029
        %1991 = vmatpush1.bf16.msra.mxu0 %v1028
        %1992 = vmatprep.subr.bf16.mxu0 %v1033
        %1993 = vmatpush1.bf16.msra.mxu0 %v1032
        %1994 = vmatprep.subr.bf16.mxu0 %v1037
        %1995 = vmatpush1.bf16.msra.mxu0 %v1036
        %1996 = vmatprep.subr.bf16.mxu0 0
        %1997 = vmatpush1.bf16.msra.mxu0 0
        %1998 = vmatprep.subr.bf16.mxu0 0
        %1999 = vmatpush1.bf16.msra.mxu0 0
        %2000 = vmatprep.subr.bf16.mxu0 0
        %2001 = vmatpush1.bf16.msra.mxu0 0
        %2002 = vmatprep.subr.bf16.mxu0 0
        %2003 = vmatpush1.bf16.msra.mxu0 0
        %2004 = vmatprep.subr.bf16.mxu0 0
        %2005 = vmatpush1.bf16.msra.mxu0 0
        %2006 = vmatprep.subr.bf16.mxu0 0
        %2007 = vmatpush1.bf16.msra.mxu0 0
        %2008 = vmatprep.subr.bf16.mxu0 0
        %2009 = vmatpush1.bf16.msra.mxu0 0
        %2010 = vmatprep.subr.bf16.mxu0 0
        %2011 = vmatpush1.bf16.msra.mxu0 0
        %2012 = vmatprep.mubr.bf16.mxu0 0
        %2013 = vmatmul.mubr.bf16.gmra.mrb[0].mxu0 %v1938
        %v2014 = vpop.f32.mrb[0].mxu0
        %v2015 = vadd.f32 0.0, %v2014
        %v2016 = vpop.f32.mrb[0].mxu0
        %v2017 = vadd.f32 0.0, %v2016
        %v2018 = vpop.f32.mrb[0].mxu0
        %v2019 = vpop.f32.mrb[0].mxu0
        %2020 = vdwg.mxu0
        %v2025 = vcombine.low %v1974, %v1976
        %v2026 = vcombine.low %v2015, %v2017
        %v2028 = vunpack.c.l.s4 1983009808
        %v2029 = vunpack.c.0.s8 %v2028
        %v2030 = vlaneseq
        %v2031 = vshrl.u32 %v2030, 7
        %v2032 = vsub.s32 %v2029, %v2031
        %v2033 = vrot.slane %v2025, %v2032
        %v2035 = vunpack.c.l.s4 1983009808
        %v2036 = vunpack.c.0.s8 %v2035
        %v2037 = vlaneseq
        %v2038 = vshrl.u32 %v2037, 7
        %v2039 = vsub.s32 %v2036, %v2038
        %v2040 = vrot.slane %v2026, %v2039
        %v2041 = vcombine.low %v2033, %v2040
        %v2043 = vadd.f32 %v1937, %v2041
        %v2044 = vxor.u32 %v2043, 2147483648
        %v2045 = vmul.f32 %v2044, 1.442695
        %v2046 = vpow.pop %v2045
        %v2047 = vadd.f32 %v2046, 1.0
        %v2048 = vrcp.pop %v2047
        %v2049 = vmul.f32 1.0, %v2048
        %v2051 = vrot.slane %v2043, 2
        %v2053 = vxor.u32 %v2051, 2147483648
        %v2054 = vmul.f32 %v2053, 1.442695
        %v2055 = vpow.pop %v2054
        %v2056 = vadd.f32 %v2055, 1.0
        %v2057 = vrcp.pop %v2056
        %v2058 = vmul.f32 1.0, %v2057
        %v2059 = vrot.slane %v2043, 4
        %v2061 = vtanh.pop %v2059
        %v2062 = vrot.slane %v2043, 6
        %v2064 = vxor.u32 %v2062, 2147483648
        %v2065 = vmul.f32 %v2064, 1.442695
        %v2066 = vpow.pop %v2065
        %v2067 = vadd.f32 %v2066, 1.0
        %v2068 = vrcp.pop %v2067
        %v2069 = vmul.f32 1.0, %v2068
        %v2070 = vmul.f32 %v2058, %v1936
        %v2071 = vmul.f32 %v2049, %v2061
        %v2072 = vadd.f32 %v2070, %v2071
        %v2073 = vtanh.pop %v2072
        %v2074 = vmul.f32 %v2069, %v2073
        %2075 = vst [vmem:[#allocation4] sm:$0x3] %v2074
        %2076 = vst [vmem:[#allocation5] sm:$0x3] %v2072
        %2077 = vst [vmem:[#allocation7] sm:$0x3] %v2074
        %v2078 = vld [vmem:[#allocation6] sm:$0xff]
        %v2079 = vpack.c.bf16 %v2078, %v2078
        %v2080 = vld [vmem:[#allocation10] sm:$0xf]
        %v2081 = vld [vmem:[#allocation10 + $0x4] sm:$0xf]
        %v2082 = vld [vmem:[#allocation10 + $0x8] sm:$0xf]
        %v2083 = vld [vmem:[#allocation10 + $0xc] sm:$0xf]
        %v2084 = vld [vmem:[#allocation10 + $0x10] sm:$0xf]
        %v2085 = vld [vmem:[#allocation10 + $0x14] sm:$0xf]
        %v2086 = vld [vmem:[#allocation10 + $0x18] sm:$0xf]
        %v2087 = vld [vmem:[#allocation10 + $0x1c] sm:$0xf]
        %v2088 = vld [vmem:[#allocation10 + $0x20] sm:$0xf]
        %v2089 = vld [vmem:[#allocation10 + $0x24] sm:$0xf]
        %v2090 = vld [vmem:[#allocation10 + $0x28] sm:$0xf]
        %v2091 = vld [vmem:[#allocation10 + $0x2c] sm:$0xf]
        %v2092 = vld [vmem:[#allocation10 + $0x30] sm:$0xf]
        %v2093 = vld [vmem:[#allocation10 + $0x34] sm:$0xf]
        %v2094 = vld [vmem:[#allocation10 + $0x38] sm:$0xf]
        %v2095 = vld [vmem:[#allocation10 + $0x3c] sm:$0xf]
        %v2096 = vld [vmem:[%s6] sm:$0x1]
        %v2098 = vlaneseq
        %v2099 = vshrl.u32 %v2098, 7
        %v2100 = vsub.s32 0, %v2099
        %v2101 = vrot.slane %v2096, %v2100
        %v2119 = vunpack.c.l.b16 %v2080
        %v2120 = vunpack.c.l.b16 %v2081
        %v2121 = vunpack.c.l.b16 %v2082
        %v2122 = vunpack.c.l.b16 %v2083
        %v2123 = vunpack.c.l.b16 %v2084
        %v2124 = vunpack.c.l.b16 %v2085
        %v2125 = vunpack.c.l.b16 %v2086
        %v2126 = vunpack.c.l.b16 %v2087
        %v2127 = vunpack.c.l.b16 %v2088
        %v2128 = vunpack.c.l.b16 %v2089
        %v2129 = vunpack.c.l.b16 %v2090
        %v2130 = vunpack.c.l.b16 %v2091
        %v2131 = vunpack.c.l.b16 %v2092
        %v2132 = vunpack.c.l.b16 %v2093
        %v2133 = vunpack.c.l.b16 %v2094
        %v2134 = vunpack.c.l.b16 %v2095
        %v2135 = vpack.c.b16 %v2120, %v2119
        %v2136 = vpack.c.b16 %v2122, %v2121
        %v2137 = vpack.c.b16 %v2124, %v2123
        %v2138 = vpack.c.b16 %v2126, %v2125
        %v2139 = vpack.c.b16 %v2128, %v2127
        %v2140 = vpack.c.b16 %v2130, %v2129
        %v2141 = vpack.c.b16 %v2132, %v2131
        %v2142 = vpack.c.b16 %v2134, %v2133
        %2151 = vmatprep.subr.bf16.mxu0 0
        %2152 = vmatpush1.bf16.msra.mxu0 %v2135
        %2153 = vmatprep.subr.bf16.mxu0 0
        %2154 = vmatpush1.bf16.msra.mxu0 %v2136
        %2155 = vmatprep.subr.bf16.mxu0 0
        %2156 = vmatpush1.bf16.msra.mxu0 %v2137
        %2157 = vmatprep.subr.bf16.mxu0 0
        %2158 = vmatpush1.bf16.msra.mxu0 %v2138
        %2159 = vmatprep.subr.bf16.mxu0 0
        %2160 = vmatpush1.bf16.msra.mxu0 %v2139
        %2161 = vmatprep.subr.bf16.mxu0 0
        %2162 = vmatpush1.bf16.msra.mxu0 %v2140
        %2163 = vmatprep.subr.bf16.mxu0 0
        %2164 = vmatpush1.bf16.msra.mxu0 %v2141
        %2165 = vmatprep.subr.bf16.mxu0 0
        %2166 = vmatpush1.bf16.msra.mxu0 %v2142
        %2167 = vmatprep.subr.bf16.mxu0 0
        %2168 = vmatpush1.bf16.msra.mxu0 0
        %2169 = vmatprep.subr.bf16.mxu0 0
        %2170 = vmatpush1.bf16.msra.mxu0 0
        %2171 = vmatprep.subr.bf16.mxu0 0
        %2172 = vmatpush1.bf16.msra.mxu0 0
        %2173 = vmatprep.subr.bf16.mxu0 0
        %2174 = vmatpush1.bf16.msra.mxu0 0
        %2175 = vmatprep.subr.bf16.mxu0 0
        %2176 = vmatpush1.bf16.msra.mxu0 0
        %2177 = vmatprep.subr.bf16.mxu0 0
        %2178 = vmatpush1.bf16.msra.mxu0 0
        %2179 = vmatprep.subr.bf16.mxu0 0
        %2180 = vmatpush1.bf16.msra.mxu0 0
        %2181 = vmatprep.subr.bf16.mxu0 0
        %2182 = vmatpush1.bf16.msra.mxu0 0
        %2183 = vmatprep.mubr.bf16.mxu0 0
        %2184 = vmatmul.mubr.bf16.gmra.mrb[0].mxu0 %v2079
        %v2185 = vpop.f32.mrb[0].mxu0
        %v2186 = vadd.f32 %v2101, %v2185
        %v2187 = vpop.f32.mrb[0].mxu0
        %v2188 = vpop.f32.mrb[0].mxu0
        %v2189 = vpop.f32.mrb[0].mxu0
        %2190 = vdwg.mxu0
        %v2191 = vld [vmem:[#allocation7] sm:$0xff]
        %v2192 = vpack.c.bf16 %v2191, %v2191
        %v2193 = vld [vmem:[#allocation12] sm:$0xf]
        %v2194 = vld [vmem:[#allocation12 + $0x4] sm:$0xf]
        %v2195 = vld [vmem:[#allocation12 + $0x8] sm:$0xf]
        %v2196 = vld [vmem:[#allocation12 + $0xc] sm:$0xf]
        %v2197 = vld [vmem:[#allocation12 + $0x10] sm:$0xf]
        %v2198 = vld [vmem:[#allocation12 + $0x14] sm:$0xf]
        %v2199 = vld [vmem:[#allocation12 + $0x18] sm:$0xf]
        %v2200 = vld [vmem:[#allocation12 + $0x1c] sm:$0xf]
        %v2201 = vld [vmem:[#allocation12 + $0x20] sm:$0xf]
        %v2202 = vld [vmem:[#allocation12 + $0x24] sm:$0xf]
        %v2203 = vld [vmem:[#allocation12 + $0x28] sm:$0xf]
        %v2204 = vld [vmem:[#allocation12 + $0x2c] sm:$0xf]
        %v2205 = vld [vmem:[#allocation12 + $0x30] sm:$0xf]
        %v2206 = vld [vmem:[#allocation12 + $0x34] sm:$0xf]
        %v2207 = vld [vmem:[#allocation12 + $0x38] sm:$0xf]
        %v2208 = vld [vmem:[#allocation12 + $0x3c] sm:$0xf]
        %v2225 = vunpack.c.l.b16 %v2193
        %v2226 = vunpack.c.l.b16 %v2194
        %v2227 = vunpack.c.l.b16 %v2195
        %v2228 = vunpack.c.l.b16 %v2196
        %v2229 = vunpack.c.l.b16 %v2197
        %v2230 = vunpack.c.l.b16 %v2198
        %v2231 = vunpack.c.l.b16 %v2199
        %v2232 = vunpack.c.l.b16 %v2200
        %v2233 = vunpack.c.l.b16 %v2201
        %v2234 = vunpack.c.l.b16 %v2202
        %v2235 = vunpack.c.l.b16 %v2203
        %v2236 = vunpack.c.l.b16 %v2204
        %v2237 = vunpack.c.l.b16 %v2205
        %v2238 = vunpack.c.l.b16 %v2206
        %v2239 = vunpack.c.l.b16 %v2207
        %v2240 = vunpack.c.l.b16 %v2208
        %v2241 = vpack.c.b16 %v2226, %v2225
        %v2242 = vpack.c.b16 %v2228, %v2227
        %v2243 = vpack.c.b16 %v2230, %v2229
        %v2244 = vpack.c.b16 %v2232, %v2231
        %v2245 = vpack.c.b16 %v2234, %v2233
        %v2246 = vpack.c.b16 %v2236, %v2235
        %v2247 = vpack.c.b16 %v2238, %v2237
        %v2248 = vpack.c.b16 %v2240, %v2239
        %2257 = vmatprep.subr.bf16.mxu0 0
        %2258 = vmatpush1.bf16.msra.mxu0 %v2241
        %2259 = vmatprep.subr.bf16.mxu0 0
        %2260 = vmatpush1.bf16.msra.mxu0 %v2242
        %2261 = vmatprep.subr.bf16.mxu0 0
        %2262 = vmatpush1.bf16.msra.mxu0 %v2243
        %2263 = vmatprep.subr.bf16.mxu0 0
        %2264 = vmatpush1.bf16.msra.mxu0 %v2244
        %2265 = vmatprep.subr.bf16.mxu0 0
        %2266 = vmatpush1.bf16.msra.mxu0 %v2245
        %2267 = vmatprep.subr.bf16.mxu0 0
        %2268 = vmatpush1.bf16.msra.mxu0 %v2246
        %2269 = vmatprep.subr.bf16.mxu0 0
        %2270 = vmatpush1.bf16.msra.mxu0 %v2247
        %2271 = vmatprep.subr.bf16.mxu0 0
        %2272 = vmatpush1.bf16.msra.mxu0 %v2248
        %2273 = vmatprep.subr.bf16.mxu0 0
        %2274 = vmatpush1.bf16.msra.mxu0 0
        %2275 = vmatprep.subr.bf16.mxu0 0
        %2276 = vmatpush1.bf16.msra.mxu0 0
        %2277 = vmatprep.subr.bf16.mxu0 0
        %2278 = vmatpush1.bf16.msra.mxu0 0
        %2279 = vmatprep.subr.bf16.mxu0 0
        %2280 = vmatpush1.bf16.msra.mxu0 0
        %2281 = vmatprep.subr.bf16.mxu0 0
        %2282 = vmatpush1.bf16.msra.mxu0 0
        %2283 = vmatprep.subr.bf16.mxu0 0
        %2284 = vmatpush1.bf16.msra.mxu0 0
        %2285 = vmatprep.subr.bf16.mxu0 0
        %2286 = vmatpush1.bf16.msra.mxu0 0
        %2287 = vmatprep.subr.bf16.mxu0 0
        %2288 = vmatpush1.bf16.msra.mxu0 0
        %2289 = vmatprep.mubr.bf16.mxu0 0
        %2290 = vmatmul.mubr.bf16.gmra.mrb[0].mxu0 %v2192
        %v2291 = vpop.f32.mrb[0].mxu0
        %v2292 = vadd.f32 0.0, %v2291
        %v2293 = vpop.f32.mrb[0].mxu0
        %v2294 = vpop.f32.mrb[0].mxu0
        %v2295 = vpop.f32.mrb[0].mxu0
        %2296 = vdwg.mxu0
        %2297 = vst [vmem:[%s514] sm:$0x3] %v2186
        %2298 = vst [vmem:[%s524] sm:$0x3] %v2292
        %s2299 = scalar_lea.vmem %s514, 2
        %2300 = vst [vmem:[%s2299 - $0x2] sm:$0xc] %v2186
        %s2301 = scalar_lea.vmem %s524, 2
        %2302 = vst [vmem:[%s2301 - $0x2] sm:$0xc] %v2292
        %s2303 = scalar_lea.vmem %s514, 4
        %2304 = vst [vmem:[%s2303 - $0x4] sm:$0x30] %v2186
        %s2305 = scalar_lea.vmem %s524, 4
        %2306 = vst [vmem:[%s2305 - $0x4] sm:$0x30] %v2292
        %s2307 = scalar_lea.vmem %s514, 6
        %2308 = vst [vmem:[%s2307 - $0x6] sm:$0xc0] %v2186
        %s2309 = scalar_lea.vmem %s524, 6
        %2310 = vst [vmem:[%s2309 - $0x6] sm:$0xc0] %v2292
        %s2311 = smul.u32 4, %s27
        %p2312 = scmp.lt.s32.totalorder %s2311, 7
        %s2313 = scalar_select %p2312, %s2311, 7
        %p2314 = scmp.lt.s32.totalorder %s26, 0
        %s2315 = scalar_select %p2314, %s26, 0
        %s2316 = sadd.s32 %s2315, %s2313
        %s2317 = smul.addr %s2316, 2
        %s2318 = scalar_lea.vmem %s7, %s2317
        %s2319 = ssub.s32 1, %s27
        %s2320 = smul.u32 4, %s2319
        %p2321 = scmp.lt.s32.totalorder %s2320, 7
        %s2322 = scalar_select %p2321, %s2320, 7
        %p2323 = scmp.lt.s32.totalorder %s26, 0
        %s2324 = scalar_select %p2323, %s26, 0
        %s2325 = sadd.s32 %s2324, %s2322
        %s2326 = smul.addr %s2325, 2
        %s2327 = scalar_lea.vmem %s8, %s2326
        // Predicated region
        $region143: #{bilstm_crf_forward.5} parent=121 // pred_check
          %p2328 = pneg %p217
        $region144: #{bilstm_crf_forward.5} parent=121 // pred_check_branch
          %2330 = sbr.rel (%p2328) target = $region146
        $region145: #{bilstm_crf_forward.5} parent=121 // pred_region
          %s2331 = smul.u32 4, %s27
        $region146: #{bilstm_crf_forward.5} parent=121 // pred_fallthru
          _
        // Predicated region
        $region147: #{bilstm_crf_forward.5} parent=121 // pred_check
          %p2332 = pneg %p247
        $region148: #{bilstm_crf_forward.5} parent=121 // pred_check_branch
          %2334 = sbr.rel (%p2332) target = $region150
        $region149: #{bilstm_crf_forward.5} parent=121 // pred_region
          %s2335 = ssub.s32 1, %s27
          %s2336 = smul.u32 4, %s2335
        $region150: #{bilstm_crf_forward.5} parent=121 // pred_fallthru
          _
      $region122: #{bilstm_crf_forward.5} parent=5 // pred_fallthru
        _
      %p2337 = scmp.le.s32.totalorder 2, %s17
      // Predicated region
      $region151: #{bilstm_crf_forward.5} parent=5 // pred_check
        %p2338 = pneg %p2337
      $region152: #{bilstm_crf_forward.5} parent=5 // pred_check_branch
        %2340 = sbr.rel (%p2338) target = $region154
      $region153: #{bilstm_crf_forward.5} parent=5 // pred_region
        %s2341 = ssub.s32 %s17, 2
        // Predicated region
        $region155: #{bilstm_crf_forward.5} parent=153 // pred_check
          %p2342 = pneg %p223
        $region156: #{bilstm_crf_forward.5} parent=153 // pred_check_branch
          %2344 = sbr.rel (%p2342) target = $region158
        $region157: #{bilstm_crf_forward.5} parent=153 // pred_region
          %s2345 = smul.u32 4, %s29
          %p2346 = scmp.lt.s32.totalorder %s2345, 7
          %s2347 = scalar_select %p2346, %s2345, 7
          %p2348 = scmp.lt.s32.totalorder %s28, 0
          %s2349 = scalar_select %p2348, %s28, 0
          %s2350 = sadd.s32 %s2349, %s2347
          %s2351 = smul.addr %s2350, 2
          %s2352 = scalar_lea.vmem %s7, %s2351
        $region158: #{bilstm_crf_forward.5} parent=153 // pred_fallthru
          _
        // Predicated region
        $region159: #{bilstm_crf_forward.5} parent=153 // pred_check
          %p2353 = pneg %p253
        $region160: #{bilstm_crf_forward.5} parent=153 // pred_check_branch
          %2355 = sbr.rel (%p2353) target = $region162
        $region161: #{bilstm_crf_forward.5} parent=153 // pred_region
          %s2356 = ssub.s32 1, %s29
          %s2357 = smul.u32 4, %s2356
          %p2358 = scmp.lt.s32.totalorder %s2357, 7
          %s2359 = scalar_select %p2358, %s2357, 7
          %p2360 = scmp.lt.s32.totalorder %s28, 0
          %s2361 = scalar_select %p2360, %s28, 0
          %s2362 = sadd.s32 %s2361, %s2359
          %s2363 = smul.addr %s2362, 2
          %s2364 = scalar_lea.vmem %s8, %s2363
        $region162: #{bilstm_crf_forward.5} parent=153 // pred_fallthru
          _
      $region154: #{bilstm_crf_forward.5} parent=5 // pred_fallthru
        _
    $region6: #{bilstm_crf_forward.5} parent=1 // loop_footer
      %s21 = sadd.s32 1, %s17
    $region7: #{bilstm_crf_forward.5} parent=1 // loop_footer_branch
      %16 = sbr.rel target = $region3
    $region8: #{bilstm_crf_forward.5} parent=1 // loop_exit
      _
    %2365 = vsyncpa [#allocation11], 1
    %s2366 = scalar_lea.sflag [#allocation11], 1
    %2367 = vsyncpa %s2366, 1
    %2368 = vsyncpa [#allocation13], 1

</llo_original>
